<compile_context>
chip_gen: v7x
topology: tpu7x:2x2x1
jax: 0.10.0
libtpu: 0.0.40
codegen_flags: <defaults>
</compile_context>

<pallas_src>
import functools

import jax
import jax.numpy as jnp
import numpy as np
from jax import lax
from jax.experimental import pallas as pl
from jax.experimental.pallas import tpu as pltpu

PAD7 = 3  # reflect padding of the 7x7 grouped conv
TAPS3 = [(dh, dw) for dh in (-1, 0, 1) for dw in (-1, 0, 1)]  # kh-major 3x3 taps


def _col_masks(W, P):
    """Masks (1, H*W) that kill the column wrap-around of flat lane shifts
    (used to emulate zero-padded 3x3 convs on a lane-dense (C, H*W) layout)."""
    col = lax.broadcasted_iota(jnp.int32, (1, P), 1) % W
    return col != 0, col != (W - 1)  # valid for dw == -1 / dw == +1


# ---------------------------------------------------------------------------
# Kernel 1: qkv 1x1 conv + depthwise 3x3 + multi-head channel attention +
#           project_out, fully fused, flattened-pixel layout.
# ---------------------------------------------------------------------------
def _qkv_attn_kernel(temp_ref, x_ref, y_ref, wqkv_ref, dww_ref, wproj_ref,
                     qkv_ref, att_ref, ext_scr, att_scr, *, C, heads, H, W):
    P = H * W
    ch = C // heads
    C3 = 3 * C

    initial = x_ref[...] + y_ref[...]                                   # (C, P)
    qkv_pre = jnp.dot(wqkv_ref[...], initial,
                      preferred_element_type=jnp.float32)               # (3C, P)

    # ---- depthwise 3x3 conv (zero padding) via flat lane shifts + masks ----
    ext_scr[...] = jnp.zeros(ext_scr.shape, ext_scr.dtype)
    ext_scr[:, W + 1:W + 1 + P] = qkv_pre
    not_l, not_r = _col_masks(W, P)
    dww = dww_ref[...]                                                   # (9, 3C, 1)
    acc = jnp.zeros((C3, P), jnp.float32)
    for t, (dh, dw) in enumerate(TAPS3):
        start = (W + 1) + dh * W + dw
        term = ext_scr[:, start:start + P] * dww[t]
        if dw == -1:
            term = jnp.where(not_l, term, 0.0)
        elif dw == 1:
            term = jnp.where(not_r, term, 0.0)
        acc = acc + term
    qkv_ref[...] = acc

    # ---- channel attention (per head) + project_out ----
    for h in range(heads):
        q = acc[h * ch:(h + 1) * ch, :]
        k = acc[C + h * ch:C + (h + 1) * ch, :]
        v = acc[2 * C + h * ch:2 * C + (h + 1) * ch, :]
        qn = q / jnp.maximum(jnp.sqrt(jnp.sum(q * q, -1, keepdims=True)), 1e-12)
        kn = k / jnp.maximum(jnp.sqrt(jnp.sum(k * k, -1, keepdims=True)), 1e-12)
        attn = lax.dot_general(qn, kn, (((1,), (1,)), ((), ())),
                               preferred_element_type=jnp.float32)       # (ch, ch)
        attn = attn * temp_ref[h]
        attn = attn - jnp.max(attn, axis=-1, keepdims=True)
        attn = jnp.exp(attn)
        attn = attn / jnp.sum(attn, axis=-1, keepdims=True)
        att_scr[h * ch:(h + 1) * ch, :] = jnp.dot(
            attn, v, preferred_element_type=jnp.float32)
    att_ref[...] = jnp.dot(wproj_ref[...], att_scr[...],
                           preferred_element_type=jnp.float32)


# ---------------------------------------------------------------------------
# Kernel 2: fc (1x1x1 conv) + grouped 3x3 dep_conv + bias + attention add.
# ---------------------------------------------------------------------------
def _fc_depconv_kernel(a_ref, att_ref, fcw_ref, fcb_ref, depw_ref, depb_ref,
                       p1_ref, ext_scr, *, C, heads, H, W):
    P = H * W
    groups = C // heads
    G = jnp.dot(fcw_ref[...], a_ref[...],
                preferred_element_type=jnp.float32) + fcb_ref[...]       # (9, groups*P)
    not_l, not_r = _col_masks(W, P)
    depw = depw_ref[...]                                                 # (9, C, 9)
    depb = depb_ref[...]                                                 # (C, 1)
    for g in range(groups):
        ext_scr[...] = jnp.zeros(ext_scr.shape, ext_scr.dtype)
        ext_scr[:, W + 1:W + 1 + P] = G[:, g * P:(g + 1) * P]
        r0, r1 = g * heads, (g + 1) * heads
        accg = jnp.zeros((heads, P), jnp.float32)
        for t, (dh, dw) in enumerate(TAPS3):
            start = (W + 1) + dh * W + dw
            contrib = jnp.dot(depw[t, r0:r1, :], ext_scr[:, start:start + P],
                              preferred_element_type=jnp.float32)        # (heads, P)
            if dw == -1:
                contrib = jnp.where(not_l, contrib, 0.0)
            elif dw == 1:
                contrib = jnp.where(not_r, contrib, 0.0)
            accg = accg + contrib
        p1_ref[r0:r1, :] = accg + depb[r0:r1, :] + att_ref[r0:r1, :]


# ---------------------------------------------------------------------------
# Kernel 3: PixelAttention_CGA (blend + in-VMEM reflect pad + 7x7 grouped conv
#           as banded-Toeplitz MXU matmuls + double sigmoid) + fusion core.
# ---------------------------------------------------------------------------
def _pixel_fusion_kernel(paw_ref, x_ref, y_ref, p1_ref, t_ref, pab_ref,
                         out_ref, pad_b, pad_p, *, C, H, W):
    w = paw_ref[0]
    xv = x_ref[...]
    yv = y_ref[...]
    p1 = p1_ref[...]
    initial = xv + yv
    blend = initial * w + p1 * (1.0 - w)

    def reflect_fill(pref, v):
        pref[:, PAD7:PAD7 + H, PAD7:PAD7 + W] = v
        for d in range(1, PAD7 + 1):                      # reflect columns
            pref[:, PAD7:PAD7 + H, PAD7 - d:PAD7 - d + 1] = v[:, :, d:d + 1]
            pref[:, PAD7:PAD7 + H, PAD7 + W - 1 + d:PAD7 + W + d] = v[:, :, W - 1 - d:W - d]
        for d in range(1, PAD7 + 1):                      # reflect rows (full width)
            pref[:, PAD7 - d:PAD7 - d + 1, :] = pref[:, PAD7 + d:PAD7 + d + 1, :]
            pref[:, PAD7 + H - 1 + d:PAD7 + H + d, :] = pref[:, PAD7 + H - 1 - d:PAD7 + H - d, :]

    reflect_fill(pad_b, blend)
    reflect_fill(pad_p, p1)

    acc = jnp.zeros((C, H, W), jnp.float32)
    for kh in range(7):
        rows_b = pad_b[:, kh:kh + H, :]                   # (C, H, W+6)
        rows_p = pad_p[:, kh:kh + H, :]
        acc = acc + jnp.einsum('chp,cpw->chw', rows_b, t_ref[kh],
                               preferred_element_type=jnp.float32)
        acc = acc + jnp.einsum('chp,cpw->chw', rows_p, t_ref[7 + kh],
                               preferred_element_type=jnp.float32)
    pattn2 = jax.nn.sigmoid(jax.nn.sigmoid(acc + pab_ref[...]))  # sigmoid applied twice (as in the spec)
    out_ref[...] = initial + pattn2 * xv + (1.0 - pattn2) * yv


# ---------------------------------------------------------------------------
# Kernel 4: final 1x1 conv (lane-dense MXU matmul + bias).
# ---------------------------------------------------------------------------
def _final_conv_kernel(rp_ref, w_ref, b_ref, out_ref):
    out_ref[...] = jnp.dot(w_ref[...], rp_ref[...],
                           preferred_element_type=jnp.float32) + b_ref[...]


# ---------------------------------------------------------------------------
# Wrapper
# ---------------------------------------------------------------------------
def cafm_fusion_forward(x, y, params):
    B, C, H, W = x.shape
    heads = params['heads']
    P = H * W
    C3, ch, TH = 3 * C, C // heads, 3 * heads
    Wp7 = W + 2 * PAD7
    ext_w = P + 2 * (W + 1)
    par = pltpu.CompilerParams(dimension_semantics=("parallel",))

    xf = x.reshape(B, C, P)
    yf = y.reshape(B, C, P)

    # -------- parameter re-layout (lane-dense / MXU friendly, done once) ----
    wqkv = params['qkv_w'].reshape(C3, C)
    dww = params['qkv_dw_w'][:, 0, 1].reshape(C3, 9).T.reshape(9, C3, 1)
    wproj = params['project_out_w'].reshape(C, C)
    temp = params['temperature'].reshape(heads)
    fcw = params['fc_w'].reshape(9, TH)
    fcb = params['fc_b'].reshape(9, 1)
    depw = jnp.transpose(params['dep_w'][:, :, 1].reshape(C, 9, 9), (2, 0, 1))
    depb = params['dep_b'].reshape(C, 1)
    pa2w = params['pa2_w']                                              # (C, 2, 7, 7)
    pa2b = params['pa2_b'].reshape(C, 1, 1)
    paw = params['pa_weight'].reshape(1)
    convw = params['conv_w'].reshape(C, C)
    convb = params['conv_b'].reshape(C, 1)

    # Banded Toeplitz matrices so the 7x7 conv's W-axis contraction runs on the
    # MXU (14 small matmuls) instead of 98 VPU shifted MACs.
    kidx = jnp.arange(Wp7)[:, None] - jnp.arange(W)[None, :]
    valid = (kidx >= 0) & (kidx < 7)
    toep = jnp.where(valid[None, None, None],
                     pa2w[:, :, :, jnp.clip(kidx, 0, 6)], 0.0)          # (C,2,7,Wp7,W)
    toep = jnp.transpose(toep, (1, 2, 0, 3, 4)).reshape(14, C, Wp7, W)  # idx = s*7+kh

    # ---------------- K1: qkv + dwconv3x3 + attention + project_out --------
    qkv, out_att = pl.pallas_call(
        functools.partial(_qkv_attn_kernel, C=C, heads=heads, H=H, W=W),
        out_shape=(jax.ShapeDtypeStruct((B, C3, P), jnp.float32),
                   jax.ShapeDtypeStruct((B, C, P), jnp.float32)),
        grid=(B,),
        in_specs=[
            pl.BlockSpec(memory_space=pltpu.SMEM),                         # temperature
            pl.BlockSpec((pl.Squeezed(), C, P), lambda b: (b, 0, 0)),      # x
            pl.BlockSpec((pl.Squeezed(), C, P), lambda b: (b, 0, 0)),      # y
            pl.BlockSpec((C3, C), lambda b: (0, 0)),                       # Wqkv
            pl.BlockSpec((9, C3, 1), lambda b: (0, 0, 0)),                 # dw weights
            pl.BlockSpec((C, C), lambda b: (0, 0)),                        # Wproj
        ],
        out_specs=(pl.BlockSpec((pl.Squeezed(), C3, P), lambda b: (b, 0, 0)),
                   pl.BlockSpec((pl.Squeezed(), C, P), lambda b: (b, 0, 0))),
        scratch_shapes=[pltpu.VMEM((C3, ext_w), jnp.float32),
                        pltpu.VMEM((C, P), jnp.float32)],
        compiler_params=par,
    )(temp, xf, yf, wqkv, dww, wproj)

    # TODO(synk): the module's scrambled reshape (B,3C,HW)->(B,HW,3*heads,ch) is an
    # element-level permutation that a BlockSpec index_map cannot express, so it is
    # done as a single XLA transpose here (output kept lane-dense: last dim ch*HW).
    a_scr = jnp.transpose(qkv.reshape(B, P, TH, ch), (0, 2, 3, 1)).reshape(B, TH, ch * P)

    # ---------------- K2: fc 1x1 + grouped 3x3 dep_conv + add --------------
    pattn1 = pl.pallas_call(
        functools.partial(_fc_depconv_kernel, C=C, heads=heads, H=H, W=W),
        out_shape=jax.ShapeDtypeStruct((B, C, P), jnp.float32),
        grid=(B,),
        in_specs=[
            pl.BlockSpec((pl.Squeezed(), TH, ch * P), lambda b: (b, 0, 0)),
            pl.BlockSpec((pl.Squeezed(), C, P), lambda b: (b, 0, 0)),
            pl.BlockSpec((9, TH), lambda b: (0, 0)),
            pl.BlockSpec((9, 1), lambda b: (0, 0)),
            pl.BlockSpec((9, C, 9), lambda b: (0, 0, 0)),
            pl.BlockSpec((C, 1), lambda b: (0, 0)),
        ],
        out_specs=pl.BlockSpec((pl.Squeezed(), C, P), lambda b: (b, 0, 0)),
        scratch_shapes=[pltpu.VMEM((9, ext_w), jnp.float32)],
        compiler_params=par,
    )(a_scr, out_att, fcw, fcb, depw, depb)

    # ---------------- K3: pixel attention + fusion core --------------------
    result_pre = pl.pallas_call(
        functools.partial(_pixel_fusion_kernel, C=C, H=H, W=W),
        out_shape=jax.ShapeDtypeStruct((B, C, H, W), jnp.float32),
        grid=(B,),
        in_specs=[
            pl.BlockSpec(memory_space=pltpu.SMEM),                             # blend weight
            pl.BlockSpec((pl.Squeezed(), C, H, W), lambda b: (b, 0, 0, 0)),    # x
            pl.BlockSpec((pl.Squeezed(), C, H, W), lambda b: (b, 0, 0, 0)),    # y
            pl.BlockSpec((pl.Squeezed(), C, H, W), lambda b: (b, 0, 0, 0)),    # pattn1
            pl.BlockSpec((14, C, Wp7, W), lambda b: (0, 0, 0, 0)),             # Toeplitz
            pl.BlockSpec((C, 1, 1), lambda b: (0, 0, 0)),                      # pa2 bias
        ],
        out_specs=pl.BlockSpec((pl.Squeezed(), C, H, W), lambda b: (b, 0, 0, 0)),
        scratch_shapes=[pltpu.VMEM((C, H + 2 * PAD7, W + 2 * PAD7), jnp.float32),
                        pltpu.VMEM((C, H + 2 * PAD7, W + 2 * PAD7), jnp.float32)],
        compiler_params=par,
    )(paw, x, y, pattn1.reshape(B, C, H, W), toep, pa2b)

    # ---------------- K4: final 1x1 conv ------------------------------------
    out = pl.pallas_call(
        _final_conv_kernel,
        out_shape=jax.ShapeDtypeStruct((B, C, P), jnp.float32),
        grid=(B,),
        in_specs=[
            pl.BlockSpec((pl.Squeezed(), C, P), lambda b: (b, 0, 0)),
            pl.BlockSpec((C, C), lambda b: (0, 0)),
            pl.BlockSpec((C, 1), lambda b: (0, 0)),
        ],
        out_specs=pl.BlockSpec((pl.Squeezed(), C, P), lambda b: (b, 0, 0)),
        compiler_params=par,
    )(result_pre.reshape(B, C, P), convw, convb)
    return out.reshape(B, C, H, W)


# ---------------------------------------------------------------------------
# Pure-JAX reference (mirrors the PyTorch forward, for correctness checking).
# ---------------------------------------------------------------------------
def reference_forward(x, y, p):
    B, C, H, W = x.shape
    heads = p['heads']
    ch, TH, P = C // heads, 3 * heads, H * W
    hp = lax.Precision.HIGHEST
    dn = ('NCHW', 'OIHW', 'NCHW')

    initial = x + y
    qkv = jnp.einsum('oc,bchw->bohw', p['qkv_w'].reshape(3 * C, C), initial, precision=hp)
    qkv = lax.conv_general_dilated(qkv, p['qkv_dw_w'][:, :, 1], (1, 1), ((1, 1), (1, 1)),
                                   dimension_numbers=dn, feature_group_count=3 * C,
                                   precision=hp)

    q, k, v = jnp.split(qkv, 3, axis=1)
    q, k, v = (t.reshape(B, heads, ch, P) for t in (q, k, v))
    qn = q / jnp.maximum(jnp.sqrt(jnp.sum(q * q, -1, keepdims=True)), 1e-12)
    kn = k / jnp.maximum(jnp.sqrt(jnp.sum(k * k, -1, keepdims=True)), 1e-12)
    attn = jnp.einsum('bhcp,bhdp->bhcd', qn, kn, precision=hp) * p['temperature'][None]
    attn = jax.nn.softmax(attn, axis=-1)
    out_att = jnp.einsum('bhcd,bhdp->bhcp', attn, v, precision=hp).reshape(B, C, P)
    out_att = jnp.einsum('oc,bcp->bop', p['project_out_w'].reshape(C, C), out_att,
                         precision=hp).reshape(B, C, H, W)

    f_all = jnp.transpose(qkv.reshape(B, P, TH, ch), (0, 2, 1, 3))
    fc_out = jnp.einsum('oj,bjpl->bopl', p['fc_w'].reshape(9, TH), f_all,
                        precision=hp) + p['fc_b'].reshape(1, 9, 1, 1)
    f_conv = jnp.transpose(fc_out, (0, 3, 1, 2)).reshape(B, 9 * ch, H, W)
    out_conv = lax.conv_general_dilated(f_conv, p['dep_w'][:, :, 1], (1, 1), ((1, 1), (1, 1)),
                                        dimension_numbers=dn, feature_group_count=C // heads,
                                        precision=hp) + p['dep_b'].reshape(1, C, 1, 1)
    pattn1 = out_att + out_conv

    w = p['pa_weight'].reshape(())
    blend = initial * w + pattn1 * (1.0 - w)
    x2 = jnp.stack([blend, pattn1], axis=2).reshape(B, 2 * C, H, W)
    x2p = jnp.pad(x2, ((0, 0), (0, 0), (PAD7, PAD7), (PAD7, PAD7)), mode='reflect')
    pconv = lax.conv_general_dilated(x2p, p['pa2_w'], (1, 1), 'VALID',
                                     dimension_numbers=dn, feature_group_count=C,
                                     precision=hp) + p['pa2_b'].reshape(1, C, 1, 1)
    pattn2 = jax.nn.sigmoid(jax.nn.sigmoid(pconv))
    result = initial + pattn2 * x + (1.0 - pattn2) * y
    result = jnp.einsum('oc,bchw->bohw', p['conv_w'].reshape(C, C), result,
                        precision=hp) + p['conv_b'].reshape(1, C, 1, 1)
    return result


if __name__ == "__main__":
    B, C, H, W = 2, 16, 16, 16
    heads = 4
    key = jax.random.PRNGKey(0)
    ks = jax.random.split(key, 14)
    x = jax.random.normal(ks[0], (B, C, H, W), jnp.float32)
    y = jax.random.normal(ks[1], (B, C, H, W), jnp.float32)
    params = dict(
        heads=heads,
        temperature=1.0 + 0.1 * jax.random.normal(ks[2], (heads, 1, 1), jnp.float32),
        qkv_w=0.2 * jax.random.normal(ks[3], (3 * C, C, 1, 1, 1), jnp.float32),
        qkv_dw_w=0.2 * jax.random.normal(ks[4], (3 * C, 1, 3, 3, 3), jnp.float32),
        project_out_w=0.2 * jax.random.normal(ks[5], (C, C, 1, 1, 1), jnp.float32),
        fc_w=0.2 * jax.random.normal(ks[6], (9, 3 * heads, 1, 1, 1), jnp.float32),
        fc_b=0.1 * jax.random.normal(ks[7], (9,), jnp.float32),
        dep_w=0.2 * jax.random.normal(ks[8], (C, 9, 3, 3, 3), jnp.float32),
        dep_b=0.1 * jax.random.normal(ks[9], (C,), jnp.float32),
        pa2_w=0.1 * jax.random.normal(ks[10], (C, 2, 7, 7), jnp.float32),
        pa2_b=0.1 * jax.random.normal(ks[11], (C,), jnp.float32),
        pa_weight=jnp.array([0.7], jnp.float32),
        conv_w=0.2 * jax.random.normal(ks[12], (C, C, 1, 1), jnp.float32),
        conv_b=0.1 * jax.random.normal(ks[13], (C,), jnp.float32),
    )

    out = jax.block_until_ready(cafm_fusion_forward(x, y, params))
    assert out.shape == (B, C, H, W)

    ref = jax.block_until_ready(reference_forward(x, y, params))
    assert np.allclose(np.asarray(out), np.asarray(ref), atol=3e-2, rtol=3e-2), (
        float(jnp.max(jnp.abs(out - ref))))
    print("KERNEL_OK")
</pallas_src>

<mosaic_0001>
module attributes {stable_mosaic.version = 11 : i64} {
  func.func @_qkv_attn_kernel(%arg0: i32, %arg1: memref<4xf32, #tpu.memory_space<smem>>, %arg2: memref<1x16x256xf32, #tpu.memory_space<vmem>>, %arg3: memref<1x16x256xf32, #tpu.memory_space<vmem>>, %arg4: memref<48x16xf32, #tpu.memory_space<vmem>>, %arg5: memref<9x48x1xf32, #tpu.memory_space<vmem>>, %arg6: memref<16x16xf32, #tpu.memory_space<vmem>>, %arg7: memref<1x48x256xf32, #tpu.memory_space<vmem>>, %arg8: memref<1x16x256xf32, #tpu.memory_space<vmem>>, %arg9: memref<48x290xf32, #tpu.memory_space<vmem>>, %arg10: memref<16x256xf32, #tpu.memory_space<vmem>>) attributes {dimension_semantics = [#tpu.dimension_semantics<parallel>], iteration_bounds = array<i64: 2>, scalar_prefetch = 0 : i64, scratch_operands = 2 : i64, tpu.core_type = #tpu.core_type<tc>, window_params = [{transform_indices = @transform_0, window_bounds = array<i64: 4>}, {transform_indices = @transform_1, window_bounds = array<i64: 1, 16, 256>}, {transform_indices = @transform_2, window_bounds = array<i64: 1, 16, 256>}, {pipeline_mode = #tpu.pipeline_mode<synchronous>, transform_indices = @transform_3, window_bounds = array<i64: 48, 16>}, {pipeline_mode = #tpu.pipeline_mode<synchronous>, transform_indices = @transform_4, window_bounds = array<i64: 9, 48, 1>}, {pipeline_mode = #tpu.pipeline_mode<synchronous>, transform_indices = @transform_5, window_bounds = array<i64: 16, 16>}, {transform_indices = @transform_6, window_bounds = array<i64: 1, 48, 256>}, {transform_indices = @transform_7, window_bounds = array<i64: 1, 16, 256>}]} {
    %c0 = arith.constant 0 : index
    %c0_0 = arith.constant 0 : index
    %c0_1 = arith.constant 0 : index
    %0 = vector.load %arg2[%c0, %c0_0, %c0_1] : memref<1x16x256xf32, #tpu.memory_space<vmem>>, vector<1x16x256xf32>
    %1 = vector.shape_cast %0 : vector<1x16x256xf32> to vector<16x256xf32>
    %c0_2 = arith.constant 0 : index
    %c0_3 = arith.constant 0 : index
    %c0_4 = arith.constant 0 : index
    %2 = vector.load %arg3[%c0_2, %c0_3, %c0_4] : memref<1x16x256xf32, #tpu.memory_space<vmem>>, vector<1x16x256xf32>
    %3 = vector.shape_cast %2 : vector<1x16x256xf32> to vector<16x256xf32>
    %4 = arith.addf %1, %3 : vector<16x256xf32>
    %c0_5 = arith.constant 0 : index
    %c0_6 = arith.constant 0 : index
    %5 = vector.load %arg4[%c0_5, %c0_6] : memref<48x16xf32, #tpu.memory_space<vmem>>, vector<48x16xf32>
    %cst = arith.constant dense<0.000000e+00> : vector<48x256xf32>
    %6 = tpu.matmul %5, %4, %cst {dimension_numbers = #tpu.dot_dimension_numbers<[1], [0], [0], [1], [0, 0, 1, 1], [], []>} : vector<48x16xf32>, vector<16x256xf32>, vector<48x256xf32> -> vector<48x256xf32>
    %cst_7 = arith.constant 0.000000e+00 : f32
    %7 = vector.broadcast %cst_7 : f32 to vector<48x290xf32>
    %c0_8 = arith.constant 0 : index
    %c0_9 = arith.constant 0 : index
    %8 = vector.load %arg9[%c0_8, %c0_9] : memref<48x290xf32, #tpu.memory_space<vmem>>, vector<48x290xf32>
    tpu.vector_store %arg9[%c0_8, %c0_9], %7 {strides = array<i32>} : memref<48x290xf32, #tpu.memory_space<vmem>>, vector<48x290xf32>,
    %c0_10 = arith.constant 0 : index
    %c17 = arith.constant 17 : index
    %9 = vector.load %arg9[%c0_10, %c17] : memref<48x290xf32, #tpu.memory_space<vmem>>, vector<48x256xf32>
    tpu.vector_store %arg9[%c0_10, %c17], %6 {strides = array<i32>} : memref<48x290xf32, #tpu.memory_space<vmem>>, vector<48x256xf32>,
    %10 = tpu.iota {dimensions = array<i32: 1>} : vector<1x256xi32>
    %c16_i32 = arith.constant 16 : i32
    %c0_i32 = arith.constant 0 : i32
    %11 = arith.cmpi eq, %c16_i32, %c0_i32 : i32
    %c1_i32 = arith.constant 1 : i32
    %12 = arith.select %11, %c1_i32, %c16_i32 : i32
    %13 = vector.broadcast %12 : i32 to vector<1x256xi32>
    %14 = arith.remsi %10, %13 : vector<1x256xi32>
    %c0_i32_11 = arith.constant 0 : i32
    %15 = vector.broadcast %c0_i32_11 : i32 to vector<1x256xi32>
    %16 = arith.cmpi ne, %14, %15 : vector<1x256xi32>
    %c0_i32_12 = arith.constant 0 : i32
    %17 = vector.broadcast %c0_i32_12 : i32 to vector<1x256xi32>
    %18 = arith.cmpi slt, %14, %17 : vector<1x256xi32>
    %c0_i32_13 = arith.constant 0 : i32
    %19 = arith.cmpi slt, %12, %c0_i32_13 : i32
    %20 = vector.broadcast %19 : i1 to vector<1x256xi1>
    %21 = vector.broadcast %20 : vector<1x256xi1> to vector<1x256xi1>
    %22 = arith.xori %18, %21 : vector<1x256xi1>
    %23 = arith.andi %22, %16 : vector<1x256xi1>
    %24 = vector.broadcast %12 : i32 to vector<1x256xi32>
    %25 = arith.addi %14, %24 : vector<1x256xi32>
    %26 = arith.select %23, %25, %14 : vector<1x256xi1>, vector<1x256xi32>
    %c0_i32_14 = arith.constant 0 : i32
    %27 = vector.broadcast %c0_i32_14 : i32 to vector<1x256xi32>
    %28 = arith.cmpi ne, %26, %27 : vector<1x256xi32>
    %c15_i32 = arith.constant 15 : i32
    %29 = vector.broadcast %c15_i32 : i32 to vector<1x256xi32>
    %30 = arith.cmpi ne, %26, %29 : vector<1x256xi32>
    %c0_15 = arith.constant 0 : index
    %c0_16 = arith.constant 0 : index
    %c0_17 = arith.constant 0 : index
    %31 = vector.load %arg5[%c0_15, %c0_16, %c0_17] : memref<9x48x1xf32, #tpu.memory_space<vmem>>, vector<9x48x1xf32>
    %cst_18 = arith.constant 0.000000e+00 : f32
    %32 = vector.broadcast %cst_18 : f32 to vector<48x256xf32>
    %c0_19 = arith.constant 0 : index
    %c0_20 = arith.constant 0 : index
    %33 = vector.load %arg9[%c0_19, %c0_20] : memref<48x290xf32, #tpu.memory_space<vmem>>, vector<48x256xf32>
    %34 = vector.extract_strided_slice %31 {offsets = [0, 0, 0], sizes = [1, 48, 1], strides = [1, 1, 1]} : vector<9x48x1xf32> to vector<1x48x1xf32>
    %35 = vector.shape_cast %34 : vector<1x48x1xf32> to vector<48x1xf32>
    %36 = vector.broadcast %35 : vector<48x1xf32> to vector<48x256xf32>
    %37 = arith.mulf %33, %36 : vector<48x256xf32>
    %cst_21 = arith.constant 0.000000e+00 : f32
    %38 = vector.shape_cast %28 : vector<1x256xi1> to vector<1x256xi1>
    %39 = vector.broadcast %38 : vector<1x256xi1> to vector<48x256xi1>
    %40 = vector.broadcast %cst_21 : f32 to vector<48x256xf32>
    %41 = arith.select %39, %37, %40 : vector<48x256xi1>, vector<48x256xf32>
    %42 = arith.addf %32, %41 : vector<48x256xf32>
    %c0_22 = arith.constant 0 : index
    %c1 = arith.constant 1 : index
    %43 = vector.load %arg9[%c0_22, %c1] : memref<48x290xf32, #tpu.memory_space<vmem>>, vector<48x256xf32>
    %44 = vector.extract_strided_slice %31 {offsets = [1, 0, 0], sizes = [1, 48, 1], strides = [1, 1, 1]} : vector<9x48x1xf32> to vector<1x48x1xf32>
    %45 = vector.shape_cast %44 : vector<1x48x1xf32> to vector<48x1xf32>
    %46 = vector.broadcast %45 : vector<48x1xf32> to vector<48x256xf32>
    %47 = arith.mulf %43, %46 : vector<48x256xf32>
    %48 = arith.addf %42, %47 : vector<48x256xf32>
    %c0_23 = arith.constant 0 : index
    %c2 = arith.constant 2 : index
    %49 = vector.load %arg9[%c0_23, %c2] : memref<48x290xf32, #tpu.memory_space<vmem>>, vector<48x256xf32>
    %50 = vector.extract_strided_slice %31 {offsets = [2, 0, 0], sizes = [1, 48, 1], strides = [1, 1, 1]} : vector<9x48x1xf32> to vector<1x48x1xf32>
    %51 = vector.shape_cast %50 : vector<1x48x1xf32> to vector<48x1xf32>
    %52 = vector.broadcast %51 : vector<48x1xf32> to vector<48x256xf32>
    %53 = arith.mulf %49, %52 : vector<48x256xf32>
    %cst_24 = arith.constant 0.000000e+00 : f32
    %54 = vector.shape_cast %30 : vector<1x256xi1> to vector<1x256xi1>
    %55 = vector.broadcast %54 : vector<1x256xi1> to vector<48x256xi1>
    %56 = vector.broadcast %cst_24 : f32 to vector<48x256xf32>
    %57 = arith.select %55, %53, %56 : vector<48x256xi1>, vector<48x256xf32>
    %58 = arith.addf %48, %57 : vector<48x256xf32>
    %c0_25 = arith.constant 0 : index
    %c16 = arith.constant 16 : index
    %59 = vector.load %arg9[%c0_25, %c16] : memref<48x290xf32, #tpu.memory_space<vmem>>, vector<48x256xf32>
    %60 = vector.extract_strided_slice %31 {offsets = [3, 0, 0], sizes = [1, 48, 1], strides = [1, 1, 1]} : vector<9x48x1xf32> to vector<1x48x1xf32>
    %61 = vector.shape_cast %60 : vector<1x48x1xf32> to vector<48x1xf32>
    %62 = vector.broadcast %61 : vector<48x1xf32> to vector<48x256xf32>
    %63 = arith.mulf %59, %62 : vector<48x256xf32>
    %cst_26 = arith.constant 0.000000e+00 : f32
    %64 = vector.shape_cast %28 : vector<1x256xi1> to vector<1x256xi1>
    %65 = vector.broadcast %64 : vector<1x256xi1> to vector<48x256xi1>
    %66 = vector.broadcast %cst_26 : f32 to vector<48x256xf32>
    %67 = arith.select %65, %63, %66 : vector<48x256xi1>, vector<48x256xf32>
    %68 = arith.addf %58, %67 : vector<48x256xf32>
    %c0_27 = arith.constant 0 : index
    %c17_28 = arith.constant 17 : index
    %69 = vector.load %arg9[%c0_27, %c17_28] : memref<48x290xf32, #tpu.memory_space<vmem>>, vector<48x256xf32>
    %70 = vector.extract_strided_slice %31 {offsets = [4, 0, 0], sizes = [1, 48, 1], strides = [1, 1, 1]} : vector<9x48x1xf32> to vector<1x48x1xf32>
    %71 = vector.shape_cast %70 : vector<1x48x1xf32> to vector<48x1xf32>
    %72 = vector.broadcast %71 : vector<48x1xf32> to vector<48x256xf32>
    %73 = arith.mulf %69, %72 : vector<48x256xf32>
    %74 = arith.addf %68, %73 : vector<48x256xf32>
    %c0_29 = arith.constant 0 : index
    %c18 = arith.constant 18 : index
    %75 = vector.load %arg9[%c0_29, %c18] : memref<48x290xf32, #tpu.memory_space<vmem>>, vector<48x256xf32>
    %76 = vector.extract_strided_slice %31 {offsets = [5, 0, 0], sizes = [1, 48, 1], strides = [1, 1, 1]} : vector<9x48x1xf32> to vector<1x48x1xf32>
    %77 = vector.shape_cast %76 : vector<1x48x1xf32> to vector<48x1xf32>
    %78 = vector.broadcast %77 : vector<48x1xf32> to vector<48x256xf32>
    %79 = arith.mulf %75, %78 : vector<48x256xf32>
    %cst_30 = arith.constant 0.000000e+00 : f32
    %80 = vector.shape_cast %30 : vector<1x256xi1> to vector<1x256xi1>
    %81 = vector.broadcast %80 : vector<1x256xi1> to vector<48x256xi1>
    %82 = vector.broadcast %cst_30 : f32 to vector<48x256xf32>
    %83 = arith.select %81, %79, %82 : vector<48x256xi1>, vector<48x256xf32>
    %84 = arith.addf %74, %83 : vector<48x256xf32>
    %c0_31 = arith.constant 0 : index
    %c32 = arith.constant 32 : index
    %85 = vector.load %arg9[%c0_31, %c32] : memref<48x290xf32, #tpu.memory_space<vmem>>, vector<48x256xf32>
    %86 = vector.extract_strided_slice %31 {offsets = [6, 0, 0], sizes = [1, 48, 1], strides = [1, 1, 1]} : vector<9x48x1xf32> to vector<1x48x1xf32>
    %87 = vector.shape_cast %86 : vector<1x48x1xf32> to vector<48x1xf32>
    %88 = vector.broadcast %87 : vector<48x1xf32> to vector<48x256xf32>
    %89 = arith.mulf %85, %88 : vector<48x256xf32>
    %cst_32 = arith.constant 0.000000e+00 : f32
    %90 = vector.shape_cast %28 : vector<1x256xi1> to vector<1x256xi1>
    %91 = vector.broadcast %90 : vector<1x256xi1> to vector<48x256xi1>
    %92 = vector.broadcast %cst_32 : f32 to vector<48x256xf32>
    %93 = arith.select %91, %89, %92 : vector<48x256xi1>, vector<48x256xf32>
    %94 = arith.addf %84, %93 : vector<48x256xf32>
    %c0_33 = arith.constant 0 : index
    %c33 = arith.constant 33 : index
    %95 = vector.load %arg9[%c0_33, %c33] : memref<48x290xf32, #tpu.memory_space<vmem>>, vector<48x256xf32>
    %96 = vector.extract_strided_slice %31 {offsets = [7, 0, 0], sizes = [1, 48, 1], strides = [1, 1, 1]} : vector<9x48x1xf32> to vector<1x48x1xf32>
    %97 = vector.shape_cast %96 : vector<1x48x1xf32> to vector<48x1xf32>
    %98 = vector.broadcast %97 : vector<48x1xf32> to vector<48x256xf32>
    %99 = arith.mulf %95, %98 : vector<48x256xf32>
    %100 = arith.addf %94, %99 : vector<48x256xf32>
    %c0_34 = arith.constant 0 : index
    %c34 = arith.constant 34 : index
    %101 = vector.load %arg9[%c0_34, %c34] : memref<48x290xf32, #tpu.memory_space<vmem>>, vector<48x256xf32>
    %102 = vector.extract_strided_slice %31 {offsets = [8, 0, 0], sizes = [1, 48, 1], strides = [1, 1, 1]} : vector<9x48x1xf32> to vector<1x48x1xf32>
    %103 = vector.shape_cast %102 : vector<1x48x1xf32> to vector<48x1xf32>
    %104 = vector.broadcast %103 : vector<48x1xf32> to vector<48x256xf32>
    %105 = arith.mulf %101, %104 : vector<48x256xf32>
    %cst_35 = arith.constant 0.000000e+00 : f32
    %106 = vector.shape_cast %30 : vector<1x256xi1> to vector<1x256xi1>
    %107 = vector.broadcast %106 : vector<1x256xi1> to vector<48x256xi1>
    %108 = vector.broadcast %cst_35 : f32 to vector<48x256xf32>
    %109 = arith.select %107, %105, %108 : vector<48x256xi1>, vector<48x256xf32>
    %110 = arith.addf %100, %109 : vector<48x256xf32>
    %c0_36 = arith.constant 0 : index
    %c0_37 = arith.constant 0 : index
    %c0_38 = arith.constant 0 : index
    %111 = vector.load %arg7[%c0_36, %c0_37, %c0_38] : memref<1x48x256xf32, #tpu.memory_space<vmem>>, vector<1x48x256xf32>
    %112 = vector.shape_cast %111 : vector<1x48x256xf32> to vector<48x256xf32>
    %113 = vector.shape_cast %110 : vector<48x256xf32> to vector<1x48x256xf32>
    tpu.vector_store %arg7[%c0_36, %c0_37, %c0_38], %113 {strides = array<i32>} : memref<1x48x256xf32, #tpu.memory_space<vmem>>, vector<1x48x256xf32>,
    %114 = vector.extract_strided_slice %110 {offsets = [0, 0], sizes = [4, 256], strides = [1, 1]} : vector<48x256xf32> to vector<4x256xf32>
    %115 = vector.extract_strided_slice %110 {offsets = [16, 0], sizes = [4, 256], strides = [1, 1]} : vector<48x256xf32> to vector<4x256xf32>
    %116 = vector.extract_strided_slice %110 {offsets = [32, 0], sizes = [4, 256], strides = [1, 1]} : vector<48x256xf32> to vector<4x256xf32>
    %117 = arith.mulf %114, %114 : vector<4x256xf32>
    %cst_39 = arith.constant dense<0.000000e+00> : vector<4xf32>
    %118 = vector.multi_reduction <add>, %117, %cst_39 [1] : vector<4x256xf32> to vector<4xf32>
    %119 = vector.shape_cast %118 : vector<4xf32> to vector<4x1xf32>
    %120 = math.sqrt %119 : vector<4x1xf32>
    %cst_40 = arith.constant 9.99999996E-13 : f32
    %121 = vector.broadcast %cst_40 : f32 to vector<4x1xf32>
    %122 = arith.maximumf %120, %121 : vector<4x1xf32>
    %123 = vector.broadcast %122 : vector<4x1xf32> to vector<4x256xf32>
    %124 = arith.divf %114, %123 : vector<4x256xf32>
    %125 = arith.mulf %115, %115 : vector<4x256xf32>
    %cst_41 = arith.constant dense<0.000000e+00> : vector<4xf32>
    %126 = vector.multi_reduction <add>, %125, %cst_41 [1] : vector<4x256xf32> to vector<4xf32>
    %127 = vector.shape_cast %126 : vector<4xf32> to vector<4x1xf32>
    %128 = math.sqrt %127 : vector<4x1xf32>
    %cst_42 = arith.constant 9.99999996E-13 : f32
    %129 = vector.broadcast %cst_42 : f32 to vector<4x1xf32>
    %130 = arith.maximumf %128, %129 : vector<4x1xf32>
    %131 = vector.broadcast %130 : vector<4x1xf32> to vector<4x256xf32>
    %132 = arith.divf %115, %131 : vector<4x256xf32>
    %cst_43 = arith.constant dense<0.000000e+00> : vector<4x4xf32>
    %133 = tpu.matmul %124, %132, %cst_43 {dimension_numbers = #tpu.dot_dimension_numbers<[1], [1], [0], [0], [0, 0, 1, 0], [], []>} : vector<4x256xf32>, vector<4x256xf32>, vector<4x4xf32> -> vector<4x4xf32>
    %c0_44 = arith.constant 0 : index
    %134 = memref.load %arg1[%c0_44] : memref<4xf32, #tpu.memory_space<smem>>
    %135 = vector.broadcast %134 : f32 to vector<4x4xf32>
    %136 = arith.mulf %133, %135 : vector<4x4xf32>
    %cst_45 = arith.constant dense<0xFF800000> : vector<4xf32>
    %137 = vector.multi_reduction <maximumf>, %136, %cst_45 [1] : vector<4x4xf32> to vector<4xf32>
    %138 = vector.shape_cast %137 : vector<4xf32> to vector<4x1xf32>
    %139 = vector.broadcast %138 : vector<4x1xf32> to vector<4x4xf32>
    %140 = arith.subf %136, %139 : vector<4x4xf32>
    %141 = math.exp %140 : vector<4x4xf32>
    %cst_46 = arith.constant dense<0.000000e+00> : vector<4xf32>
    %142 = vector.multi_reduction <add>, %141, %cst_46 [1] : vector<4x4xf32> to vector<4xf32>
    %143 = vector.shape_cast %142 : vector<4xf32> to vector<4x1xf32>
    %144 = vector.broadcast %143 : vector<4x1xf32> to vector<4x4xf32>
    %145 = arith.divf %141, %144 : vector<4x4xf32>
    %cst_47 = arith.constant dense<0.000000e+00> : vector<4x256xf32>
    %146 = tpu.matmul %145, %116, %cst_47 {dimension_numbers = #tpu.dot_dimension_numbers<[1], [0], [0], [1], [0, 0, 1, 1], [], []>} : vector<4x4xf32>, vector<4x256xf32>, vector<4x256xf32> -> vector<4x256xf32>
    %c0_48 = arith.constant 0 : index
    %c0_49 = arith.constant 0 : index
    %147 = vector.load %arg10[%c0_48, %c0_49] : memref<16x256xf32, #tpu.memory_space<vmem>>, vector<4x256xf32>
    tpu.vector_store %arg10[%c0_48, %c0_49], %146 {strides = array<i32>} : memref<16x256xf32, #tpu.memory_space<vmem>>, vector<4x256xf32>,
    %148 = vector.extract_strided_slice %110 {offsets = [4, 0], sizes = [4, 256], strides = [1, 1]} : vector<48x256xf32> to vector<4x256xf32>
    %149 = vector.extract_strided_slice %110 {offsets = [20, 0], sizes = [4, 256], strides = [1, 1]} : vector<48x256xf32> to vector<4x256xf32>
    %150 = vector.extract_strided_slice %110 {offsets = [36, 0], sizes = [4, 256], strides = [1, 1]} : vector<48x256xf32> to vector<4x256xf32>
    %151 = arith.mulf %148, %148 : vector<4x256xf32>
    %cst_50 = arith.constant dense<0.000000e+00> : vector<4xf32>
    %152 = vector.multi_reduction <add>, %151, %cst_50 [1] : vector<4x256xf32> to vector<4xf32>
    %153 = vector.shape_cast %152 : vector<4xf32> to vector<4x1xf32>
    %154 = math.sqrt %153 : vector<4x1xf32>
    %cst_51 = arith.constant 9.99999996E-13 : f32
    %155 = vector.broadcast %cst_51 : f32 to vector<4x1xf32>
    %156 = arith.maximumf %154, %155 : vector<4x1xf32>
    %157 = vector.broadcast %156 : vector<4x1xf32> to vector<4x256xf32>
    %158 = arith.divf %148, %157 : vector<4x256xf32>
    %159 = arith.mulf %149, %149 : vector<4x256xf32>
    %cst_52 = arith.constant dense<0.000000e+00> : vector<4xf32>
    %160 = vector.multi_reduction <add>, %159, %cst_52 [1] : vector<4x256xf32> to vector<4xf32>
    %161 = vector.shape_cast %160 : vector<4xf32> to vector<4x1xf32>
    %162 = math.sqrt %161 : vector<4x1xf32>
    %cst_53 = arith.constant 9.99999996E-13 : f32
    %163 = vector.broadcast %cst_53 : f32 to vector<4x1xf32>
    %164 = arith.maximumf %162, %163 : vector<4x1xf32>
    %165 = vector.broadcast %164 : vector<4x1xf32> to vector<4x256xf32>
    %166 = arith.divf %149, %165 : vector<4x256xf32>
    %cst_54 = arith.constant dense<0.000000e+00> : vector<4x4xf32>
    %167 = tpu.matmul %158, %166, %cst_54 {dimension_numbers = #tpu.dot_dimension_numbers<[1], [1], [0], [0], [0, 0, 1, 0], [], []>} : vector<4x256xf32>, vector<4x256xf32>, vector<4x4xf32> -> vector<4x4xf32>
    %c1_55 = arith.constant 1 : index
    %168 = memref.load %arg1[%c1_55] : memref<4xf32, #tpu.memory_space<smem>>
    %169 = vector.broadcast %168 : f32 to vector<4x4xf32>
    %170 = arith.mulf %167, %169 : vector<4x4xf32>
    %cst_56 = arith.constant dense<0xFF800000> : vector<4xf32>
    %171 = vector.multi_reduction <maximumf>, %170, %cst_56 [1] : vector<4x4xf32> to vector<4xf32>
    %172 = vector.shape_cast %171 : vector<4xf32> to vector<4x1xf32>
    %173 = vector.broadcast %172 : vector<4x1xf32> to vector<4x4xf32>
    %174 = arith.subf %170, %173 : vector<4x4xf32>
    %175 = math.exp %174 : vector<4x4xf32>
    %cst_57 = arith.constant dense<0.000000e+00> : vector<4xf32>
    %176 = vector.multi_reduction <add>, %175, %cst_57 [1] : vector<4x4xf32> to vector<4xf32>
    %177 = vector.shape_cast %176 : vector<4xf32> to vector<4x1xf32>
    %178 = vector.broadcast %177 : vector<4x1xf32> to vector<4x4xf32>
    %179 = arith.divf %175, %178 : vector<4x4xf32>
    %cst_58 = arith.constant dense<0.000000e+00> : vector<4x256xf32>
    %180 = tpu.matmul %179, %150, %cst_58 {dimension_numbers = #tpu.dot_dimension_numbers<[1], [0], [0], [1], [0, 0, 1, 1], [], []>} : vector<4x4xf32>, vector<4x256xf32>, vector<4x256xf32> -> vector<4x256xf32>
    %c4 = arith.constant 4 : index
    %c0_59 = arith.constant 0 : index
    %181 = vector.load %arg10[%c4, %c0_59] : memref<16x256xf32, #tpu.memory_space<vmem>>, vector<4x256xf32>
    tpu.vector_store %arg10[%c4, %c0_59], %180 {strides = array<i32>} : memref<16x256xf32, #tpu.memory_space<vmem>>, vector<4x256xf32>,
    %182 = vector.extract_strided_slice %110 {offsets = [8, 0], sizes = [4, 256], strides = [1, 1]} : vector<48x256xf32> to vector<4x256xf32>
    %183 = vector.extract_strided_slice %110 {offsets = [24, 0], sizes = [4, 256], strides = [1, 1]} : vector<48x256xf32> to vector<4x256xf32>
    %184 = vector.extract_strided_slice %110 {offsets = [40, 0], sizes = [4, 256], strides = [1, 1]} : vector<48x256xf32> to vector<4x256xf32>
    %185 = arith.mulf %182, %182 : vector<4x256xf32>
    %cst_60 = arith.constant dense<0.000000e+00> : vector<4xf32>
    %186 = vector.multi_reduction <add>, %185, %cst_60 [1] : vector<4x256xf32> to vector<4xf32>
    %187 = vector.shape_cast %186 : vector<4xf32> to vector<4x1xf32>
    %188 = math.sqrt %187 : vector<4x1xf32>
    %cst_61 = arith.constant 9.99999996E-13 : f32
    %189 = vector.broadcast %cst_61 : f32 to vector<4x1xf32>
    %190 = arith.maximumf %188, %189 : vector<4x1xf32>
    %191 = vector.broadcast %190 : vector<4x1xf32> to vector<4x256xf32>
    %192 = arith.divf %182, %191 : vector<4x256xf32>
    %193 = arith.mulf %183, %183 : vector<4x256xf32>
    %cst_62 = arith.constant dense<0.000000e+00> : vector<4xf32>
    %194 = vector.multi_reduction <add>, %193, %cst_62 [1] : vector<4x256xf32> to vector<4xf32>
    %195 = vector.shape_cast %194 : vector<4xf32> to vector<4x1xf32>
    %196 = math.sqrt %195 : vector<4x1xf32>
    %cst_63 = arith.constant 9.99999996E-13 : f32
    %197 = vector.broadcast %cst_63 : f32 to vector<4x1xf32>
    %198 = arith.maximumf %196, %197 : vector<4x1xf32>
    %199 = vector.broadcast %198 : vector<4x1xf32> to vector<4x256xf32>
    %200 = arith.divf %183, %199 : vector<4x256xf32>
    %cst_64 = arith.constant dense<0.000000e+00> : vector<4x4xf32>
    %201 = tpu.matmul %192, %200, %cst_64 {dimension_numbers = #tpu.dot_dimension_numbers<[1], [1], [0], [0], [0, 0, 1, 0], [], []>} : vector<4x256xf32>, vector<4x256xf32>, vector<4x4xf32> -> vector<4x4xf32>
    %c2_65 = arith.constant 2 : index
    %202 = memref.load %arg1[%c2_65] : memref<4xf32, #tpu.memory_space<smem>>
    %203 = vector.broadcast %202 : f32 to vector<4x4xf32>
    %204 = arith.mulf %201, %203 : vector<4x4xf32>
    %cst_66 = arith.constant dense<0xFF800000> : vector<4xf32>
    %205 = vector.multi_reduction <maximumf>, %204, %cst_66 [1] : vector<4x4xf32> to vector<4xf32>
    %206 = vector.shape_cast %205 : vector<4xf32> to vector<4x1xf32>
    %207 = vector.broadcast %206 : vector<4x1xf32> to vector<4x4xf32>
    %208 = arith.subf %204, %207 : vector<4x4xf32>
    %209 = math.exp %208 : vector<4x4xf32>
    %cst_67 = arith.constant dense<0.000000e+00> : vector<4xf32>
    %210 = vector.multi_reduction <add>, %209, %cst_67 [1] : vector<4x4xf32> to vector<4xf32>
    %211 = vector.shape_cast %210 : vector<4xf32> to vector<4x1xf32>
    %212 = vector.broadcast %211 : vector<4x1xf32> to vector<4x4xf32>
    %213 = arith.divf %209, %212 : vector<4x4xf32>
    %cst_68 = arith.constant dense<0.000000e+00> : vector<4x256xf32>
    %214 = tpu.matmul %213, %184, %cst_68 {dimension_numbers = #tpu.dot_dimension_numbers<[1], [0], [0], [1], [0, 0, 1, 1], [], []>} : vector<4x4xf32>, vector<4x256xf32>, vector<4x256xf32> -> vector<4x256xf32>
    %c8 = arith.constant 8 : index
    %c0_69 = arith.constant 0 : index
    %215 = vector.load %arg10[%c8, %c0_69] : memref<16x256xf32, #tpu.memory_space<vmem>>, vector<4x256xf32>
    tpu.vector_store %arg10[%c8, %c0_69], %214 {strides = array<i32>} : memref<16x256xf32, #tpu.memory_space<vmem>>, vector<4x256xf32>,
    %216 = vector.extract_strided_slice %110 {offsets = [12, 0], sizes = [4, 256], strides = [1, 1]} : vector<48x256xf32> to vector<4x256xf32>
    %217 = vector.extract_strided_slice %110 {offsets = [28, 0], sizes = [4, 256], strides = [1, 1]} : vector<48x256xf32> to vector<4x256xf32>
    %218 = vector.extract_strided_slice %110 {offsets = [44, 0], sizes = [4, 256], strides = [1, 1]} : vector<48x256xf32> to vector<4x256xf32>
    %219 = arith.mulf %216, %216 : vector<4x256xf32>
    %cst_70 = arith.constant dense<0.000000e+00> : vector<4xf32>
    %220 = vector.multi_reduction <add>, %219, %cst_70 [1] : vector<4x256xf32> to vector<4xf32>
    %221 = vector.shape_cast %220 : vector<4xf32> to vector<4x1xf32>
    %222 = math.sqrt %221 : vector<4x1xf32>
    %cst_71 = arith.constant 9.99999996E-13 : f32
    %223 = vector.broadcast %cst_71 : f32 to vector<4x1xf32>
    %224 = arith.maximumf %222, %223 : vector<4x1xf32>
    %225 = vector.broadcast %224 : vector<4x1xf32> to vector<4x256xf32>
    %226 = arith.divf %216, %225 : vector<4x256xf32>
    %227 = arith.mulf %217, %217 : vector<4x256xf32>
    %cst_72 = arith.constant dense<0.000000e+00> : vector<4xf32>
    %228 = vector.multi_reduction <add>, %227, %cst_72 [1] : vector<4x256xf32> to vector<4xf32>
    %229 = vector.shape_cast %228 : vector<4xf32> to vector<4x1xf32>
    %230 = math.sqrt %229 : vector<4x1xf32>
    %cst_73 = arith.constant 9.99999996E-13 : f32
    %231 = vector.broadcast %cst_73 : f32 to vector<4x1xf32>
    %232 = arith.maximumf %230, %231 : vector<4x1xf32>
    %233 = vector.broadcast %232 : vector<4x1xf32> to vector<4x256xf32>
    %234 = arith.divf %217, %233 : vector<4x256xf32>
    %cst_74 = arith.constant dense<0.000000e+00> : vector<4x4xf32>
    %235 = tpu.matmul %226, %234, %cst_74 {dimension_numbers = #tpu.dot_dimension_numbers<[1], [1], [0], [0], [0, 0, 1, 0], [], []>} : vector<4x256xf32>, vector<4x256xf32>, vector<4x4xf32> -> vector<4x4xf32>
    %c3 = arith.constant 3 : index
    %236 = memref.load %arg1[%c3] : memref<4xf32, #tpu.memory_space<smem>>
    %237 = vector.broadcast %236 : f32 to vector<4x4xf32>
    %238 = arith.mulf %235, %237 : vector<4x4xf32>
    %cst_75 = arith.constant dense<0xFF800000> : vector<4xf32>
    %239 = vector.multi_reduction <maximumf>, %238, %cst_75 [1] : vector<4x4xf32> to vector<4xf32>
    %240 = vector.shape_cast %239 : vector<4xf32> to vector<4x1xf32>
    %241 = vector.broadcast %240 : vector<4x1xf32> to vector<4x4xf32>
    %242 = arith.subf %238, %241 : vector<4x4xf32>
    %243 = math.exp %242 : vector<4x4xf32>
    %cst_76 = arith.constant dense<0.000000e+00> : vector<4xf32>
    %244 = vector.multi_reduction <add>, %243, %cst_76 [1] : vector<4x4xf32> to vector<4xf32>
    %245 = vector.shape_cast %244 : vector<4xf32> to vector<4x1xf32>
    %246 = vector.broadcast %245 : vector<4x1xf32> to vector<4x4xf32>
    %247 = arith.divf %243, %246 : vector<4x4xf32>
    %cst_77 = arith.constant dense<0.000000e+00> : vector<4x256xf32>
    %248 = tpu.matmul %247, %218, %cst_77 {dimension_numbers = #tpu.dot_dimension_numbers<[1], [0], [0], [1], [0, 0, 1, 1], [], []>} : vector<4x4xf32>, vector<4x256xf32>, vector<4x256xf32> -> vector<4x256xf32>
    %c12 = arith.constant 12 : index
    %c0_78 = arith.constant 0 : index
    %249 = vector.load %arg10[%c12, %c0_78] : memref<16x256xf32, #tpu.memory_space<vmem>>, vector<4x256xf32>
    tpu.vector_store %arg10[%c12, %c0_78], %248 {strides = array<i32>} : memref<16x256xf32, #tpu.memory_space<vmem>>, vector<4x256xf32>,
    %c0_79 = arith.constant 0 : index
    %c0_80 = arith.constant 0 : index
    %250 = vector.load %arg6[%c0_79, %c0_80] : memref<16x16xf32, #tpu.memory_space<vmem>>, vector<16x16xf32>
    %c0_81 = arith.constant 0 : index
    %c0_82 = arith.constant 0 : index
    %251 = vector.load %arg10[%c0_81, %c0_82] : memref<16x256xf32, #tpu.memory_space<vmem>>, vector<16x256xf32>
    %cst_83 = arith.constant dense<0.000000e+00> : vector<16x256xf32>
    %252 = tpu.matmul %250, %251, %cst_83 {dimension_numbers = #tpu.dot_dimension_numbers<[1], [0], [0], [1], [0, 0, 1, 1], [], []>} : vector<16x16xf32>, vector<16x256xf32>, vector<16x256xf32> -> vector<16x256xf32>
    %c0_84 = arith.constant 0 : index
    %c0_85 = arith.constant 0 : index
    %c0_86 = arith.constant 0 : index
    %253 = vector.load %arg8[%c0_84, %c0_85, %c0_86] : memref<1x16x256xf32, #tpu.memory_space<vmem>>, vector<1x16x256xf32>
    %254 = vector.shape_cast %253 : vector<1x16x256xf32> to vector<16x256xf32>
    %255 = vector.shape_cast %252 : vector<16x256xf32> to vector<1x16x256xf32>
    tpu.vector_store %arg8[%c0_84, %c0_85, %c0_86], %255 {strides = array<i32>} : memref<1x16x256xf32, #tpu.memory_space<vmem>>, vector<1x16x256xf32>,
    return
  }
  func.func @transform_0(%arg0: i32) -> i32 {
    %c0_i32 = arith.constant 0 : i32
    %c0_i32_0 = arith.constant 0 : i32
    return %c0_i32 : i32
  }
  func.func @transform_1(%arg0: i32) -> (i32, i32, i32) {
    %c0_i32 = arith.constant 0 : i32
    %c0_i32_0 = arith.constant 0 : i32
    %c0_i32_1 = arith.constant 0 : i32
    return %arg0, %c0_i32, %c0_i32_0 : i32, i32, i32
  }
  func.func @transform_2(%arg0: i32) -> (i32, i32, i32) {
    %c0_i32 = arith.constant 0 : i32
    %c0_i32_0 = arith.constant 0 : i32
    %c0_i32_1 = arith.constant 0 : i32
    return %arg0, %c0_i32, %c0_i32_0 : i32, i32, i32
  }
  func.func @transform_3(%arg0: i32) -> (i32, i32) {
    %c0_i32 = arith.constant 0 : i32
    %c0_i32_0 = arith.constant 0 : i32
    %c0_i32_1 = arith.constant 0 : i32
    return %c0_i32, %c0_i32_0 : i32, i32
  }
  func.func @transform_4(%arg0: i32) -> (i32, i32, i32) {
    %c0_i32 = arith.constant 0 : i32
    %c0_i32_0 = arith.constant 0 : i32
    %c0_i32_1 = arith.constant 0 : i32
    %c0_i32_2 = arith.constant 0 : i32
    return %c0_i32, %c0_i32_0, %c0_i32_1 : i32, i32, i32
  }
  func.func @transform_5(%arg0: i32) -> (i32, i32) {
    %c0_i32 = arith.constant 0 : i32
    %c0_i32_0 = arith.constant 0 : i32
    %c0_i32_1 = arith.constant 0 : i32
    return %c0_i32, %c0_i32_0 : i32, i32
  }
  func.func @transform_6(%arg0: i32) -> (i32, i32, i32) {
    %c0_i32 = arith.constant 0 : i32
    %c0_i32_0 = arith.constant 0 : i32
    %c0_i32_1 = arith.constant 0 : i32
    return %arg0, %c0_i32, %c0_i32_0 : i32, i32, i32
  }
  func.func @transform_7(%arg0: i32) -> (i32, i32, i32) {
    %c0_i32 = arith.constant 0 : i32
    %c0_i32_0 = arith.constant 0 : i32
    %c0_i32_1 = arith.constant 0 : i32
    return %arg0, %c0_i32, %c0_i32_0 : i32, i32, i32
  }
}

</mosaic_0001>

<llo_original>
// kernel: tpu_custom_call.1
$region0: #{tpu_custom_call.1}
  #allocation0 [shape = 'u32[]', space=smem, size = 0x4, offset = 0x4, fixed_abs, tag = 'smem constant byte address 0x4 - core index']
  #allocation1 [shape = 'u32[144,128]{1,0:T(1,128)}', space=vmem, size = 0x12000, scoped, tag = 'internal scratch']
  #allocation2 [shape = 'f32[48,290]{1,0:T(8,128)}', space=vmem, size = 0x12000, scoped, tag = 'scratch operand']
  #allocation3 [shape = 'f32[16,256]{1,0:T(8,128)}', space=vmem, size = 0x4000, scoped, tag = 'scratch operand']
  %s0 = inlined_call_operand.vmem [shape: f32[4], index: 0, kind: input, shape index: {}]
  %s1 = inlined_call_operand.vmem [shape: f32[2,16,256], index: 1, kind: input, shape index: {}]
  %s2 = inlined_call_operand.vmem [shape: f32[2,16,256], index: 2, kind: input, shape index: {}]
  %s3 = inlined_call_operand.vmem [shape: f32[48,16], index: 3, kind: input, shape index: {}]
  %s4 = inlined_call_operand.vmem [shape: f32[9,48,1], index: 4, kind: input, shape index: {}]
  %s5 = inlined_call_operand.vmem [shape: f32[16,16], index: 5, kind: input, shape index: {}]
  %s6 = inlined_call_operand.hbm [shape: f32[2,48,256], index: 6, kind: output, shape index: {0}]
  %s7 = inlined_call_operand.hbm [shape: f32[2,16,256], index: 7, kind: output, shape index: {1}]
  %8 = xla_tuple %s6, %s7
  %s9 = sld [smem:[#allocation0]]
  $region69: #{tpu_custom_call.1} parent=0
    _
  %s11 = ssub.s32 1, %s9
  %s12 = scalar_select 0, %s11, %s9
  $region1: #{tpu_custom_call.1} parent=0
    #allocation4 [shape = 'u8[512]{0}', space=smem, size = 0x200, scoped, tag = 'input window, operand 0, single buffered']
    #allocation5 [shape = 's32[2]{0}', space=sflag, size = 0x8, scoped, tag = 'scoped memory for tpu_custom_call.1']
    #allocation6 [shape = 's32[2]{0}', space=sflag, size = 0x8, scoped, tag = 'scoped memory for tpu_custom_call.1']
    #allocation7 [shape = 'u8[98304]{0}', space=vmem, size = 0x18000, scoped, tag = 'output window, operand 0']
    #allocation8 [shape = 'u8[32768]{0}', space=vmem, size = 0x8000, scoped, tag = 'output window, operand 1']
    #allocation9 [shape = 's32[2]{0}', space=sflag, size = 0x8, scoped, tag = 'scoped memory for tpu_custom_call.1']
    %13 = vsyncpa [#allocation6], 0
    %14 = vsyncpa [#allocation5], 0
    %s15 = scalar_lea.sflag [#allocation5], 1
    %16 = vsyncpa %s15, 0
    %17 = vsyncpa [#allocation9], 0
    %s18 = scalar_lea.sflag [#allocation9], 1
    %19 = vsyncpa %s18, 0
    loop: start=0, step=1, limit=4
    $region2: #{tpu_custom_call.1} parent=1 // loop_pre_header
      _
    $region3: #{tpu_custom_call.1} parent=1 // loop_header
      %s21 = sphi 0, %s25
      %p22 = scmp.ge.s32.totalorder %s21, 4
      %s29 = sphi 0, %s29
      %s31 = sphi 0, %s29
      %s32 = sphi 0, %s31
      %s46 = sphi 0, %s32
      %s52 = sphi 0, %s54
      %s55 = sphi 0, %s52
      %s56 = sphi 0, %s55
      %s72 = sphi 0, %s56
      %s78 = sphi 0, %s80
      %s81 = sphi 0, %s78
      %s82 = sphi 0, %s81
      %s98 = sphi 0, %s82
      %s102 = sphi 0, %s102
      %s104 = sphi 0, %s102
      %s105 = sphi 0, %s104
      %s119 = sphi 0, %s105
      %s123 = sphi 0, %s123
      %s125 = sphi 0, %s123
      %s126 = sphi 0, %s125
      %s140 = sphi 0, %s126
      %s144 = sphi 0, %s144
      %s146 = sphi 0, %s144
      %s147 = sphi 0, %s146
      %s161 = sphi 0, %s147
      %s167 = sphi 0, %s169
      %s170 = sphi 0, %s167
      %s171 = sphi 0, %s170
      %s187 = sphi 0, %s171
      %s193 = sphi 0, %s195
      %s196 = sphi 0, %s193
      %s197 = sphi 0, %s196
      %s213 = sphi 0, %s197
    $region4: #{tpu_custom_call.1} parent=1 // loop_header_branch
      %24 = sbr.rel (%p22) target = $region8
    $region5: #{tpu_custom_call.1} parent=1 // loop_body
      %s26 = ssub.s32 %s21, 1
      %s27 = ssub.s32 %s21, 2
      %s28 = sadd.s32 %s21, 1
      %s30 = sadd.s32 %s29, 1
      %p33 = scmp.eq.s32.totalorder %s21, 1
      %p34 = scmp.ne.s32.totalorder %s29, %s31
      %p35 = scmp.eq.s32.totalorder %s21, 0
      %p36 = por %p34, %p35
      %p37 = scmp.ne.s32.totalorder %s29, %s31
      %p38 = scmp.eq.s32.totalorder %s26, 1
      %p39 = por %p37, %p38
      %p40 = scmp.ne.s32.totalorder %s31, %s32
      %p41 = scmp.eq.s32.totalorder %s26, 0
      %p42 = por %p40, %p41
      %p43 = scmp.ne.s32.totalorder %s31, %s32
      %p44 = scmp.eq.s32.totalorder %s27, 1
      %p45 = por %p43, %p44
      %p47 = scmp.ne.s32.totalorder %s32, %s46
      %p48 = scmp.eq.s32.totalorder %s27, 0
      %p49 = por %p47, %p48
      %s50 = ssub.s32 %s21, %s28
      %p51 = scmp.eq.s32.totalorder %s50, 0
      %s53 = sadd.s32 %s52, 1
      %s54 = scalar_select %p51, %s52, %s53
      %p57 = pneg %p51
      %p58 = scmp.eq.s32.totalorder %s21, 1
      %p59 = por %p57, %p58
      %p60 = scmp.ne.s32.totalorder %s52, %s55
      %p61 = scmp.eq.s32.totalorder %s21, 0
      %p62 = por %p60, %p61
      %p63 = scmp.ne.s32.totalorder %s52, %s55
      %p64 = scmp.eq.s32.totalorder %s26, 1
      %p65 = por %p63, %p64
      %p66 = scmp.ne.s32.totalorder %s55, %s56
      %p67 = scmp.eq.s32.totalorder %s26, 0
      %p68 = por %p66, %p67
      %p69 = scmp.ne.s32.totalorder %s55, %s56
      %p70 = scmp.eq.s32.totalorder %s27, 1
      %p71 = por %p69, %p70
      %p73 = scmp.ne.s32.totalorder %s56, %s72
      %p74 = scmp.eq.s32.totalorder %s27, 0
      %p75 = por %p73, %p74
      %s76 = ssub.s32 %s21, %s28
      %p77 = scmp.eq.s32.totalorder %s76, 0
      %s79 = sadd.s32 %s78, 1
      %s80 = scalar_select %p77, %s78, %s79
      %p83 = pneg %p77
      %p84 = scmp.eq.s32.totalorder %s21, 1
      %p85 = por %p83, %p84
      %p86 = scmp.ne.s32.totalorder %s78, %s81
      %p87 = scmp.eq.s32.totalorder %s21, 0
      %p88 = por %p86, %p87
      %p89 = scmp.ne.s32.totalorder %s78, %s81
      %p90 = scmp.eq.s32.totalorder %s26, 1
      %p91 = por %p89, %p90
      %p92 = scmp.ne.s32.totalorder %s81, %s82
      %p93 = scmp.eq.s32.totalorder %s26, 0
      %p94 = por %p92, %p93
      %p95 = scmp.ne.s32.totalorder %s81, %s82
      %p96 = scmp.eq.s32.totalorder %s27, 1
      %p97 = por %p95, %p96
      %p99 = scmp.ne.s32.totalorder %s82, %s98
      %p100 = scmp.eq.s32.totalorder %s27, 0
      %p101 = por %p99, %p100
      %s103 = sadd.s32 %s102, 1
      %p106 = scmp.eq.s32.totalorder %s21, 1
      %p107 = scmp.ne.s32.totalorder %s102, %s104
      %p108 = scmp.eq.s32.totalorder %s21, 0
      %p109 = por %p107, %p108
      %p110 = scmp.ne.s32.totalorder %s102, %s104
      %p111 = scmp.eq.s32.totalorder %s26, 1
      %p112 = por %p110, %p111
      %p113 = scmp.ne.s32.totalorder %s104, %s105
      %p114 = scmp.eq.s32.totalorder %s26, 0
      %p115 = por %p113, %p114
      %p116 = scmp.ne.s32.totalorder %s104, %s105
      %p117 = scmp.eq.s32.totalorder %s27, 1
      %p118 = por %p116, %p117
      %p120 = scmp.ne.s32.totalorder %s105, %s119
      %p121 = scmp.eq.s32.totalorder %s27, 0
      %p122 = por %p120, %p121
      %s124 = sadd.s32 %s123, 1
      %p127 = scmp.eq.s32.totalorder %s21, 1
      %p128 = scmp.ne.s32.totalorder %s123, %s125
      %p129 = scmp.eq.s32.totalorder %s21, 0
      %p130 = por %p128, %p129
      %p131 = scmp.ne.s32.totalorder %s123, %s125
      %p132 = scmp.eq.s32.totalorder %s26, 1
      %p133 = por %p131, %p132
      %p134 = scmp.ne.s32.totalorder %s125, %s126
      %p135 = scmp.eq.s32.totalorder %s26, 0
      %p136 = por %p134, %p135
      %p137 = scmp.ne.s32.totalorder %s125, %s126
      %p138 = scmp.eq.s32.totalorder %s27, 1
      %p139 = por %p137, %p138
      %p141 = scmp.ne.s32.totalorder %s126, %s140
      %p142 = scmp.eq.s32.totalorder %s27, 0
      %p143 = por %p141, %p142
      %s145 = sadd.s32 %s144, 1
      %p148 = scmp.eq.s32.totalorder %s21, 1
      %p149 = scmp.ne.s32.totalorder %s144, %s146
      %p150 = scmp.eq.s32.totalorder %s21, 0
      %p151 = por %p149, %p150
      %p152 = scmp.ne.s32.totalorder %s144, %s146
      %p153 = scmp.eq.s32.totalorder %s26, 1
      %p154 = por %p152, %p153
      %p155 = scmp.ne.s32.totalorder %s146, %s147
      %p156 = scmp.eq.s32.totalorder %s26, 0
      %p157 = por %p155, %p156
      %p158 = scmp.ne.s32.totalorder %s146, %s147
      %p159 = scmp.eq.s32.totalorder %s27, 1
      %p160 = por %p158, %p159
      %p162 = scmp.ne.s32.totalorder %s147, %s161
      %p163 = scmp.eq.s32.totalorder %s27, 0
      %p164 = por %p162, %p163
      %s165 = ssub.s32 %s21, %s28
      %p166 = scmp.eq.s32.totalorder %s165, 0
      %s168 = sadd.s32 %s167, 1
      %s169 = scalar_select %p166, %s167, %s168
      %p172 = pneg %p166
      %p173 = scmp.eq.s32.totalorder %s21, 1
      %p174 = por %p172, %p173
      %p175 = scmp.ne.s32.totalorder %s167, %s170
      %p176 = scmp.eq.s32.totalorder %s21, 0
      %p177 = por %p175, %p176
      %p178 = scmp.ne.s32.totalorder %s167, %s170
      %p179 = scmp.eq.s32.totalorder %s26, 1
      %p180 = por %p178, %p179
      %p181 = scmp.ne.s32.totalorder %s170, %s171
      %p182 = scmp.eq.s32.totalorder %s26, 0
      %p183 = por %p181, %p182
      %p184 = scmp.ne.s32.totalorder %s170, %s171
      %p185 = scmp.eq.s32.totalorder %s27, 1
      %p186 = por %p184, %p185
      %p188 = scmp.ne.s32.totalorder %s171, %s187
      %p189 = scmp.eq.s32.totalorder %s27, 0
      %p190 = por %p188, %p189
      %s191 = ssub.s32 %s21, %s28
      %p192 = scmp.eq.s32.totalorder %s191, 0
      %s194 = sadd.s32 %s193, 1
      %s195 = scalar_select %p192, %s193, %s194
      %p198 = pneg %p192
      %p199 = scmp.eq.s32.totalorder %s21, 1
      %p200 = por %p198, %p199
      %p201 = scmp.ne.s32.totalorder %s193, %s196
      %p202 = scmp.eq.s32.totalorder %s21, 0
      %p203 = por %p201, %p202
      %p204 = scmp.ne.s32.totalorder %s193, %s196
      %p205 = scmp.eq.s32.totalorder %s26, 1
      %p206 = por %p204, %p205
      %p207 = scmp.ne.s32.totalorder %s196, %s197
      %p208 = scmp.eq.s32.totalorder %s26, 0
      %p209 = por %p207, %p208
      %p210 = scmp.ne.s32.totalorder %s196, %s197
      %p211 = scmp.eq.s32.totalorder %s27, 1
      %p212 = por %p210, %p211
      %p214 = scmp.ne.s32.totalorder %s197, %s213
      %p215 = scmp.eq.s32.totalorder %s27, 0
      %p216 = por %p214, %p215
      %p217 = scmp.le.s32.totalorder 1, %s21
      %p218 = scmp.lt.s32.totalorder %s21, 3
      %p219 = pnand %p217, %p218
      %p220 = pneg %p219
      // Predicated region
      $region9: #{tpu_custom_call.1} parent=5 // pred_check
        _
      $region10: #{tpu_custom_call.1} parent=5 // pred_check_branch
        %222 = sbr.rel (%p219) target = $region12
      $region11: #{tpu_custom_call.1} parent=5 // pred_region
        %s223 = ssub.s32 %s21, 1
        // Predicated region
        $region13: #{tpu_custom_call.1} parent=11 // pred_check
          %p224 = pneg %p42
        $region14: #{tpu_custom_call.1} parent=11 // pred_check_branch
          %226 = sbr.rel (%p224) target = $region16
        $region15: #{tpu_custom_call.1} parent=11 // pred_region
          %s228 = ssub.s32 16, 16
          %229 = vsyncadd [#allocation6], %s228
          %s231 = sshll.u32 %s0, 4
          %s232 = int_to_ptr.vmem [resolvable:$true] %s231
          %234 = dma.vmem_to_smem %s232, 16, [#allocation4], [#allocation6]
        $region16: #{tpu_custom_call.1} parent=11 // pred_fallthru
          _
        // Predicated region
        $region17: #{tpu_custom_call.1} parent=11 // pred_check
          %p235 = pneg %p115
        $region18: #{tpu_custom_call.1} parent=11 // pred_check_branch
          %237 = sbr.rel (%p235) target = $region20
        $region19: #{tpu_custom_call.1} parent=11 // pred_region
          _
        $region20: #{tpu_custom_call.1} parent=11 // pred_fallthru
          _
        // Predicated region
        $region21: #{tpu_custom_call.1} parent=11 // pred_check
          %p238 = pneg %p136
        $region22: #{tpu_custom_call.1} parent=11 // pred_check_branch
          %240 = sbr.rel (%p238) target = $region24
        $region23: #{tpu_custom_call.1} parent=11 // pred_region
          _
        $region24: #{tpu_custom_call.1} parent=11 // pred_fallthru
          _
        // Predicated region
        $region25: #{tpu_custom_call.1} parent=11 // pred_check
          %p241 = pneg %p157
        $region26: #{tpu_custom_call.1} parent=11 // pred_check_branch
          %243 = sbr.rel (%p241) target = $region28
        $region27: #{tpu_custom_call.1} parent=11 // pred_region
          _
        $region28: #{tpu_custom_call.1} parent=11 // pred_fallthru
          _
      $region12: #{tpu_custom_call.1} parent=5 // pred_fallthru
        _
      %p244 = scmp.lt.s32.totalorder %s21, 2
      // Predicated region
      $region29: #{tpu_custom_call.1} parent=5 // pred_check
        %p245 = pneg %p244
      $region30: #{tpu_custom_call.1} parent=5 // pred_check_branch
        %247 = sbr.rel (%p245) target = $region32
      $region31: #{tpu_custom_call.1} parent=5 // pred_region
        // Predicated region
        $region33: #{tpu_custom_call.1} parent=31 // pred_check
          %p248 = pneg %p62
        $region34: #{tpu_custom_call.1} parent=31 // pred_check_branch
          %250 = sbr.rel (%p248) target = $region36
        $region35: #{tpu_custom_call.1} parent=31 // pred_region
          %p251 = scmp.lt.s32.totalorder %s21, 1
          %s252 = scalar_select %p251, %s21, 1
          %s253 = smul.addr %s252, 4
          %s254 = smul.addr %s253, 8
          %s255 = scalar_lea.vmem %s1, %s254
        $region36: #{tpu_custom_call.1} parent=31 // pred_fallthru
          _
        // Predicated region
        $region37: #{tpu_custom_call.1} parent=31 // pred_check
          %p256 = pneg %p88
        $region38: #{tpu_custom_call.1} parent=31 // pred_check_branch
          %258 = sbr.rel (%p256) target = $region40
        $region39: #{tpu_custom_call.1} parent=31 // pred_region
          %p259 = scmp.lt.s32.totalorder %s21, 1
          %s260 = scalar_select %p259, %s21, 1
          %s261 = smul.addr %s260, 4
          %s262 = smul.addr %s261, 8
          %s263 = scalar_lea.vmem %s2, %s262
        $region40: #{tpu_custom_call.1} parent=31 // pred_fallthru
          _
      $region32: #{tpu_custom_call.1} parent=5 // pred_fallthru
        _
      %p264 = scmp.le.s32.totalorder 1, %s21
      %p265 = scmp.lt.s32.totalorder %s21, 3
      %p266 = pnand %p264, %p265
      %p267 = pneg %p266
      // Predicated region
      $region41: #{tpu_custom_call.1} parent=5 // pred_check
        _
      $region42: #{tpu_custom_call.1} parent=5 // pred_check_branch
        %269 = sbr.rel (%p266) target = $region44
      $region43: #{tpu_custom_call.1} parent=5 // pred_region
        %s270 = ssub.s32 %s21, 1
        // Predicated region
        $region45: #{tpu_custom_call.1} parent=43 // pred_check
          %p271 = pneg %p42
        $region46: #{tpu_custom_call.1} parent=43 // pred_check_branch
          %273 = sbr.rel (%p271) target = $region48
        $region47: #{tpu_custom_call.1} parent=43 // pred_region
          %274 = dma.done [#allocation6], 16
        $region48: #{tpu_custom_call.1} parent=43 // pred_fallthru
          _
        %275 = sfence
        %p276 = pneg %p42
        %p277 = pneg %p39
        %p278 = scmp.lt.s32.totalorder %s26, 1
        %s279 = scalar_select %p278, %s26, 1
        %s280 = smul.addr %s279, 4
        %s281 = smul.addr %s280, 8
        %s282 = scalar_lea.vmem %s1, %s281
        %p283 = pneg %p68
        %p284 = pneg %p65
        %p285 = scmp.lt.s32.totalorder %s26, 1
        %s286 = scalar_select %p285, %s26, 1
        %s287 = smul.addr %s286, 4
        %s288 = smul.addr %s287, 8
        %s289 = scalar_lea.vmem %s2, %s288
        %p290 = pneg %p94
        %p291 = pneg %p91
        %p292 = pneg %p115
        %p293 = pneg %p112
        %p294 = pneg %p136
        %p295 = pneg %p133
        %p296 = pneg %p157
        %p297 = pneg %p154
        %p298 = pneg %p183
        %p299 = pneg %p180
        %s300 = sand.u32 %s170, 1
        %s301 = scalar_lea.sflag [#allocation5], %s300
        %s302 = sand.u32 %s170, 1
        %s303 = smul.addr %s302, 96
        %s304 = scalar_lea.vmem [#allocation7], %s303
        %p305 = pneg %p209
        %p306 = pneg %p206
        %s307 = sand.u32 %s196, 1
        %s308 = scalar_lea.sflag [#allocation9], %s307
        %s309 = sand.u32 %s196, 1
        %s310 = smul.addr %s309, 32
        %s311 = scalar_lea.vmem [#allocation8], %s310
        %p312 = scmp.lt.s32.totalorder %s26, 1
        %s313 = scalar_select %p312, %s26, 1
        %s314 = smul.addr %s313, 4
        %s315 = smul.addr %s314, 8
        %s316 = scalar_lea.vmem %s1, %s315
        %p317 = scmp.lt.s32.totalorder %s26, 1
        %s318 = scalar_select %p317, %s26, 1
        %s319 = smul.addr %s318, 4
        %s320 = smul.addr %s319, 8
        %s321 = scalar_lea.vmem %s2, %s320
        %v322 = vld [vmem:[%s316] sm:$0xff]
        %v323 = vld [vmem:[%s316 + $0x8] sm:$0xff]
        %v324 = vld [vmem:[%s316 + $0x10] sm:$0xff]
        %v325 = vld [vmem:[%s316 + $0x18] sm:$0xff]
        %v326 = vld [vmem:[%s321] sm:$0xff]
        %v327 = vld [vmem:[%s321 + $0x8] sm:$0xff]
        %v328 = vld [vmem:[%s321 + $0x10] sm:$0xff]
        %v329 = vld [vmem:[%s321 + $0x18] sm:$0xff]
        %v330 = vadd.f32 %v322, %v326
        %v331 = vadd.f32 %v323, %v327
        %v332 = vadd.f32 %v324, %v328
        %v333 = vadd.f32 %v325, %v329
        %v334 = vld [vmem:[%s3] sm:$0xff]
        %v335 = vld [vmem:[%s3 + $0x8] sm:$0xff]
        %v336 = vld [vmem:[%s3 + $0x10] sm:$0xff]
        %v337 = vld [vmem:[%s3 + $0x18] sm:$0xff]
        %v338 = vld [vmem:[%s3 + $0x20] sm:$0xff]
        %v339 = vld [vmem:[%s3 + $0x28] sm:$0xff]
        %vm340 = vcmask 130048
        %v342 = vsel %vm340, %v334, 0
        %v345 = vsel %vm340, %v335, 0
        %v348 = vsel %vm340, %v336, 0
        %v351 = vsel %vm340, %v337, 0
        %v354 = vsel %vm340, %v338, 0
        %v357 = vsel %vm340, %v339, 0
        %359 = vmatprep.subr.mxu0 %v331
        %360 = vmatpush1.msra.mxu0 %v330
        %361 = vmatprep.subr.mxu0 %v333
        %362 = vmatpush1.msra.mxu0 %v332
        %363 = vmatprep.subr.mxu0 0.0
        %364 = vmatpush1.msra.mxu0 0.0
        %365 = vmatprep.subr.mxu0 0.0
        %366 = vmatpush1.msra.mxu0 0.0
        %367 = vmatprep.subr.mxu0 0.0
        %368 = vmatpush1.msra.mxu0 0.0
        %369 = vmatprep.subr.mxu0 0.0
        %370 = vmatpush1.msra.mxu0 0.0
        %371 = vmatprep.subr.mxu0 0.0
        %372 = vmatpush1.msra.mxu0 0.0
        %373 = vmatprep.subr.mxu0 0.0
        %374 = vmatpush1.msra.mxu0 0.0
        %375 = vmatprep.subr.mxu0 0.0
        %376 = vmatpush1.msra.mxu0 0.0
        %377 = vmatprep.subr.mxu0 0.0
        %378 = vmatpush1.msra.mxu0 0.0
        %379 = vmatprep.subr.mxu0 0.0
        %380 = vmatpush1.msra.mxu0 0.0
        %381 = vmatprep.subr.mxu0 0.0
        %382 = vmatpush1.msra.mxu0 0.0
        %383 = vmatprep.subr.mxu0 0.0
        %384 = vmatpush1.msra.mxu0 0.0
        %385 = vmatprep.subr.mxu0 0.0
        %386 = vmatpush1.msra.mxu0 0.0
        %387 = vmatprep.subr.mxu0 0.0
        %388 = vmatpush1.msra.mxu0 0.0
        %389 = vmatprep.subr.mxu0 0.0
        %390 = vmatpush1.msra.mxu0 0.0
        %391 = vmatprep.subr.mxu0 0.0
        %392 = vmatpush1.msra.mxu0 0.0
        %393 = vmatprep.subr.mxu0 0.0
        %394 = vmatpush1.msra.mxu0 0.0
        %395 = vmatprep.subr.mxu0 0.0
        %396 = vmatpush1.msra.mxu0 0.0
        %397 = vmatprep.subr.mxu0 0.0
        %398 = vmatpush1.msra.mxu0 0.0
        %399 = vmatprep.subr.mxu0 0.0
        %400 = vmatpush1.msra.mxu0 0.0
        %401 = vmatprep.subr.mxu0 0.0
        %402 = vmatpush1.msra.mxu0 0.0
        %403 = vmatprep.subr.mxu0 0.0
        %404 = vmatpush1.msra.mxu0 0.0
        %405 = vmatprep.subr.mxu0 0.0
        %406 = vmatpush1.msra.mxu0 0.0
        %407 = vmatprep.subr.mxu0 0.0
        %408 = vmatpush1.msra.mxu0 0.0
        %409 = vmatprep.subr.mxu0 0.0
        %410 = vmatpush1.msra.mxu0 0.0
        %411 = vmatprep.subr.mxu0 0.0
        %412 = vmatpush1.msra.mxu0 0.0
        %413 = vmatprep.subr.mxu0 0.0
        %414 = vmatpush1.msra.mxu0 0.0
        %415 = vmatprep.subr.mxu0 0.0
        %416 = vmatpush1.msra.mxu0 0.0
        %417 = vmatprep.subr.mxu0 0.0
        %418 = vmatpush1.msra.mxu0 0.0
        %419 = vmatprep.subr.mxu0 0.0
        %420 = vmatpush1.msra.mxu0 0.0
        %421 = vmatprep.subr.mxu0 0.0
        %422 = vmatpush1.msra.mxu0 0.0
        %423 = vmatprep.mubr.f32.mxu0 0.0
        %424 = vmatmul.mubr.f32.gmra.mrb[0].mxu0 %v342
        %v425 = vpop.f32.mrb[0].mxu0
        %v426 = vadd.f32 0.0, %v425
        %v427 = vpop.f32.mrb[0].mxu0
        %v428 = vadd.f32 0.0, %v427
        %429 = vmatprep.mubr.f32.mxu0 0.0
        %430 = vmatmul.mubr.f32.gmra.mrb[0].mxu0 %v345
        %v431 = vpop.f32.mrb[0].mxu0
        %v432 = vadd.f32 0.0, %v431
        %v433 = vpop.f32.mrb[0].mxu0
        %v434 = vadd.f32 0.0, %v433
        %435 = vmatprep.mubr.f32.mxu0 0.0
        %436 = vmatmul.mubr.f32.gmra.mrb[0].mxu0 %v348
        %v437 = vpop.f32.mrb[0].mxu0
        %v438 = vadd.f32 0.0, %v437
        %v439 = vpop.f32.mrb[0].mxu0
        %v440 = vadd.f32 0.0, %v439
        %441 = vmatprep.mubr.f32.mxu0 0.0
        %442 = vmatmul.mubr.f32.gmra.mrb[0].mxu0 %v351
        %v443 = vpop.f32.mrb[0].mxu0
        %v444 = vadd.f32 0.0, %v443
        %v445 = vpop.f32.mrb[0].mxu0
        %v446 = vadd.f32 0.0, %v445
        %447 = vmatprep.mubr.f32.mxu0 0.0
        %448 = vmatmul.mubr.f32.gmra.mrb[0].mxu0 %v354
        %v449 = vpop.f32.mrb[0].mxu0
        %v450 = vadd.f32 0.0, %v449
        %v451 = vpop.f32.mrb[0].mxu0
        %v452 = vadd.f32 0.0, %v451
        %453 = vmatprep.mubr.f32.mxu0 0.0
        %454 = vmatmul.mubr.f32.gmra.mrb[0].mxu0 %v357
        %v455 = vpop.f32.mrb[0].mxu0
        %v456 = vadd.f32 0.0, %v455
        %v457 = vpop.f32.mrb[0].mxu0
        %v458 = vadd.f32 0.0, %v457
        %459 = vdwg.mxu0
        %460 = vst [vmem:[#allocation2] sm:$0xff] 0.0
        %461 = vst [vmem:[#allocation2 + $0x8] sm:$0xff] 0.0
        %vm462 = vcmask 277504
        %463 = vst.msk [vmem:[#allocation2 + $0x10] sm:$0xff] %vm462, 0.0
        %464 = vst [vmem:[#allocation2 + $0x18] sm:$0xff] 0.0
        %465 = vst [vmem:[#allocation2 + $0x20] sm:$0xff] 0.0
        %466 = vst.msk [vmem:[#allocation2 + $0x28] sm:$0xff] %vm462, 0.0
        %467 = vst [vmem:[#allocation2 + $0x30] sm:$0xff] 0.0
        %468 = vst [vmem:[#allocation2 + $0x38] sm:$0xff] 0.0
        %469 = vst.msk [vmem:[#allocation2 + $0x40] sm:$0xff] %vm462, 0.0
        %470 = vst [vmem:[#allocation2 + $0x48] sm:$0xff] 0.0
        %471 = vst [vmem:[#allocation2 + $0x50] sm:$0xff] 0.0
        %472 = vst.msk [vmem:[#allocation2 + $0x58] sm:$0xff] %vm462, 0.0
        %473 = vst [vmem:[#allocation2 + $0x60] sm:$0xff] 0.0
        %474 = vst [vmem:[#allocation2 + $0x68] sm:$0xff] 0.0
        %475 = vst.msk [vmem:[#allocation2 + $0x70] sm:$0xff] %vm462, 0.0
        %476 = vst [vmem:[#allocation2 + $0x78] sm:$0xff] 0.0
        %477 = vst [vmem:[#allocation2 + $0x80] sm:$0xff] 0.0
        %478 = vst.msk [vmem:[#allocation2 + $0x88] sm:$0xff] %vm462, 0.0
        %491 = vrot.lane.b32.xlu0 %v426, 17
        %v492 = vpop.permute.xlu0 %491
        %493 = vrot.lane.b32.xlu0 %v428, 17
        %v494 = vpop.permute.xlu0 %493
        %495 = vrot.lane.b32.xlu0 %v432, 17
        %v496 = vpop.permute.xlu0 %495
        %497 = vrot.lane.b32.xlu0 %v434, 17
        %v498 = vpop.permute.xlu0 %497
        %499 = vrot.lane.b32.xlu0 %v438, 17
        %v500 = vpop.permute.xlu0 %499
        %501 = vrot.lane.b32.xlu0 %v440, 17
        %v502 = vpop.permute.xlu0 %501
        %503 = vrot.lane.b32.xlu0 %v444, 17
        %v504 = vpop.permute.xlu0 %503
        %505 = vrot.lane.b32.xlu0 %v446, 17
        %v506 = vpop.permute.xlu0 %505
        %507 = vrot.lane.b32.xlu0 %v450, 17
        %v508 = vpop.permute.xlu0 %507
        %509 = vrot.lane.b32.xlu0 %v452, 17
        %v510 = vpop.permute.xlu0 %509
        %511 = vrot.lane.b32.xlu0 %v456, 17
        %v512 = vpop.permute.xlu0 %511
        %513 = vrot.lane.b32.xlu0 %v458, 17
        %v514 = vpop.permute.xlu0 %513
        %vm515 = vcmask 138240
        %v516 = vsel %vm515, %v492, %v494
        %v517 = vsel %vm515, %v496, %v498
        %v518 = vsel %vm515, %v500, %v502
        %v519 = vsel %vm515, %v504, %v506
        %v520 = vsel %vm515, %v508, %v510
        %v521 = vsel %vm515, %v512, %v514
        %vm540 = vcmask 1047688
        %541 = vst.msk [vmem:[#allocation2] sm:$0xff] %vm540, %v492
        %542 = vst [vmem:[#allocation2 + $0x8] sm:$0xff] %v516
        %543 = vst.msk [vmem:[#allocation2 + $0x10] sm:$0xff] %vm515, %v494
        %544 = vst.msk [vmem:[#allocation2 + $0x18] sm:$0xff] %vm540, %v496
        %545 = vst [vmem:[#allocation2 + $0x20] sm:$0xff] %v517
        %546 = vst.msk [vmem:[#allocation2 + $0x28] sm:$0xff] %vm515, %v498
        %547 = vst.msk [vmem:[#allocation2 + $0x30] sm:$0xff] %vm540, %v500
        %548 = vst [vmem:[#allocation2 + $0x38] sm:$0xff] %v518
        %549 = vst.msk [vmem:[#allocation2 + $0x40] sm:$0xff] %vm515, %v502
        %550 = vst.msk [vmem:[#allocation2 + $0x48] sm:$0xff] %vm540, %v504
        %551 = vst [vmem:[#allocation2 + $0x50] sm:$0xff] %v519
        %552 = vst.msk [vmem:[#allocation2 + $0x58] sm:$0xff] %vm515, %v506
        %553 = vst.msk [vmem:[#allocation2 + $0x60] sm:$0xff] %vm540, %v508
        %554 = vst [vmem:[#allocation2 + $0x68] sm:$0xff] %v520
        %555 = vst.msk [vmem:[#allocation2 + $0x70] sm:$0xff] %vm515, %v510
        %556 = vst.msk [vmem:[#allocation2 + $0x78] sm:$0xff] %vm540, %v512
        %557 = vst [vmem:[#allocation2 + $0x80] sm:$0xff] %v521
        %558 = vst.msk [vmem:[#allocation2 + $0x88] sm:$0xff] %vm515, %v514
        %v559 = vlaneseq
        %v560 = vand.u32 %v559, 127
        %v561 = vadd.s32 %v560, 128
        %vm562 = vcmp.lt.s32.totalorder %v560, 0
        %v563 = vsub.s32 0, %v560
        %v564 = vsel %vm562, %v563, %v560
        %v565 = vshrl.u32 %v564, 4
        %v566 = vand.u32 %v564, 15
        %v567 = vsub.s32 0, %v566
        %v568 = vsel %vm562, %v567, %v566
        %vm569 = vcmp.lt.s32.totalorder %v561, 0
        %v570 = vsub.s32 0, %v561
        %v571 = vsel %vm569, %v570, %v561
        %v572 = vshrl.u32 %v571, 4
        %v573 = vand.u32 %v571, 15
        %v574 = vsub.s32 0, %v573
        %v575 = vsel %vm569, %v574, %v573
        %vm576 = vcmp.ne.s32.totalorder %v568, 0
        %vm577 = vcmp.ne.s32.totalorder %v575, 0
        %vm578 = vcmp.lt.s32.totalorder %v568, 0
        %vm579 = vcmp.lt.s32.totalorder %v575, 0
        %vm580 = vmand %vm578, %vm576
        %vm581 = vmand %vm579, %vm577
        %v582 = vadd.s32 %v568, 16
        %v583 = vadd.s32 %v575, 16
        %v584 = vsel %vm580, %v582, %v568
        %v585 = vsel %vm581, %v583, %v575
        %vm586 = vcmp.ne.s32.totalorder %v584, 0
        %vm587 = vcmp.ne.s32.totalorder %v585, 0
        %vm588 = vcmp.ne.s32.totalorder %v584, 15
        %vm589 = vcmp.ne.s32.totalorder %v585, 15
        %v590 = vld [vmem:[%s4] sm:$0xff]
        %v591 = vld [vmem:[%s4 + $0x8] sm:$0xff]
        %v592 = vld [vmem:[%s4 + $0x10] sm:$0xff]
        %v593 = vld [vmem:[%s4 + $0x18] sm:$0xff]
        %v594 = vld [vmem:[%s4 + $0x20] sm:$0xff]
        %v595 = vld [vmem:[%s4 + $0x28] sm:$0xff]
        %v596 = vld [vmem:[%s4 + $0x30] sm:$0xff]
        %v597 = vld [vmem:[%s4 + $0x38] sm:$0xff]
        %v598 = vld [vmem:[%s4 + $0x40] sm:$0xff]
        %v599 = vld [vmem:[%s4 + $0x48] sm:$0xff]
        %v600 = vld [vmem:[%s4 + $0x50] sm:$0xff]
        %v601 = vld [vmem:[%s4 + $0x58] sm:$0xff]
        %v602 = vld [vmem:[%s4 + $0x60] sm:$0xff]
        %v603 = vld [vmem:[%s4 + $0x68] sm:$0xff]
        %v604 = vld [vmem:[%s4 + $0x70] sm:$0xff]
        %v605 = vld [vmem:[%s4 + $0x78] sm:$0xff]
        %v606 = vld [vmem:[%s4 + $0x80] sm:$0xff]
        %v607 = vld [vmem:[%s4 + $0x88] sm:$0xff]
        %v608 = vld [vmem:[%s4 + $0x90] sm:$0xff]
        %v609 = vld [vmem:[%s4 + $0x98] sm:$0xff]
        %v610 = vld [vmem:[%s4 + $0xa0] sm:$0xff]
        %v611 = vld [vmem:[%s4 + $0xa8] sm:$0xff]
        %v612 = vld [vmem:[%s4 + $0xb0] sm:$0xff]
        %v613 = vld [vmem:[%s4 + $0xb8] sm:$0xff]
        %v614 = vld [vmem:[%s4 + $0xc0] sm:$0xff]
        %v615 = vld [vmem:[%s4 + $0xc8] sm:$0xff]
        %v616 = vld [vmem:[%s4 + $0xd0] sm:$0xff]
        %v617 = vld [vmem:[%s4 + $0xd8] sm:$0xff]
        %v618 = vld [vmem:[%s4 + $0xe0] sm:$0xff]
        %v619 = vld [vmem:[%s4 + $0xe8] sm:$0xff]
        %v620 = vld [vmem:[%s4 + $0xf0] sm:$0xff]
        %v621 = vld [vmem:[%s4 + $0xf8] sm:$0xff]
        %v622 = vld [vmem:[%s4 + $0x100] sm:$0xff]
        %v623 = vld [vmem:[%s4 + $0x108] sm:$0xff]
        %v624 = vld [vmem:[%s4 + $0x110] sm:$0xff]
        %v625 = vld [vmem:[%s4 + $0x118] sm:$0xff]
        %v626 = vld [vmem:[%s4 + $0x120] sm:$0xff]
        %v627 = vld [vmem:[%s4 + $0x128] sm:$0xff]
        %v628 = vld [vmem:[%s4 + $0x130] sm:$0xff]
        %v629 = vld [vmem:[%s4 + $0x138] sm:$0xff]
        %v630 = vld [vmem:[%s4 + $0x140] sm:$0xff]
        %v631 = vld [vmem:[%s4 + $0x148] sm:$0xff]
        %v632 = vld [vmem:[%s4 + $0x150] sm:$0xff]
        %v633 = vld [vmem:[%s4 + $0x158] sm:$0xff]
        %v634 = vld [vmem:[%s4 + $0x160] sm:$0xff]
        %v635 = vld [vmem:[%s4 + $0x168] sm:$0xff]
        %v636 = vld [vmem:[%s4 + $0x170] sm:$0xff]
        %v637 = vld [vmem:[%s4 + $0x178] sm:$0xff]
        %v638 = vld [vmem:[%s4 + $0x180] sm:$0xff]
        %v639 = vld [vmem:[%s4 + $0x188] sm:$0xff]
        %v640 = vld [vmem:[%s4 + $0x190] sm:$0xff]
        %v641 = vld [vmem:[%s4 + $0x198] sm:$0xff]
        %v642 = vld [vmem:[%s4 + $0x1a0] sm:$0xff]
        %v643 = vld [vmem:[%s4 + $0x1a8] sm:$0xff]
        %v644 = vld [vmem:[#allocation2] sm:$0xff]
        %v645 = vld [vmem:[#allocation2 + $0x8] sm:$0xff]
        %v646 = vld [vmem:[#allocation2 + $0x18] sm:$0xff]
        %v647 = vld [vmem:[#allocation2 + $0x20] sm:$0xff]
        %v648 = vld [vmem:[#allocation2 + $0x30] sm:$0xff]
        %v649 = vld [vmem:[#allocation2 + $0x38] sm:$0xff]
        %v650 = vld [vmem:[#allocation2 + $0x48] sm:$0xff]
        %v651 = vld [vmem:[#allocation2 + $0x50] sm:$0xff]
        %v652 = vld [vmem:[#allocation2 + $0x60] sm:$0xff]
        %v653 = vld [vmem:[#allocation2 + $0x68] sm:$0xff]
        %v654 = vld [vmem:[#allocation2 + $0x78] sm:$0xff]
        %v655 = vld [vmem:[#allocation2 + $0x80] sm:$0xff]
        %657 = vset.pattern.permute.xlu0 0
        %658 = vperm.xlu0 %657, %v590
        %v659 = vpop.permute.xlu0 %658
        %662 = vset.pattern.permute.xlu0 0
        %663 = vperm.xlu0 %662, %v591
        %v664 = vpop.permute.xlu0 %663
        %667 = vset.pattern.permute.xlu0 0
        %668 = vperm.xlu0 %667, %v592
        %v669 = vpop.permute.xlu0 %668
        %672 = vset.pattern.permute.xlu0 0
        %673 = vperm.xlu0 %672, %v593
        %v674 = vpop.permute.xlu0 %673
        %677 = vset.pattern.permute.xlu0 0
        %678 = vperm.xlu0 %677, %v594
        %v679 = vpop.permute.xlu0 %678
        %682 = vset.pattern.permute.xlu0 0
        %683 = vperm.xlu0 %682, %v595
        %v684 = vpop.permute.xlu0 %683
        %v686 = vmul.f32 %v644, %v659
        %v687 = vmul.f32 %v645, %v659
        %v688 = vmul.f32 %v646, %v664
        %v689 = vmul.f32 %v647, %v664
        %v690 = vmul.f32 %v648, %v669
        %v691 = vmul.f32 %v649, %v669
        %v692 = vmul.f32 %v650, %v674
        %v693 = vmul.f32 %v651, %v674
        %v694 = vmul.f32 %v652, %v679
        %v695 = vmul.f32 %v653, %v679
        %v696 = vmul.f32 %v654, %v684
        %v697 = vmul.f32 %v655, %v684
        %v698 = vsel %vm586, 1, 0
        %v699 = vsel %vm587, 1, 0
        %vm700 = vcmp.eq.s32.totalorder %v698, 1
        %vm701 = vcmp.eq.s32.totalorder %v699, 1
        %v702 = vsel %vm700, %v686, 0.0
        %v703 = vsel %vm701, %v687, 0.0
        %v704 = vsel %vm700, %v688, 0.0
        %v705 = vsel %vm701, %v689, 0.0
        %v706 = vsel %vm700, %v690, 0.0
        %v707 = vsel %vm701, %v691, 0.0
        %v708 = vsel %vm700, %v692, 0.0
        %v709 = vsel %vm701, %v693, 0.0
        %v710 = vsel %vm700, %v694, 0.0
        %v711 = vsel %vm701, %v695, 0.0
        %v712 = vsel %vm700, %v696, 0.0
        %v713 = vsel %vm701, %v697, 0.0
        %v714 = vadd.f32 %v702, 0.0
        %v715 = vadd.f32 %v703, 0.0
        %v716 = vadd.f32 %v704, 0.0
        %v717 = vadd.f32 %v705, 0.0
        %v718 = vadd.f32 %v706, 0.0
        %v719 = vadd.f32 %v707, 0.0
        %v720 = vadd.f32 %v708, 0.0
        %v721 = vadd.f32 %v709, 0.0
        %v722 = vadd.f32 %v710, 0.0
        %v723 = vadd.f32 %v711, 0.0
        %v724 = vadd.f32 %v712, 0.0
        %v725 = vadd.f32 %v713, 0.0
        %v726 = vld [vmem:[#allocation2] sm:$0xff]
        %v727 = vld [vmem:[#allocation2 + $0x8] sm:$0xff]
        %v728 = vld [vmem:[#allocation2 + $0x10] sm:$0xff]
        %v729 = vld [vmem:[#allocation2 + $0x18] sm:$0xff]
        %v730 = vld [vmem:[#allocation2 + $0x20] sm:$0xff]
        %v731 = vld [vmem:[#allocation2 + $0x28] sm:$0xff]
        %v732 = vld [vmem:[#allocation2 + $0x30] sm:$0xff]
        %v733 = vld [vmem:[#allocation2 + $0x38] sm:$0xff]
        %v734 = vld [vmem:[#allocation2 + $0x40] sm:$0xff]
        %v735 = vld [vmem:[#allocation2 + $0x48] sm:$0xff]
        %v736 = vld [vmem:[#allocation2 + $0x50] sm:$0xff]
        %v737 = vld [vmem:[#allocation2 + $0x58] sm:$0xff]
        %v738 = vld [vmem:[#allocation2 + $0x60] sm:$0xff]
        %v739 = vld [vmem:[#allocation2 + $0x68] sm:$0xff]
        %v740 = vld [vmem:[#allocation2 + $0x70] sm:$0xff]
        %v741 = vld [vmem:[#allocation2 + $0x78] sm:$0xff]
        %v742 = vld [vmem:[#allocation2 + $0x80] sm:$0xff]
        %v743 = vld [vmem:[#allocation2 + $0x88] sm:$0xff]
        %745 = vset.pattern.permute.xlu0 0
        %746 = vperm.xlu0 %745, %v596
        %v747 = vpop.permute.xlu0 %746
        %750 = vset.pattern.permute.xlu0 0
        %751 = vperm.xlu0 %750, %v597
        %v752 = vpop.permute.xlu0 %751
        %755 = vset.pattern.permute.xlu0 0
        %756 = vperm.xlu0 %755, %v598
        %v757 = vpop.permute.xlu0 %756
        %760 = vset.pattern.permute.xlu0 0
        %761 = vperm.xlu0 %760, %v599
        %v762 = vpop.permute.xlu0 %761
        %765 = vset.pattern.permute.xlu0 0
        %766 = vperm.xlu0 %765, %v600
        %v767 = vpop.permute.xlu0 %766
        %770 = vset.pattern.permute.xlu0 0
        %771 = vperm.xlu0 %770, %v601
        %v772 = vpop.permute.xlu0 %771
        %v774 = vmul.f32 %v726, %v747
        %v775 = vmul.f32 %v727, %v747
        %v776 = vmul.f32 %v728, %v747
        %v777 = vmul.f32 %v729, %v752
        %v778 = vmul.f32 %v730, %v752
        %v779 = vmul.f32 %v731, %v752
        %v780 = vmul.f32 %v732, %v757
        %v781 = vmul.f32 %v733, %v757
        %v782 = vmul.f32 %v734, %v757
        %v783 = vmul.f32 %v735, %v762
        %v784 = vmul.f32 %v736, %v762
        %v785 = vmul.f32 %v737, %v762
        %v786 = vmul.f32 %v738, %v767
        %v787 = vmul.f32 %v739, %v767
        %v788 = vmul.f32 %v740, %v767
        %v789 = vmul.f32 %v741, %v772
        %v790 = vmul.f32 %v742, %v772
        %v791 = vmul.f32 %v743, %v772
        %810 = vrot.lane.b32.xlu0 %v774, 127
        %v811 = vpop.permute.xlu0 %810
        %812 = vrot.lane.b32.xlu0 %v775, 127
        %v813 = vpop.permute.xlu0 %812
        %814 = vrot.lane.b32.xlu0 %v776, 127
        %v815 = vpop.permute.xlu0 %814
        %816 = vrot.lane.b32.xlu0 %v777, 127
        %v817 = vpop.permute.xlu0 %816
        %818 = vrot.lane.b32.xlu0 %v778, 127
        %v819 = vpop.permute.xlu0 %818
        %820 = vrot.lane.b32.xlu0 %v779, 127
        %v821 = vpop.permute.xlu0 %820
        %822 = vrot.lane.b32.xlu0 %v780, 127
        %v823 = vpop.permute.xlu0 %822
        %824 = vrot.lane.b32.xlu0 %v781, 127
        %v825 = vpop.permute.xlu0 %824
        %826 = vrot.lane.b32.xlu0 %v782, 127
        %v827 = vpop.permute.xlu0 %826
        %828 = vrot.lane.b32.xlu0 %v783, 127
        %v829 = vpop.permute.xlu0 %828
        %830 = vrot.lane.b32.xlu0 %v784, 127
        %v831 = vpop.permute.xlu0 %830
        %832 = vrot.lane.b32.xlu0 %v785, 127
        %v833 = vpop.permute.xlu0 %832
        %834 = vrot.lane.b32.xlu0 %v786, 127
        %v835 = vpop.permute.xlu0 %834
        %836 = vrot.lane.b32.xlu0 %v787, 127
        %v837 = vpop.permute.xlu0 %836
        %838 = vrot.lane.b32.xlu0 %v788, 127
        %v839 = vpop.permute.xlu0 %838
        %840 = vrot.lane.b32.xlu0 %v789, 127
        %v841 = vpop.permute.xlu0 %840
        %842 = vrot.lane.b32.xlu0 %v790, 127
        %v843 = vpop.permute.xlu0 %842
        %844 = vrot.lane.b32.xlu0 %v791, 127
        %v845 = vpop.permute.xlu0 %844
        %vm846 = vcmask 1039360
        %v847 = vsel %vm846, %v811, %v813
        %v848 = vsel %vm846, %v813, %v815
        %v849 = vsel %vm846, %v817, %v819
        %v850 = vsel %vm846, %v819, %v821
        %v851 = vsel %vm846, %v823, %v825
        %v852 = vsel %vm846, %v825, %v827
        %v853 = vsel %vm846, %v829, %v831
        %v854 = vsel %vm846, %v831, %v833
        %v855 = vsel %vm846, %v835, %v837
        %v856 = vsel %vm846, %v837, %v839
        %v857 = vsel %vm846, %v841, %v843
        %v858 = vsel %vm846, %v843, %v845
        %v871 = vadd.f32 %v714, %v847
        %v872 = vadd.f32 %v715, %v848
        %v873 = vadd.f32 %v716, %v849
        %v874 = vadd.f32 %v717, %v850
        %v875 = vadd.f32 %v718, %v851
        %v876 = vadd.f32 %v719, %v852
        %v877 = vadd.f32 %v720, %v853
        %v878 = vadd.f32 %v721, %v854
        %v879 = vadd.f32 %v722, %v855
        %v880 = vadd.f32 %v723, %v856
        %v881 = vadd.f32 %v724, %v857
        %v882 = vadd.f32 %v725, %v858
        %884 = vset.pattern.permute.xlu0 0
        %885 = vperm.xlu0 %884, %v602
        %v886 = vpop.permute.xlu0 %885
        %889 = vset.pattern.permute.xlu0 0
        %890 = vperm.xlu0 %889, %v603
        %v891 = vpop.permute.xlu0 %890
        %894 = vset.pattern.permute.xlu0 0
        %895 = vperm.xlu0 %894, %v604
        %v896 = vpop.permute.xlu0 %895
        %899 = vset.pattern.permute.xlu0 0
        %900 = vperm.xlu0 %899, %v605
        %v901 = vpop.permute.xlu0 %900
        %904 = vset.pattern.permute.xlu0 0
        %905 = vperm.xlu0 %904, %v606
        %v906 = vpop.permute.xlu0 %905
        %909 = vset.pattern.permute.xlu0 0
        %910 = vperm.xlu0 %909, %v607
        %v911 = vpop.permute.xlu0 %910
        %v913 = vmul.f32 %v726, %v886
        %v914 = vmul.f32 %v727, %v886
        %v915 = vmul.f32 %v728, %v886
        %v916 = vmul.f32 %v729, %v891
        %v917 = vmul.f32 %v730, %v891
        %v918 = vmul.f32 %v731, %v891
        %v919 = vmul.f32 %v732, %v896
        %v920 = vmul.f32 %v733, %v896
        %v921 = vmul.f32 %v734, %v896
        %v922 = vmul.f32 %v735, %v901
        %v923 = vmul.f32 %v736, %v901
        %v924 = vmul.f32 %v737, %v901
        %v925 = vmul.f32 %v738, %v906
        %v926 = vmul.f32 %v739, %v906
        %v927 = vmul.f32 %v740, %v906
        %v928 = vmul.f32 %v741, %v911
        %v929 = vmul.f32 %v742, %v911
        %v930 = vmul.f32 %v743, %v911
        %v931 = vsel %vm588, 1, 0
        %v932 = vsel %vm589, 1, 0
        %vm933 = vcmp.eq.s32.totalorder %v931, 1
        %vm934 = vcmp.eq.s32.totalorder %v932, 1
        %953 = vrot.lane.b32.xlu0 %v913, 126
        %v954 = vpop.permute.xlu0 %953
        %955 = vrot.lane.b32.xlu0 %v914, 126
        %v956 = vpop.permute.xlu0 %955
        %957 = vrot.lane.b32.xlu0 %v915, 126
        %v958 = vpop.permute.xlu0 %957
        %959 = vrot.lane.b32.xlu0 %v916, 126
        %v960 = vpop.permute.xlu0 %959
        %961 = vrot.lane.b32.xlu0 %v917, 126
        %v962 = vpop.permute.xlu0 %961
        %963 = vrot.lane.b32.xlu0 %v918, 126
        %v964 = vpop.permute.xlu0 %963
        %965 = vrot.lane.b32.xlu0 %v919, 126
        %v966 = vpop.permute.xlu0 %965
        %967 = vrot.lane.b32.xlu0 %v920, 126
        %v968 = vpop.permute.xlu0 %967
        %969 = vrot.lane.b32.xlu0 %v921, 126
        %v970 = vpop.permute.xlu0 %969
        %971 = vrot.lane.b32.xlu0 %v922, 126
        %v972 = vpop.permute.xlu0 %971
        %973 = vrot.lane.b32.xlu0 %v923, 126
        %v974 = vpop.permute.xlu0 %973
        %975 = vrot.lane.b32.xlu0 %v924, 126
        %v976 = vpop.permute.xlu0 %975
        %977 = vrot.lane.b32.xlu0 %v925, 126
        %v978 = vpop.permute.xlu0 %977
        %979 = vrot.lane.b32.xlu0 %v926, 126
        %v980 = vpop.permute.xlu0 %979
        %981 = vrot.lane.b32.xlu0 %v927, 126
        %v982 = vpop.permute.xlu0 %981
        %983 = vrot.lane.b32.xlu0 %v928, 126
        %v984 = vpop.permute.xlu0 %983
        %985 = vrot.lane.b32.xlu0 %v929, 126
        %v986 = vpop.permute.xlu0 %985
        %987 = vrot.lane.b32.xlu0 %v930, 126
        %v988 = vpop.permute.xlu0 %987
        %vm989 = vcmask 1031168
        %v990 = vsel %vm989, %v954, %v956
        %v991 = vsel %vm989, %v956, %v958
        %v992 = vsel %vm989, %v960, %v962
        %v993 = vsel %vm989, %v962, %v964
        %v994 = vsel %vm989, %v966, %v968
        %v995 = vsel %vm989, %v968, %v970
        %v996 = vsel %vm989, %v972, %v974
        %v997 = vsel %vm989, %v974, %v976
        %v998 = vsel %vm989, %v978, %v980
        %v999 = vsel %vm989, %v980, %v982
        %v1000 = vsel %vm989, %v984, %v986
        %v1001 = vsel %vm989, %v986, %v988
        %v1014 = vsel %vm933, %v990, 0.0
        %v1015 = vsel %vm934, %v991, 0.0
        %v1016 = vsel %vm933, %v992, 0.0
        %v1017 = vsel %vm934, %v993, 0.0
        %v1018 = vsel %vm933, %v994, 0.0
        %v1019 = vsel %vm934, %v995, 0.0
        %v1020 = vsel %vm933, %v996, 0.0
        %v1021 = vsel %vm934, %v997, 0.0
        %v1022 = vsel %vm933, %v998, 0.0
        %v1023 = vsel %vm934, %v999, 0.0
        %v1024 = vsel %vm933, %v1000, 0.0
        %v1025 = vsel %vm934, %v1001, 0.0
        %v1026 = vadd.f32 %v871, %v1014
        %v1027 = vadd.f32 %v872, %v1015
        %v1028 = vadd.f32 %v873, %v1016
        %v1029 = vadd.f32 %v874, %v1017
        %v1030 = vadd.f32 %v875, %v1018
        %v1031 = vadd.f32 %v876, %v1019
        %v1032 = vadd.f32 %v877, %v1020
        %v1033 = vadd.f32 %v878, %v1021
        %v1034 = vadd.f32 %v879, %v1022
        %v1035 = vadd.f32 %v880, %v1023
        %v1036 = vadd.f32 %v881, %v1024
        %v1037 = vadd.f32 %v882, %v1025
        %1039 = vset.pattern.permute.xlu0 0
        %1040 = vperm.xlu0 %1039, %v608
        %v1041 = vpop.permute.xlu0 %1040
        %1044 = vset.pattern.permute.xlu0 0
        %1045 = vperm.xlu0 %1044, %v609
        %v1046 = vpop.permute.xlu0 %1045
        %1049 = vset.pattern.permute.xlu0 0
        %1050 = vperm.xlu0 %1049, %v610
        %v1051 = vpop.permute.xlu0 %1050
        %1054 = vset.pattern.permute.xlu0 0
        %1055 = vperm.xlu0 %1054, %v611
        %v1056 = vpop.permute.xlu0 %1055
        %1059 = vset.pattern.permute.xlu0 0
        %1060 = vperm.xlu0 %1059, %v612
        %v1061 = vpop.permute.xlu0 %1060
        %1064 = vset.pattern.permute.xlu0 0
        %1065 = vperm.xlu0 %1064, %v613
        %v1066 = vpop.permute.xlu0 %1065
        %v1068 = vmul.f32 %v726, %v1041
        %v1069 = vmul.f32 %v727, %v1041
        %v1070 = vmul.f32 %v728, %v1041
        %v1071 = vmul.f32 %v729, %v1046
        %v1072 = vmul.f32 %v730, %v1046
        %v1073 = vmul.f32 %v731, %v1046
        %v1074 = vmul.f32 %v732, %v1051
        %v1075 = vmul.f32 %v733, %v1051
        %v1076 = vmul.f32 %v734, %v1051
        %v1077 = vmul.f32 %v735, %v1056
        %v1078 = vmul.f32 %v736, %v1056
        %v1079 = vmul.f32 %v737, %v1056
        %v1080 = vmul.f32 %v738, %v1061
        %v1081 = vmul.f32 %v739, %v1061
        %v1082 = vmul.f32 %v740, %v1061
        %v1083 = vmul.f32 %v741, %v1066
        %v1084 = vmul.f32 %v742, %v1066
        %v1085 = vmul.f32 %v743, %v1066
        %1104 = vrot.lane.b32.xlu0 %v1068, 112
        %v1105 = vpop.permute.xlu0 %1104
        %1106 = vrot.lane.b32.xlu0 %v1069, 112
        %v1107 = vpop.permute.xlu0 %1106
        %1108 = vrot.lane.b32.xlu0 %v1070, 112
        %v1109 = vpop.permute.xlu0 %1108
        %1110 = vrot.lane.b32.xlu0 %v1071, 112
        %v1111 = vpop.permute.xlu0 %1110
        %1112 = vrot.lane.b32.xlu0 %v1072, 112
        %v1113 = vpop.permute.xlu0 %1112
        %1114 = vrot.lane.b32.xlu0 %v1073, 112
        %v1115 = vpop.permute.xlu0 %1114
        %1116 = vrot.lane.b32.xlu0 %v1074, 112
        %v1117 = vpop.permute.xlu0 %1116
        %1118 = vrot.lane.b32.xlu0 %v1075, 112
        %v1119 = vpop.permute.xlu0 %1118
        %1120 = vrot.lane.b32.xlu0 %v1076, 112
        %v1121 = vpop.permute.xlu0 %1120
        %1122 = vrot.lane.b32.xlu0 %v1077, 112
        %v1123 = vpop.permute.xlu0 %1122
        %1124 = vrot.lane.b32.xlu0 %v1078, 112
        %v1125 = vpop.permute.xlu0 %1124
        %1126 = vrot.lane.b32.xlu0 %v1079, 112
        %v1127 = vpop.permute.xlu0 %1126
        %1128 = vrot.lane.b32.xlu0 %v1080, 112
        %v1129 = vpop.permute.xlu0 %1128
        %1130 = vrot.lane.b32.xlu0 %v1081, 112
        %v1131 = vpop.permute.xlu0 %1130
        %1132 = vrot.lane.b32.xlu0 %v1082, 112
        %v1133 = vpop.permute.xlu0 %1132
        %1134 = vrot.lane.b32.xlu0 %v1083, 112
        %v1135 = vpop.permute.xlu0 %1134
        %1136 = vrot.lane.b32.xlu0 %v1084, 112
        %v1137 = vpop.permute.xlu0 %1136
        %1138 = vrot.lane.b32.xlu0 %v1085, 112
        %v1139 = vpop.permute.xlu0 %1138
        %vm1140 = vcmask 916480
        %v1141 = vsel %vm1140, %v1105, %v1107
        %v1142 = vsel %vm1140, %v1107, %v1109
        %v1143 = vsel %vm1140, %v1111, %v1113
        %v1144 = vsel %vm1140, %v1113, %v1115
        %v1145 = vsel %vm1140, %v1117, %v1119
        %v1146 = vsel %vm1140, %v1119, %v1121
        %v1147 = vsel %vm1140, %v1123, %v1125
        %v1148 = vsel %vm1140, %v1125, %v1127
        %v1149 = vsel %vm1140, %v1129, %v1131
        %v1150 = vsel %vm1140, %v1131, %v1133
        %v1151 = vsel %vm1140, %v1135, %v1137
        %v1152 = vsel %vm1140, %v1137, %v1139
        %v1165 = vsel %vm700, %v1141, 0.0
        %v1166 = vsel %vm701, %v1142, 0.0
        %v1167 = vsel %vm700, %v1143, 0.0
        %v1168 = vsel %vm701, %v1144, 0.0
        %v1169 = vsel %vm700, %v1145, 0.0
        %v1170 = vsel %vm701, %v1146, 0.0
        %v1171 = vsel %vm700, %v1147, 0.0
        %v1172 = vsel %vm701, %v1148, 0.0
        %v1173 = vsel %vm700, %v1149, 0.0
        %v1174 = vsel %vm701, %v1150, 0.0
        %v1175 = vsel %vm700, %v1151, 0.0
        %v1176 = vsel %vm701, %v1152, 0.0
        %v1177 = vadd.f32 %v1026, %v1165
        %v1178 = vadd.f32 %v1027, %v1166
        %v1179 = vadd.f32 %v1028, %v1167
        %v1180 = vadd.f32 %v1029, %v1168
        %v1181 = vadd.f32 %v1030, %v1169
        %v1182 = vadd.f32 %v1031, %v1170
        %v1183 = vadd.f32 %v1032, %v1171
        %v1184 = vadd.f32 %v1033, %v1172
        %v1185 = vadd.f32 %v1034, %v1173
        %v1186 = vadd.f32 %v1035, %v1174
        %v1187 = vadd.f32 %v1036, %v1175
        %v1188 = vadd.f32 %v1037, %v1176
        %1190 = vset.pattern.permute.xlu0 0
        %1191 = vperm.xlu0 %1190, %v614
        %v1192 = vpop.permute.xlu0 %1191
        %1195 = vset.pattern.permute.xlu0 0
        %1196 = vperm.xlu0 %1195, %v615
        %v1197 = vpop.permute.xlu0 %1196
        %1200 = vset.pattern.permute.xlu0 0
        %1201 = vperm.xlu0 %1200, %v616
        %v1202 = vpop.permute.xlu0 %1201
        %1205 = vset.pattern.permute.xlu0 0
        %1206 = vperm.xlu0 %1205, %v617
        %v1207 = vpop.permute.xlu0 %1206
        %1210 = vset.pattern.permute.xlu0 0
        %1211 = vperm.xlu0 %1210, %v618
        %v1212 = vpop.permute.xlu0 %1211
        %1215 = vset.pattern.permute.xlu0 0
        %1216 = vperm.xlu0 %1215, %v619
        %v1217 = vpop.permute.xlu0 %1216
        %v1219 = vmul.f32 %v726, %v1192
        %v1220 = vmul.f32 %v727, %v1192
        %v1221 = vmul.f32 %v728, %v1192
        %v1222 = vmul.f32 %v729, %v1197
        %v1223 = vmul.f32 %v730, %v1197
        %v1224 = vmul.f32 %v731, %v1197
        %v1225 = vmul.f32 %v732, %v1202
        %v1226 = vmul.f32 %v733, %v1202
        %v1227 = vmul.f32 %v734, %v1202
        %v1228 = vmul.f32 %v735, %v1207
        %v1229 = vmul.f32 %v736, %v1207
        %v1230 = vmul.f32 %v737, %v1207
        %v1231 = vmul.f32 %v738, %v1212
        %v1232 = vmul.f32 %v739, %v1212
        %v1233 = vmul.f32 %v740, %v1212
        %v1234 = vmul.f32 %v741, %v1217
        %v1235 = vmul.f32 %v742, %v1217
        %v1236 = vmul.f32 %v743, %v1217
        %1255 = vrot.lane.b32.xlu0 %v1219, 111
        %v1256 = vpop.permute.xlu0 %1255
        %1257 = vrot.lane.b32.xlu0 %v1220, 111
        %v1258 = vpop.permute.xlu0 %1257
        %1259 = vrot.lane.b32.xlu0 %v1221, 111
        %v1260 = vpop.permute.xlu0 %1259
        %1261 = vrot.lane.b32.xlu0 %v1222, 111
        %v1262 = vpop.permute.xlu0 %1261
        %1263 = vrot.lane.b32.xlu0 %v1223, 111
        %v1264 = vpop.permute.xlu0 %1263
        %1265 = vrot.lane.b32.xlu0 %v1224, 111
        %v1266 = vpop.permute.xlu0 %1265
        %1267 = vrot.lane.b32.xlu0 %v1225, 111
        %v1268 = vpop.permute.xlu0 %1267
        %1269 = vrot.lane.b32.xlu0 %v1226, 111
        %v1270 = vpop.permute.xlu0 %1269
        %1271 = vrot.lane.b32.xlu0 %v1227, 111
        %v1272 = vpop.permute.xlu0 %1271
        %1273 = vrot.lane.b32.xlu0 %v1228, 111
        %v1274 = vpop.permute.xlu0 %1273
        %1275 = vrot.lane.b32.xlu0 %v1229, 111
        %v1276 = vpop.permute.xlu0 %1275
        %1277 = vrot.lane.b32.xlu0 %v1230, 111
        %v1278 = vpop.permute.xlu0 %1277
        %1279 = vrot.lane.b32.xlu0 %v1231, 111
        %v1280 = vpop.permute.xlu0 %1279
        %1281 = vrot.lane.b32.xlu0 %v1232, 111
        %v1282 = vpop.permute.xlu0 %1281
        %1283 = vrot.lane.b32.xlu0 %v1233, 111
        %v1284 = vpop.permute.xlu0 %1283
        %1285 = vrot.lane.b32.xlu0 %v1234, 111
        %v1286 = vpop.permute.xlu0 %1285
        %1287 = vrot.lane.b32.xlu0 %v1235, 111
        %v1288 = vpop.permute.xlu0 %1287
        %1289 = vrot.lane.b32.xlu0 %v1236, 111
        %v1290 = vpop.permute.xlu0 %1289
        %vm1291 = vcmask 908288
        %v1292 = vsel %vm1291, %v1256, %v1258
        %v1293 = vsel %vm1291, %v1258, %v1260
        %v1294 = vsel %vm1291, %v1262, %v1264
        %v1295 = vsel %vm1291, %v1264, %v1266
        %v1296 = vsel %vm1291, %v1268, %v1270
        %v1297 = vsel %vm1291, %v1270, %v1272
        %v1298 = vsel %vm1291, %v1274, %v1276
        %v1299 = vsel %vm1291, %v1276, %v1278
        %v1300 = vsel %vm1291, %v1280, %v1282
        %v1301 = vsel %vm1291, %v1282, %v1284
        %v1302 = vsel %vm1291, %v1286, %v1288
        %v1303 = vsel %vm1291, %v1288, %v1290
        %v1316 = vadd.f32 %v1177, %v1292
        %v1317 = vadd.f32 %v1178, %v1293
        %v1318 = vadd.f32 %v1179, %v1294
        %v1319 = vadd.f32 %v1180, %v1295
        %v1320 = vadd.f32 %v1181, %v1296
        %v1321 = vadd.f32 %v1182, %v1297
        %v1322 = vadd.f32 %v1183, %v1298
        %v1323 = vadd.f32 %v1184, %v1299
        %v1324 = vadd.f32 %v1185, %v1300
        %v1325 = vadd.f32 %v1186, %v1301
        %v1326 = vadd.f32 %v1187, %v1302
        %v1327 = vadd.f32 %v1188, %v1303
        %1329 = vset.pattern.permute.xlu0 0
        %1330 = vperm.xlu0 %1329, %v620
        %v1331 = vpop.permute.xlu0 %1330
        %1334 = vset.pattern.permute.xlu0 0
        %1335 = vperm.xlu0 %1334, %v621
        %v1336 = vpop.permute.xlu0 %1335
        %1339 = vset.pattern.permute.xlu0 0
        %1340 = vperm.xlu0 %1339, %v622
        %v1341 = vpop.permute.xlu0 %1340
        %1344 = vset.pattern.permute.xlu0 0
        %1345 = vperm.xlu0 %1344, %v623
        %v1346 = vpop.permute.xlu0 %1345
        %1349 = vset.pattern.permute.xlu0 0
        %1350 = vperm.xlu0 %1349, %v624
        %v1351 = vpop.permute.xlu0 %1350
        %1354 = vset.pattern.permute.xlu0 0
        %1355 = vperm.xlu0 %1354, %v625
        %v1356 = vpop.permute.xlu0 %1355
        %v1358 = vmul.f32 %v726, %v1331
        %v1359 = vmul.f32 %v727, %v1331
        %v1360 = vmul.f32 %v728, %v1331
        %v1361 = vmul.f32 %v729, %v1336
        %v1362 = vmul.f32 %v730, %v1336
        %v1363 = vmul.f32 %v731, %v1336
        %v1364 = vmul.f32 %v732, %v1341
        %v1365 = vmul.f32 %v733, %v1341
        %v1366 = vmul.f32 %v734, %v1341
        %v1367 = vmul.f32 %v735, %v1346
        %v1368 = vmul.f32 %v736, %v1346
        %v1369 = vmul.f32 %v737, %v1346
        %v1370 = vmul.f32 %v738, %v1351
        %v1371 = vmul.f32 %v739, %v1351
        %v1372 = vmul.f32 %v740, %v1351
        %v1373 = vmul.f32 %v741, %v1356
        %v1374 = vmul.f32 %v742, %v1356
        %v1375 = vmul.f32 %v743, %v1356
        %1394 = vrot.lane.b32.xlu0 %v1358, 110
        %v1395 = vpop.permute.xlu0 %1394
        %1396 = vrot.lane.b32.xlu0 %v1359, 110
        %v1397 = vpop.permute.xlu0 %1396
        %1398 = vrot.lane.b32.xlu0 %v1360, 110
        %v1399 = vpop.permute.xlu0 %1398
        %1400 = vrot.lane.b32.xlu0 %v1361, 110
        %v1401 = vpop.permute.xlu0 %1400
        %1402 = vrot.lane.b32.xlu0 %v1362, 110
        %v1403 = vpop.permute.xlu0 %1402
        %1404 = vrot.lane.b32.xlu0 %v1363, 110
        %v1405 = vpop.permute.xlu0 %1404
        %1406 = vrot.lane.b32.xlu0 %v1364, 110
        %v1407 = vpop.permute.xlu0 %1406
        %1408 = vrot.lane.b32.xlu0 %v1365, 110
        %v1409 = vpop.permute.xlu0 %1408
        %1410 = vrot.lane.b32.xlu0 %v1366, 110
        %v1411 = vpop.permute.xlu0 %1410
        %1412 = vrot.lane.b32.xlu0 %v1367, 110
        %v1413 = vpop.permute.xlu0 %1412
        %1414 = vrot.lane.b32.xlu0 %v1368, 110
        %v1415 = vpop.permute.xlu0 %1414
        %1416 = vrot.lane.b32.xlu0 %v1369, 110
        %v1417 = vpop.permute.xlu0 %1416
        %1418 = vrot.lane.b32.xlu0 %v1370, 110
        %v1419 = vpop.permute.xlu0 %1418
        %1420 = vrot.lane.b32.xlu0 %v1371, 110
        %v1421 = vpop.permute.xlu0 %1420
        %1422 = vrot.lane.b32.xlu0 %v1372, 110
        %v1423 = vpop.permute.xlu0 %1422
        %1424 = vrot.lane.b32.xlu0 %v1373, 110
        %v1425 = vpop.permute.xlu0 %1424
        %1426 = vrot.lane.b32.xlu0 %v1374, 110
        %v1427 = vpop.permute.xlu0 %1426
        %1428 = vrot.lane.b32.xlu0 %v1375, 110
        %v1429 = vpop.permute.xlu0 %1428
        %vm1430 = vcmask 900096
        %v1431 = vsel %vm1430, %v1395, %v1397
        %v1432 = vsel %vm1430, %v1397, %v1399
        %v1433 = vsel %vm1430, %v1401, %v1403
        %v1434 = vsel %vm1430, %v1403, %v1405
        %v1435 = vsel %vm1430, %v1407, %v1409
        %v1436 = vsel %vm1430, %v1409, %v1411
        %v1437 = vsel %vm1430, %v1413, %v1415
        %v1438 = vsel %vm1430, %v1415, %v1417
        %v1439 = vsel %vm1430, %v1419, %v1421
        %v1440 = vsel %vm1430, %v1421, %v1423
        %v1441 = vsel %vm1430, %v1425, %v1427
        %v1442 = vsel %vm1430, %v1427, %v1429
        %v1455 = vsel %vm933, %v1431, 0.0
        %v1456 = vsel %vm934, %v1432, 0.0
        %v1457 = vsel %vm933, %v1433, 0.0
        %v1458 = vsel %vm934, %v1434, 0.0
        %v1459 = vsel %vm933, %v1435, 0.0
        %v1460 = vsel %vm934, %v1436, 0.0
        %v1461 = vsel %vm933, %v1437, 0.0
        %v1462 = vsel %vm934, %v1438, 0.0
        %v1463 = vsel %vm933, %v1439, 0.0
        %v1464 = vsel %vm934, %v1440, 0.0
        %v1465 = vsel %vm933, %v1441, 0.0
        %v1466 = vsel %vm934, %v1442, 0.0
        %v1467 = vadd.f32 %v1316, %v1455
        %v1468 = vadd.f32 %v1317, %v1456
        %v1469 = vadd.f32 %v1318, %v1457
        %v1470 = vadd.f32 %v1319, %v1458
        %v1471 = vadd.f32 %v1320, %v1459
        %v1472 = vadd.f32 %v1321, %v1460
        %v1473 = vadd.f32 %v1322, %v1461
        %v1474 = vadd.f32 %v1323, %v1462
        %v1475 = vadd.f32 %v1324, %v1463
        %v1476 = vadd.f32 %v1325, %v1464
        %v1477 = vadd.f32 %v1326, %v1465
        %v1478 = vadd.f32 %v1327, %v1466
        %1480 = vset.pattern.permute.xlu0 0
        %1481 = vperm.xlu0 %1480, %v626
        %v1482 = vpop.permute.xlu0 %1481
        %1485 = vset.pattern.permute.xlu0 0
        %1486 = vperm.xlu0 %1485, %v627
        %v1487 = vpop.permute.xlu0 %1486
        %1490 = vset.pattern.permute.xlu0 0
        %1491 = vperm.xlu0 %1490, %v628
        %v1492 = vpop.permute.xlu0 %1491
        %1495 = vset.pattern.permute.xlu0 0
        %1496 = vperm.xlu0 %1495, %v629
        %v1497 = vpop.permute.xlu0 %1496
        %1500 = vset.pattern.permute.xlu0 0
        %1501 = vperm.xlu0 %1500, %v630
        %v1502 = vpop.permute.xlu0 %1501
        %1505 = vset.pattern.permute.xlu0 0
        %1506 = vperm.xlu0 %1505, %v631
        %v1507 = vpop.permute.xlu0 %1506
        %v1509 = vmul.f32 %v726, %v1482
        %v1510 = vmul.f32 %v727, %v1482
        %v1511 = vmul.f32 %v728, %v1482
        %v1512 = vmul.f32 %v729, %v1487
        %v1513 = vmul.f32 %v730, %v1487
        %v1514 = vmul.f32 %v731, %v1487
        %v1515 = vmul.f32 %v732, %v1492
        %v1516 = vmul.f32 %v733, %v1492
        %v1517 = vmul.f32 %v734, %v1492
        %v1518 = vmul.f32 %v735, %v1497
        %v1519 = vmul.f32 %v736, %v1497
        %v1520 = vmul.f32 %v737, %v1497
        %v1521 = vmul.f32 %v738, %v1502
        %v1522 = vmul.f32 %v739, %v1502
        %v1523 = vmul.f32 %v740, %v1502
        %v1524 = vmul.f32 %v741, %v1507
        %v1525 = vmul.f32 %v742, %v1507
        %v1526 = vmul.f32 %v743, %v1507
        %1545 = vrot.lane.b32.xlu0 %v1509, 96
        %v1546 = vpop.permute.xlu0 %1545
        %1547 = vrot.lane.b32.xlu0 %v1510, 96
        %v1548 = vpop.permute.xlu0 %1547
        %1549 = vrot.lane.b32.xlu0 %v1511, 96
        %v1550 = vpop.permute.xlu0 %1549
        %1551 = vrot.lane.b32.xlu0 %v1512, 96
        %v1552 = vpop.permute.xlu0 %1551
        %1553 = vrot.lane.b32.xlu0 %v1513, 96
        %v1554 = vpop.permute.xlu0 %1553
        %1555 = vrot.lane.b32.xlu0 %v1514, 96
        %v1556 = vpop.permute.xlu0 %1555
        %1557 = vrot.lane.b32.xlu0 %v1515, 96
        %v1558 = vpop.permute.xlu0 %1557
        %1559 = vrot.lane.b32.xlu0 %v1516, 96
        %v1560 = vpop.permute.xlu0 %1559
        %1561 = vrot.lane.b32.xlu0 %v1517, 96
        %v1562 = vpop.permute.xlu0 %1561
        %1563 = vrot.lane.b32.xlu0 %v1518, 96
        %v1564 = vpop.permute.xlu0 %1563
        %1565 = vrot.lane.b32.xlu0 %v1519, 96
        %v1566 = vpop.permute.xlu0 %1565
        %1567 = vrot.lane.b32.xlu0 %v1520, 96
        %v1568 = vpop.permute.xlu0 %1567
        %1569 = vrot.lane.b32.xlu0 %v1521, 96
        %v1570 = vpop.permute.xlu0 %1569
        %1571 = vrot.lane.b32.xlu0 %v1522, 96
        %v1572 = vpop.permute.xlu0 %1571
        %1573 = vrot.lane.b32.xlu0 %v1523, 96
        %v1574 = vpop.permute.xlu0 %1573
        %1575 = vrot.lane.b32.xlu0 %v1524, 96
        %v1576 = vpop.permute.xlu0 %1575
        %1577 = vrot.lane.b32.xlu0 %v1525, 96
        %v1578 = vpop.permute.xlu0 %1577
        %1579 = vrot.lane.b32.xlu0 %v1526, 96
        %v1580 = vpop.permute.xlu0 %1579
        %vm1581 = vcmask 785408
        %v1582 = vsel %vm1581, %v1546, %v1548
        %v1583 = vsel %vm1581, %v1548, %v1550
        %v1584 = vsel %vm1581, %v1552, %v1554
        %v1585 = vsel %vm1581, %v1554, %v1556
        %v1586 = vsel %vm1581, %v1558, %v1560
        %v1587 = vsel %vm1581, %v1560, %v1562
        %v1588 = vsel %vm1581, %v1564, %v1566
        %v1589 = vsel %vm1581, %v1566, %v1568
        %v1590 = vsel %vm1581, %v1570, %v1572
        %v1591 = vsel %vm1581, %v1572, %v1574
        %v1592 = vsel %vm1581, %v1576, %v1578
        %v1593 = vsel %vm1581, %v1578, %v1580
        %v1606 = vsel %vm700, %v1582, 0.0
        %v1607 = vsel %vm701, %v1583, 0.0
        %v1608 = vsel %vm700, %v1584, 0.0
        %v1609 = vsel %vm701, %v1585, 0.0
        %v1610 = vsel %vm700, %v1586, 0.0
        %v1611 = vsel %vm701, %v1587, 0.0
        %v1612 = vsel %vm700, %v1588, 0.0
        %v1613 = vsel %vm701, %v1589, 0.0
        %v1614 = vsel %vm700, %v1590, 0.0
        %v1615 = vsel %vm701, %v1591, 0.0
        %v1616 = vsel %vm700, %v1592, 0.0
        %v1617 = vsel %vm701, %v1593, 0.0
        %v1618 = vadd.f32 %v1467, %v1606
        %v1619 = vadd.f32 %v1468, %v1607
        %v1620 = vadd.f32 %v1469, %v1608
        %v1621 = vadd.f32 %v1470, %v1609
        %v1622 = vadd.f32 %v1471, %v1610
        %v1623 = vadd.f32 %v1472, %v1611
        %v1624 = vadd.f32 %v1473, %v1612
        %v1625 = vadd.f32 %v1474, %v1613
        %v1626 = vadd.f32 %v1475, %v1614
        %v1627 = vadd.f32 %v1476, %v1615
        %v1628 = vadd.f32 %v1477, %v1616
        %v1629 = vadd.f32 %v1478, %v1617
        %1631 = vset.pattern.permute.xlu0 0
        %1632 = vperm.xlu0 %1631, %v632
        %v1633 = vpop.permute.xlu0 %1632
        %1636 = vset.pattern.permute.xlu0 0
        %1637 = vperm.xlu0 %1636, %v633
        %v1638 = vpop.permute.xlu0 %1637
        %1641 = vset.pattern.permute.xlu0 0
        %1642 = vperm.xlu0 %1641, %v634
        %v1643 = vpop.permute.xlu0 %1642
        %1646 = vset.pattern.permute.xlu0 0
        %1647 = vperm.xlu0 %1646, %v635
        %v1648 = vpop.permute.xlu0 %1647
        %1651 = vset.pattern.permute.xlu0 0
        %1652 = vperm.xlu0 %1651, %v636
        %v1653 = vpop.permute.xlu0 %1652
        %1656 = vset.pattern.permute.xlu0 0
        %1657 = vperm.xlu0 %1656, %v637
        %v1658 = vpop.permute.xlu0 %1657
        %v1660 = vmul.f32 %v726, %v1633
        %v1661 = vmul.f32 %v727, %v1633
        %v1662 = vmul.f32 %v728, %v1633
        %v1663 = vmul.f32 %v729, %v1638
        %v1664 = vmul.f32 %v730, %v1638
        %v1665 = vmul.f32 %v731, %v1638
        %v1666 = vmul.f32 %v732, %v1643
        %v1667 = vmul.f32 %v733, %v1643
        %v1668 = vmul.f32 %v734, %v1643
        %v1669 = vmul.f32 %v735, %v1648
        %v1670 = vmul.f32 %v736, %v1648
        %v1671 = vmul.f32 %v737, %v1648
        %v1672 = vmul.f32 %v738, %v1653
        %v1673 = vmul.f32 %v739, %v1653
        %v1674 = vmul.f32 %v740, %v1653
        %v1675 = vmul.f32 %v741, %v1658
        %v1676 = vmul.f32 %v742, %v1658
        %v1677 = vmul.f32 %v743, %v1658
        %1696 = vrot.lane.b32.xlu0 %v1660, 95
        %v1697 = vpop.permute.xlu0 %1696
        %1698 = vrot.lane.b32.xlu0 %v1661, 95
        %v1699 = vpop.permute.xlu0 %1698
        %1700 = vrot.lane.b32.xlu0 %v1662, 95
        %v1701 = vpop.permute.xlu0 %1700
        %1702 = vrot.lane.b32.xlu0 %v1663, 95
        %v1703 = vpop.permute.xlu0 %1702
        %1704 = vrot.lane.b32.xlu0 %v1664, 95
        %v1705 = vpop.permute.xlu0 %1704
        %1706 = vrot.lane.b32.xlu0 %v1665, 95
        %v1707 = vpop.permute.xlu0 %1706
        %1708 = vrot.lane.b32.xlu0 %v1666, 95
        %v1709 = vpop.permute.xlu0 %1708
        %1710 = vrot.lane.b32.xlu0 %v1667, 95
        %v1711 = vpop.permute.xlu0 %1710
        %1712 = vrot.lane.b32.xlu0 %v1668, 95
        %v1713 = vpop.permute.xlu0 %1712
        %1714 = vrot.lane.b32.xlu0 %v1669, 95
        %v1715 = vpop.permute.xlu0 %1714
        %1716 = vrot.lane.b32.xlu0 %v1670, 95
        %v1717 = vpop.permute.xlu0 %1716
        %1718 = vrot.lane.b32.xlu0 %v1671, 95
        %v1719 = vpop.permute.xlu0 %1718
        %1720 = vrot.lane.b32.xlu0 %v1672, 95
        %v1721 = vpop.permute.xlu0 %1720
        %1722 = vrot.lane.b32.xlu0 %v1673, 95
        %v1723 = vpop.permute.xlu0 %1722
        %1724 = vrot.lane.b32.xlu0 %v1674, 95
        %v1725 = vpop.permute.xlu0 %1724
        %1726 = vrot.lane.b32.xlu0 %v1675, 95
        %v1727 = vpop.permute.xlu0 %1726
        %1728 = vrot.lane.b32.xlu0 %v1676, 95
        %v1729 = vpop.permute.xlu0 %1728
        %1730 = vrot.lane.b32.xlu0 %v1677, 95
        %v1731 = vpop.permute.xlu0 %1730
        %vm1732 = vcmask 777216
        %v1733 = vsel %vm1732, %v1697, %v1699
        %v1734 = vsel %vm1732, %v1699, %v1701
        %v1735 = vsel %vm1732, %v1703, %v1705
        %v1736 = vsel %vm1732, %v1705, %v1707
        %v1737 = vsel %vm1732, %v1709, %v1711
        %v1738 = vsel %vm1732, %v1711, %v1713
        %v1739 = vsel %vm1732, %v1715, %v1717
        %v1740 = vsel %vm1732, %v1717, %v1719
        %v1741 = vsel %vm1732, %v1721, %v1723
        %v1742 = vsel %vm1732, %v1723, %v1725
        %v1743 = vsel %vm1732, %v1727, %v1729
        %v1744 = vsel %vm1732, %v1729, %v1731
        %v1757 = vadd.f32 %v1618, %v1733
        %v1758 = vadd.f32 %v1619, %v1734
        %v1759 = vadd.f32 %v1620, %v1735
        %v1760 = vadd.f32 %v1621, %v1736
        %v1761 = vadd.f32 %v1622, %v1737
        %v1762 = vadd.f32 %v1623, %v1738
        %v1763 = vadd.f32 %v1624, %v1739
        %v1764 = vadd.f32 %v1625, %v1740
        %v1765 = vadd.f32 %v1626, %v1741
        %v1766 = vadd.f32 %v1627, %v1742
        %v1767 = vadd.f32 %v1628, %v1743
        %v1768 = vadd.f32 %v1629, %v1744
        %1770 = vset.pattern.permute.xlu0 0
        %1771 = vperm.xlu0 %1770, %v638
        %v1772 = vpop.permute.xlu0 %1771
        %1775 = vset.pattern.permute.xlu0 0
        %1776 = vperm.xlu0 %1775, %v639
        %v1777 = vpop.permute.xlu0 %1776
        %1780 = vset.pattern.permute.xlu0 0
        %1781 = vperm.xlu0 %1780, %v640
        %v1782 = vpop.permute.xlu0 %1781
        %1785 = vset.pattern.permute.xlu0 0
        %1786 = vperm.xlu0 %1785, %v641
        %v1787 = vpop.permute.xlu0 %1786
        %1790 = vset.pattern.permute.xlu0 0
        %1791 = vperm.xlu0 %1790, %v642
        %v1792 = vpop.permute.xlu0 %1791
        %1795 = vset.pattern.permute.xlu0 0
        %1796 = vperm.xlu0 %1795, %v643
        %v1797 = vpop.permute.xlu0 %1796
        %v1799 = vmul.f32 %v726, %v1772
        %v1800 = vmul.f32 %v727, %v1772
        %v1801 = vmul.f32 %v728, %v1772
        %v1802 = vmul.f32 %v729, %v1777
        %v1803 = vmul.f32 %v730, %v1777
        %v1804 = vmul.f32 %v731, %v1777
        %v1805 = vmul.f32 %v732, %v1782
        %v1806 = vmul.f32 %v733, %v1782
        %v1807 = vmul.f32 %v734, %v1782
        %v1808 = vmul.f32 %v735, %v1787
        %v1809 = vmul.f32 %v736, %v1787
        %v1810 = vmul.f32 %v737, %v1787
        %v1811 = vmul.f32 %v738, %v1792
        %v1812 = vmul.f32 %v739, %v1792
        %v1813 = vmul.f32 %v740, %v1792
        %v1814 = vmul.f32 %v741, %v1797
        %v1815 = vmul.f32 %v742, %v1797
        %v1816 = vmul.f32 %v743, %v1797
        %1835 = vrot.lane.b32.xlu0 %v1799, 94
        %v1836 = vpop.permute.xlu0 %1835
        %1837 = vrot.lane.b32.xlu0 %v1800, 94
        %v1838 = vpop.permute.xlu0 %1837
        %1839 = vrot.lane.b32.xlu0 %v1801, 94
        %v1840 = vpop.permute.xlu0 %1839
        %1841 = vrot.lane.b32.xlu0 %v1802, 94
        %v1842 = vpop.permute.xlu0 %1841
        %1843 = vrot.lane.b32.xlu0 %v1803, 94
        %v1844 = vpop.permute.xlu0 %1843
        %1845 = vrot.lane.b32.xlu0 %v1804, 94
        %v1846 = vpop.permute.xlu0 %1845
        %1847 = vrot.lane.b32.xlu0 %v1805, 94
        %v1848 = vpop.permute.xlu0 %1847
        %1849 = vrot.lane.b32.xlu0 %v1806, 94
        %v1850 = vpop.permute.xlu0 %1849
        %1851 = vrot.lane.b32.xlu0 %v1807, 94
        %v1852 = vpop.permute.xlu0 %1851
        %1853 = vrot.lane.b32.xlu0 %v1808, 94
        %v1854 = vpop.permute.xlu0 %1853
        %1855 = vrot.lane.b32.xlu0 %v1809, 94
        %v1856 = vpop.permute.xlu0 %1855
        %1857 = vrot.lane.b32.xlu0 %v1810, 94
        %v1858 = vpop.permute.xlu0 %1857
        %1859 = vrot.lane.b32.xlu0 %v1811, 94
        %v1860 = vpop.permute.xlu0 %1859
        %1861 = vrot.lane.b32.xlu0 %v1812, 94
        %v1862 = vpop.permute.xlu0 %1861
        %1863 = vrot.lane.b32.xlu0 %v1813, 94
        %v1864 = vpop.permute.xlu0 %1863
        %1865 = vrot.lane.b32.xlu0 %v1814, 94
        %v1866 = vpop.permute.xlu0 %1865
        %1867 = vrot.lane.b32.xlu0 %v1815, 94
        %v1868 = vpop.permute.xlu0 %1867
        %1869 = vrot.lane.b32.xlu0 %v1816, 94
        %v1870 = vpop.permute.xlu0 %1869
        %vm1871 = vcmask 769024
        %v1872 = vsel %vm1871, %v1836, %v1838
        %v1873 = vsel %vm1871, %v1838, %v1840
        %v1874 = vsel %vm1871, %v1842, %v1844
        %v1875 = vsel %vm1871, %v1844, %v1846
        %v1876 = vsel %vm1871, %v1848, %v1850
        %v1877 = vsel %vm1871, %v1850, %v1852
        %v1878 = vsel %vm1871, %v1854, %v1856
        %v1879 = vsel %vm1871, %v1856, %v1858
        %v1880 = vsel %vm1871, %v1860, %v1862
        %v1881 = vsel %vm1871, %v1862, %v1864
        %v1882 = vsel %vm1871, %v1866, %v1868
        %v1883 = vsel %vm1871, %v1868, %v1870
        %v1896 = vsel %vm933, %v1872, 0.0
        %v1897 = vsel %vm934, %v1873, 0.0
        %v1898 = vsel %vm933, %v1874, 0.0
        %v1899 = vsel %vm934, %v1875, 0.0
        %v1900 = vsel %vm933, %v1876, 0.0
        %v1901 = vsel %vm934, %v1877, 0.0
        %v1902 = vsel %vm933, %v1878, 0.0
        %v1903 = vsel %vm934, %v1879, 0.0
        %v1904 = vsel %vm933, %v1880, 0.0
        %v1905 = vsel %vm934, %v1881, 0.0
        %v1906 = vsel %vm933, %v1882, 0.0
        %v1907 = vsel %vm934, %v1883, 0.0
        %v1908 = vadd.f32 %v1757, %v1896
        %v1909 = vadd.f32 %v1758, %v1897
        %v1910 = vadd.f32 %v1759, %v1898
        %v1911 = vadd.f32 %v1760, %v1899
        %v1912 = vadd.f32 %v1761, %v1900
        %v1913 = vadd.f32 %v1762, %v1901
        %v1914 = vadd.f32 %v1763, %v1902
        %v1915 = vadd.f32 %v1764, %v1903
        %v1916 = vadd.f32 %v1765, %v1904
        %v1917 = vadd.f32 %v1766, %v1905
        %v1918 = vadd.f32 %v1767, %v1906
        %v1919 = vadd.f32 %v1768, %v1907
        %1920 = vst [vmem:[%s304] sm:$0xff] %v1908
        %1921 = vst [vmem:[%s304 + $0x8] sm:$0xff] %v1909
        %1922 = vst [vmem:[%s304 + $0x10] sm:$0xff] %v1910
        %1923 = vst [vmem:[%s304 + $0x18] sm:$0xff] %v1911
        %1924 = vst [vmem:[%s304 + $0x20] sm:$0xff] %v1912
        %1925 = vst [vmem:[%s304 + $0x28] sm:$0xff] %v1913
        %1926 = vst [vmem:[%s304 + $0x30] sm:$0xff] %v1914
        %1927 = vst [vmem:[%s304 + $0x38] sm:$0xff] %v1915
        %1928 = vst [vmem:[%s304 + $0x40] sm:$0xff] %v1916
        %1929 = vst [vmem:[%s304 + $0x48] sm:$0xff] %v1917
        %1930 = vst [vmem:[%s304 + $0x50] sm:$0xff] %v1918
        %1931 = vst [vmem:[%s304 + $0x58] sm:$0xff] %v1919
        %v1932 = vmul.f32 %v1908, %v1908
        %v1933 = vmul.f32 %v1909, %v1909
        %vm1934 = vcmask 1043456
        %v1935 = vsel %vm1934, %v1932, 0.0
        %v1936 = vsel %vm1934, %v1933, 0.0
        %v1937 = vadd.f32 %v1935, %v1936
        %1938 = vadd.xlane.f32.xlu0 %v1937
        %v1939 = vpop.xlane.xlu0 %1938
        %v1940 = vrsqrt.pop %v1939
        %v1941 = vmul.f32 %v1939, %v1940
        %vm1942 = vcmp.eq.f32.partialorder %v1939, inf
        %v1943 = vsel %vm1942, %v1939, %v1941
        %vm1944 = vcmp.eq.f32.partialorder %v1939, 0.0
        %v1945 = vand.u32 %v1939, 2147483648
        %v1946 = vsel %vm1944, %v1945, %v1943
        %v1947 = vmax.f32 %v1946, 1e-12
        %v1948 = vrcp.pop %v1947
        %v1949 = vmul.f32 %v1908, %v1948
        %v1950 = vmul.f32 %v1909, %v1948
        %v1951 = vmul.f32 %v1912, %v1912
        %v1952 = vmul.f32 %v1913, %v1913
        %v1953 = vsel %vm1934, %v1951, 0.0
        %v1954 = vsel %vm1934, %v1952, 0.0
        %v1955 = vadd.f32 %v1953, %v1954
        %1956 = vadd.xlane.f32.xlu0 %v1955
        %v1957 = vpop.xlane.xlu0 %1956
        %v1958 = vrsqrt.pop %v1957
        %v1959 = vmul.f32 %v1957, %v1958
        %vm1960 = vcmp.eq.f32.partialorder %v1957, inf
        %v1961 = vsel %vm1960, %v1957, %v1959
        %vm1962 = vcmp.eq.f32.partialorder %v1957, 0.0
        %v1963 = vand.u32 %v1957, 2147483648
        %v1964 = vsel %vm1962, %v1963, %v1961
        %v1965 = vmax.f32 %v1964, 1e-12
        %v1966 = vrcp.pop %v1965
        %v1967 = vmul.f32 %v1912, %v1966
        %v1968 = vmul.f32 %v1913, %v1966
        %1969 = vmatprep.subr.mxu0 %v1968
        %1970 = vmatpush1.xpose.msra.mxu0 %v1967
        %1971 = vmatprep.subr.mxu0 0.0
        %1972 = vmatpush1.xpose.msra.mxu0 0.0
        %1973 = vmatprep.subr.mxu0 0.0
        %1974 = vmatpush1.xpose.msra.mxu0 0.0
        %1975 = vmatprep.subr.mxu0 0.0
        %1976 = vmatpush1.xpose.msra.mxu0 0.0
        %1977 = vmatprep.subr.mxu0 0.0
        %1978 = vmatpush1.xpose.msra.mxu0 0.0
        %1979 = vmatprep.subr.mxu0 0.0
        %1980 = vmatpush1.xpose.msra.mxu0 0.0
        %1981 = vmatprep.subr.mxu0 0.0
        %1982 = vmatpush1.xpose.msra.mxu0 0.0
        %1983 = vmatprep.subr.mxu0 0.0
        %1984 = vmatpush1.xpose.msra.mxu0 0.0
        %1985 = vmatprep.subr.mxu0 0.0
        %1986 = vmatpush1.xpose.msra.mxu0 0.0
        %1987 = vmatprep.subr.mxu0 0.0
        %1988 = vmatpush1.xpose.msra.mxu0 0.0
        %1989 = vmatprep.subr.mxu0 0.0
        %1990 = vmatpush1.xpose.msra.mxu0 0.0
        %1991 = vmatprep.subr.mxu0 0.0
        %1992 = vmatpush1.xpose.msra.mxu0 0.0
        %1993 = vmatprep.subr.mxu0 0.0
        %1994 = vmatpush1.xpose.msra.mxu0 0.0
        %1995 = vmatprep.subr.mxu0 0.0
        %1996 = vmatpush1.xpose.msra.mxu0 0.0
        %1997 = vmatprep.subr.mxu0 0.0
        %1998 = vmatpush1.xpose.msra.mxu0 0.0
        %1999 = vmatprep.subr.mxu0 0.0
        %2000 = vmatpush1.xpose.msra.mxu0 0.0
        %2001 = vmatprep.subr.mxu0 0.0
        %2002 = vmatpush1.xpose.msra.mxu0 0.0
        %2003 = vmatprep.subr.mxu0 0.0
        %2004 = vmatpush1.xpose.msra.mxu0 0.0
        %2005 = vmatprep.subr.mxu0 0.0
        %2006 = vmatpush1.xpose.msra.mxu0 0.0
        %2007 = vmatprep.subr.mxu0 0.0
        %2008 = vmatpush1.xpose.msra.mxu0 0.0
        %2009 = vmatprep.subr.mxu0 0.0
        %2010 = vmatpush1.xpose.msra.mxu0 0.0
        %2011 = vmatprep.subr.mxu0 0.0
        %2012 = vmatpush1.xpose.msra.mxu0 0.0
        %2013 = vmatprep.subr.mxu0 0.0
        %2014 = vmatpush1.xpose.msra.mxu0 0.0
        %2015 = vmatprep.subr.mxu0 0.0
        %2016 = vmatpush1.xpose.msra.mxu0 0.0
        %2017 = vmatprep.subr.mxu0 0.0
        %2018 = vmatpush1.xpose.msra.mxu0 0.0
        %2019 = vmatprep.subr.mxu0 0.0
        %2020 = vmatpush1.xpose.msra.mxu0 0.0
        %2021 = vmatprep.subr.mxu0 0.0
        %2022 = vmatpush1.xpose.msra.mxu0 0.0
        %2023 = vmatprep.subr.mxu0 0.0
        %2024 = vmatpush1.xpose.msra.mxu0 0.0
        %2025 = vmatprep.subr.mxu0 0.0
        %2026 = vmatpush1.xpose.msra.mxu0 0.0
        %2027 = vmatprep.subr.mxu0 0.0
        %2028 = vmatpush1.xpose.msra.mxu0 0.0
        %2029 = vmatprep.subr.mxu0 0.0
        %2030 = vmatpush1.xpose.msra.mxu0 0.0
        %2031 = vmatprep.subr.mxu0 0.0
        %2032 = vmatpush1.xpose.msra.mxu0 0.0
        %2033 = vmatprep.mubr.f32.mxu0 %v1950
        %2034 = vmatmul.mubr.f32.gmra.mrb[0].mxu0 %v1949
        %v2035 = vpop.f32.mrb[0].mxu0
        %v2036 = vadd.f32 0.0, %v2035
        %v2037 = vpop.f32.mrb[0].mxu0
        %2038 = vdwg.mxu0
        %s2039 = sld [smem:[#allocation4]]
        %v2040 = vstv %s2039
        %v2041 = vmul.f32 %v2036, %v2040
        %vm2042 = vcmask 27648
        %v2043 = vsel %vm2042, %v2041, -inf
        %2044 = vmax.xlane.f32.xlu0 %v2043
        %v2045 = vpop.xlane.xlu0 %2044
        %v2046 = vsub.f32 %v2041, %v2045
        %v2047 = vmul.f32 %v2046, 1.442695
        %v2048 = vpow.pop %v2047
        %v2049 = vsel %vm2042, %v2048, 0.0
        %2050 = vadd.xlane.f32.xlu0 %v2049
        %v2051 = vpop.xlane.xlu0 %2050
        %v2052 = vrcp.pop %v2051
        %v2053 = vmul.f32 %v2048, %v2052
        %vm2054 = vcmask 31744
        %v2056 = vsel %vm2054, %v2053, 0
        %v2059 = vsel %vm1934, %v1916, 0
        %v2062 = vsel %vm1934, %v1917, 0
        %2064 = vmatprep.subr.mxu0 %v2062
        %2065 = vmatpush1.msra.mxu0 %v2059
        %2066 = vmatprep.subr.mxu0 0.0
        %2067 = vmatpush1.msra.mxu0 0.0
        %2068 = vmatprep.subr.mxu0 0.0
        %2069 = vmatpush1.msra.mxu0 0.0
        %2070 = vmatprep.subr.mxu0 0.0
        %2071 = vmatpush1.msra.mxu0 0.0
        %2072 = vmatprep.subr.mxu0 0.0
        %2073 = vmatpush1.msra.mxu0 0.0
        %2074 = vmatprep.subr.mxu0 0.0
        %2075 = vmatpush1.msra.mxu0 0.0
        %2076 = vmatprep.subr.mxu0 0.0
        %2077 = vmatpush1.msra.mxu0 0.0
        %2078 = vmatprep.subr.mxu0 0.0
        %2079 = vmatpush1.msra.mxu0 0.0
        %2080 = vmatprep.subr.mxu0 0.0
        %2081 = vmatpush1.msra.mxu0 0.0
        %2082 = vmatprep.subr.mxu0 0.0
        %2083 = vmatpush1.msra.mxu0 0.0
        %2084 = vmatprep.subr.mxu0 0.0
        %2085 = vmatpush1.msra.mxu0 0.0
        %2086 = vmatprep.subr.mxu0 0.0
        %2087 = vmatpush1.msra.mxu0 0.0
        %2088 = vmatprep.subr.mxu0 0.0
        %2089 = vmatpush1.msra.mxu0 0.0
        %2090 = vmatprep.subr.mxu0 0.0
        %2091 = vmatpush1.msra.mxu0 0.0
        %2092 = vmatprep.subr.mxu0 0.0
        %2093 = vmatpush1.msra.mxu0 0.0
        %2094 = vmatprep.subr.mxu0 0.0
        %2095 = vmatpush1.msra.mxu0 0.0
        %2096 = vmatprep.subr.mxu0 0.0
        %2097 = vmatpush1.msra.mxu0 0.0
        %2098 = vmatprep.subr.mxu0 0.0
        %2099 = vmatpush1.msra.mxu0 0.0
        %2100 = vmatprep.subr.mxu0 0.0
        %2101 = vmatpush1.msra.mxu0 0.0
        %2102 = vmatprep.subr.mxu0 0.0
        %2103 = vmatpush1.msra.mxu0 0.0
        %2104 = vmatprep.subr.mxu0 0.0
        %2105 = vmatpush1.msra.mxu0 0.0
        %2106 = vmatprep.subr.mxu0 0.0
        %2107 = vmatpush1.msra.mxu0 0.0
        %2108 = vmatprep.subr.mxu0 0.0
        %2109 = vmatpush1.msra.mxu0 0.0
        %2110 = vmatprep.subr.mxu0 0.0
        %2111 = vmatpush1.msra.mxu0 0.0
        %2112 = vmatprep.subr.mxu0 0.0
        %2113 = vmatpush1.msra.mxu0 0.0
        %2114 = vmatprep.subr.mxu0 0.0
        %2115 = vmatpush1.msra.mxu0 0.0
        %2116 = vmatprep.subr.mxu0 0.0
        %2117 = vmatpush1.msra.mxu0 0.0
        %2118 = vmatprep.subr.mxu0 0.0
        %2119 = vmatpush1.msra.mxu0 0.0
        %2120 = vmatprep.subr.mxu0 0.0
        %2121 = vmatpush1.msra.mxu0 0.0
        %2122 = vmatprep.subr.mxu0 0.0
        %2123 = vmatpush1.msra.mxu0 0.0
        %2124 = vmatprep.subr.mxu0 0.0
        %2125 = vmatpush1.msra.mxu0 0.0
        %2126 = vmatprep.subr.mxu0 0.0
        %2127 = vmatpush1.msra.mxu0 0.0
        %2128 = vmatprep.mubr.f32.mxu0 0.0
        %2129 = vmatmul.mubr.f32.gmra.mrb[0].mxu0 %v2056
        %v2130 = vpop.f32.mrb[0].mxu0
        %v2131 = vadd.f32 0.0, %v2130
        %v2132 = vpop.f32.mrb[0].mxu0
        %v2133 = vadd.f32 0.0, %v2132
        %2134 = vdwg.mxu0
        %2135 = vst [vmem:[#allocation3] sm:$0xf] %v2131
        %2136 = vst [vmem:[#allocation3 + $0x8] sm:$0xf] %v2133
        %vm2137 = vcmask 1047556
        %v2138 = vsel %vm2137, %v1932, 0.0
        %v2139 = vsel %vm2137, %v1933, 0.0
        %v2140 = vadd.f32 %v2138, %v2139
        %2141 = vadd.xlane.f32.xlu0 %v2140
        %v2142 = vpop.xlane.xlu0 %2141
        %v2143 = vrsqrt.pop %v2142
        %v2144 = vmul.f32 %v2142, %v2143
        %vm2145 = vcmp.eq.f32.partialorder %v2142, inf
        %v2146 = vsel %vm2145, %v2142, %v2144
        %vm2147 = vcmp.eq.f32.partialorder %v2142, 0.0
        %v2148 = vand.u32 %v2142, 2147483648
        %v2149 = vsel %vm2147, %v2148, %v2146
        %v2150 = vmax.f32 %v2149, 1e-12
        %v2151 = vrcp.pop %v2150
        %v2152 = vmul.f32 %v1908, %v2151
        %v2153 = vmul.f32 %v1909, %v2151
        %v2154 = vsel %vm2137, %v1951, 0.0
        %v2155 = vsel %vm2137, %v1952, 0.0
        %v2156 = vadd.f32 %v2154, %v2155
        %2157 = vadd.xlane.f32.xlu0 %v2156
        %v2158 = vpop.xlane.xlu0 %2157
        %v2159 = vrsqrt.pop %v2158
        %v2160 = vmul.f32 %v2158, %v2159
        %vm2161 = vcmp.eq.f32.partialorder %v2158, inf
        %v2162 = vsel %vm2161, %v2158, %v2160
        %vm2163 = vcmp.eq.f32.partialorder %v2158, 0.0
        %v2164 = vand.u32 %v2158, 2147483648
        %v2165 = vsel %vm2163, %v2164, %v2162
        %v2166 = vmax.f32 %v2165, 1e-12
        %v2167 = vrcp.pop %v2166
        %v2168 = vmul.f32 %v1912, %v2167
        %v2169 = vmul.f32 %v1913, %v2167
        %v2172 = vrot.slane %v2152, 4
        %v2173 = vrot.slane %v2153, 4
        %v2178 = vrot.slane %v2168, 4
        %v2179 = vrot.slane %v2169, 4
        %2182 = vmatprep.subr.mxu0 %v2179
        %2183 = vmatpush1.xpose.msra.mxu0 %v2178
        %2184 = vmatprep.subr.mxu0 0.0
        %2185 = vmatpush1.xpose.msra.mxu0 0.0
        %2186 = vmatprep.subr.mxu0 0.0
        %2187 = vmatpush1.xpose.msra.mxu0 0.0
        %2188 = vmatprep.subr.mxu0 0.0
        %2189 = vmatpush1.xpose.msra.mxu0 0.0
        %2190 = vmatprep.subr.mxu0 0.0
        %2191 = vmatpush1.xpose.msra.mxu0 0.0
        %2192 = vmatprep.subr.mxu0 0.0
        %2193 = vmatpush1.xpose.msra.mxu0 0.0
        %2194 = vmatprep.subr.mxu0 0.0
        %2195 = vmatpush1.xpose.msra.mxu0 0.0
        %2196 = vmatprep.subr.mxu0 0.0
        %2197 = vmatpush1.xpose.msra.mxu0 0.0
        %2198 = vmatprep.subr.mxu0 0.0
        %2199 = vmatpush1.xpose.msra.mxu0 0.0
        %2200 = vmatprep.subr.mxu0 0.0
        %2201 = vmatpush1.xpose.msra.mxu0 0.0
        %2202 = vmatprep.subr.mxu0 0.0
        %2203 = vmatpush1.xpose.msra.mxu0 0.0
        %2204 = vmatprep.subr.mxu0 0.0
        %2205 = vmatpush1.xpose.msra.mxu0 0.0
        %2206 = vmatprep.subr.mxu0 0.0
        %2207 = vmatpush1.xpose.msra.mxu0 0.0
        %2208 = vmatprep.subr.mxu0 0.0
        %2209 = vmatpush1.xpose.msra.mxu0 0.0
        %2210 = vmatprep.subr.mxu0 0.0
        %2211 = vmatpush1.xpose.msra.mxu0 0.0
        %2212 = vmatprep.subr.mxu0 0.0
        %2213 = vmatpush1.xpose.msra.mxu0 0.0
        %2214 = vmatprep.subr.mxu0 0.0
        %2215 = vmatpush1.xpose.msra.mxu0 0.0
        %2216 = vmatprep.subr.mxu0 0.0
        %2217 = vmatpush1.xpose.msra.mxu0 0.0
        %2218 = vmatprep.subr.mxu0 0.0
        %2219 = vmatpush1.xpose.msra.mxu0 0.0
        %2220 = vmatprep.subr.mxu0 0.0
        %2221 = vmatpush1.xpose.msra.mxu0 0.0
        %2222 = vmatprep.subr.mxu0 0.0
        %2223 = vmatpush1.xpose.msra.mxu0 0.0
        %2224 = vmatprep.subr.mxu0 0.0
        %2225 = vmatpush1.xpose.msra.mxu0 0.0
        %2226 = vmatprep.subr.mxu0 0.0
        %2227 = vmatpush1.xpose.msra.mxu0 0.0
        %2228 = vmatprep.subr.mxu0 0.0
        %2229 = vmatpush1.xpose.msra.mxu0 0.0
        %2230 = vmatprep.subr.mxu0 0.0
        %2231 = vmatpush1.xpose.msra.mxu0 0.0
        %2232 = vmatprep.subr.mxu0 0.0
        %2233 = vmatpush1.xpose.msra.mxu0 0.0
        %2234 = vmatprep.subr.mxu0 0.0
        %2235 = vmatpush1.xpose.msra.mxu0 0.0
        %2236 = vmatprep.subr.mxu0 0.0
        %2237 = vmatpush1.xpose.msra.mxu0 0.0
        %2238 = vmatprep.subr.mxu0 0.0
        %2239 = vmatpush1.xpose.msra.mxu0 0.0
        %2240 = vmatprep.subr.mxu0 0.0
        %2241 = vmatpush1.xpose.msra.mxu0 0.0
        %2242 = vmatprep.subr.mxu0 0.0
        %2243 = vmatpush1.xpose.msra.mxu0 0.0
        %2244 = vmatprep.subr.mxu0 0.0
        %2245 = vmatpush1.xpose.msra.mxu0 0.0
        %2246 = vmatprep.mubr.f32.mxu0 %v2173
        %2247 = vmatmul.mubr.f32.gmra.mrb[0].mxu0 %v2172
        %v2248 = vpop.f32.mrb[0].mxu0
        %v2249 = vadd.f32 0.0, %v2248
        %v2250 = vpop.f32.mrb[0].mxu0
        %2251 = vdwg.mxu0
        %s2252 = sld [smem:[#allocation4 + $0x1]]
        %v2253 = vstv %s2252
        %v2254 = vmul.f32 %v2249, %v2253
        %v2255 = vsel %vm2042, %v2254, -inf
        %2256 = vmax.xlane.f32.xlu0 %v2255
        %v2257 = vpop.xlane.xlu0 %2256
        %v2258 = vsub.f32 %v2254, %v2257
        %v2259 = vmul.f32 %v2258, 1.442695
        %v2260 = vpow.pop %v2259
        %v2261 = vsel %vm2042, %v2260, 0.0
        %2262 = vadd.xlane.f32.xlu0 %v2261
        %v2263 = vpop.xlane.xlu0 %2262
        %v2264 = vrcp.pop %v2263
        %v2265 = vmul.f32 %v2260, %v2264
        %v2266 = vrot.slane %v1916, 4
        %v2267 = vrot.slane %v1917, 4
        %v2269 = vsel %vm2054, %v2265, 0
        %v2271 = vsel %vm1934, %v2266, 0
        %v2273 = vsel %vm1934, %v2267, 0
        %2275 = vmatprep.subr.mxu0 %v2273
        %2276 = vmatpush1.msra.mxu0 %v2271
        %2277 = vmatprep.subr.mxu0 0.0
        %2278 = vmatpush1.msra.mxu0 0.0
        %2279 = vmatprep.subr.mxu0 0.0
        %2280 = vmatpush1.msra.mxu0 0.0
        %2281 = vmatprep.subr.mxu0 0.0
        %2282 = vmatpush1.msra.mxu0 0.0
        %2283 = vmatprep.subr.mxu0 0.0
        %2284 = vmatpush1.msra.mxu0 0.0
        %2285 = vmatprep.subr.mxu0 0.0
        %2286 = vmatpush1.msra.mxu0 0.0
        %2287 = vmatprep.subr.mxu0 0.0
        %2288 = vmatpush1.msra.mxu0 0.0
        %2289 = vmatprep.subr.mxu0 0.0
        %2290 = vmatpush1.msra.mxu0 0.0
        %2291 = vmatprep.subr.mxu0 0.0
        %2292 = vmatpush1.msra.mxu0 0.0
        %2293 = vmatprep.subr.mxu0 0.0
        %2294 = vmatpush1.msra.mxu0 0.0
        %2295 = vmatprep.subr.mxu0 0.0
        %2296 = vmatpush1.msra.mxu0 0.0
        %2297 = vmatprep.subr.mxu0 0.0
        %2298 = vmatpush1.msra.mxu0 0.0
        %2299 = vmatprep.subr.mxu0 0.0
        %2300 = vmatpush1.msra.mxu0 0.0
        %2301 = vmatprep.subr.mxu0 0.0
        %2302 = vmatpush1.msra.mxu0 0.0
        %2303 = vmatprep.subr.mxu0 0.0
        %2304 = vmatpush1.msra.mxu0 0.0
        %2305 = vmatprep.subr.mxu0 0.0
        %2306 = vmatpush1.msra.mxu0 0.0
        %2307 = vmatprep.subr.mxu0 0.0
        %2308 = vmatpush1.msra.mxu0 0.0
        %2309 = vmatprep.subr.mxu0 0.0
        %2310 = vmatpush1.msra.mxu0 0.0
        %2311 = vmatprep.subr.mxu0 0.0
        %2312 = vmatpush1.msra.mxu0 0.0
        %2313 = vmatprep.subr.mxu0 0.0
        %2314 = vmatpush1.msra.mxu0 0.0
        %2315 = vmatprep.subr.mxu0 0.0
        %2316 = vmatpush1.msra.mxu0 0.0
        %2317 = vmatprep.subr.mxu0 0.0
        %2318 = vmatpush1.msra.mxu0 0.0
        %2319 = vmatprep.subr.mxu0 0.0
        %2320 = vmatpush1.msra.mxu0 0.0
        %2321 = vmatprep.subr.mxu0 0.0
        %2322 = vmatpush1.msra.mxu0 0.0
        %2323 = vmatprep.subr.mxu0 0.0
        %2324 = vmatpush1.msra.mxu0 0.0
        %2325 = vmatprep.subr.mxu0 0.0
        %2326 = vmatpush1.msra.mxu0 0.0
        %2327 = vmatprep.subr.mxu0 0.0
        %2328 = vmatpush1.msra.mxu0 0.0
        %2329 = vmatprep.subr.mxu0 0.0
        %2330 = vmatpush1.msra.mxu0 0.0
        %2331 = vmatprep.subr.mxu0 0.0
        %2332 = vmatpush1.msra.mxu0 0.0
        %2333 = vmatprep.subr.mxu0 0.0
        %2334 = vmatpush1.msra.mxu0 0.0
        %2335 = vmatprep.subr.mxu0 0.0
        %2336 = vmatpush1.msra.mxu0 0.0
        %2337 = vmatprep.subr.mxu0 0.0
        %2338 = vmatpush1.msra.mxu0 0.0
        %2339 = vmatprep.mubr.f32.mxu0 0.0
        %2340 = vmatmul.mubr.f32.gmra.mrb[0].mxu0 %v2269
        %v2341 = vpop.f32.mrb[0].mxu0
        %v2342 = vadd.f32 0.0, %v2341
        %v2343 = vpop.f32.mrb[0].mxu0
        %v2344 = vadd.f32 0.0, %v2343
        %2345 = vdwg.mxu0
        %v2348 = vrot.slane %v2342, 4
        %v2349 = vrot.slane %v2344, 4
        %2352 = vst [vmem:[#allocation3] sm:$0xf0] %v2348
        %2353 = vst [vmem:[#allocation3 + $0x8] sm:$0xf0] %v2349
        %v2354 = vmul.f32 %v1910, %v1910
        %v2355 = vmul.f32 %v1911, %v1911
        %v2356 = vsel %vm1934, %v2354, 0.0
        %v2357 = vsel %vm1934, %v2355, 0.0
        %v2358 = vadd.f32 %v2356, %v2357
        %2359 = vadd.xlane.f32.xlu0 %v2358
        %v2360 = vpop.xlane.xlu0 %2359
        %v2361 = vrsqrt.pop %v2360
        %v2362 = vmul.f32 %v2360, %v2361
        %vm2363 = vcmp.eq.f32.partialorder %v2360, inf
        %v2364 = vsel %vm2363, %v2360, %v2362
        %vm2365 = vcmp.eq.f32.partialorder %v2360, 0.0
        %v2366 = vand.u32 %v2360, 2147483648
        %v2367 = vsel %vm2365, %v2366, %v2364
        %v2368 = vmax.f32 %v2367, 1e-12
        %v2369 = vrcp.pop %v2368
        %v2370 = vmul.f32 %v1910, %v2369
        %v2371 = vmul.f32 %v1911, %v2369
        %v2372 = vmul.f32 %v1914, %v1914
        %v2373 = vmul.f32 %v1915, %v1915
        %v2374 = vsel %vm1934, %v2372, 0.0
        %v2375 = vsel %vm1934, %v2373, 0.0
        %v2376 = vadd.f32 %v2374, %v2375
        %2377 = vadd.xlane.f32.xlu0 %v2376
        %v2378 = vpop.xlane.xlu0 %2377
        %v2379 = vrsqrt.pop %v2378
        %v2380 = vmul.f32 %v2378, %v2379
        %vm2381 = vcmp.eq.f32.partialorder %v2378, inf
        %v2382 = vsel %vm2381, %v2378, %v2380
        %vm2383 = vcmp.eq.f32.partialorder %v2378, 0.0
        %v2384 = vand.u32 %v2378, 2147483648
        %v2385 = vsel %vm2383, %v2384, %v2382
        %v2386 = vmax.f32 %v2385, 1e-12
        %v2387 = vrcp.pop %v2386
        %v2388 = vmul.f32 %v1914, %v2387
        %v2389 = vmul.f32 %v1915, %v2387
        %2390 = vmatprep.subr.mxu0 %v2389
        %2391 = vmatpush1.xpose.msra.mxu0 %v2388
        %2392 = vmatprep.subr.mxu0 0.0
        %2393 = vmatpush1.xpose.msra.mxu0 0.0
        %2394 = vmatprep.subr.mxu0 0.0
        %2395 = vmatpush1.xpose.msra.mxu0 0.0
        %2396 = vmatprep.subr.mxu0 0.0
        %2397 = vmatpush1.xpose.msra.mxu0 0.0
        %2398 = vmatprep.subr.mxu0 0.0
        %2399 = vmatpush1.xpose.msra.mxu0 0.0
        %2400 = vmatprep.subr.mxu0 0.0
        %2401 = vmatpush1.xpose.msra.mxu0 0.0
        %2402 = vmatprep.subr.mxu0 0.0
        %2403 = vmatpush1.xpose.msra.mxu0 0.0
        %2404 = vmatprep.subr.mxu0 0.0
        %2405 = vmatpush1.xpose.msra.mxu0 0.0
        %2406 = vmatprep.subr.mxu0 0.0
        %2407 = vmatpush1.xpose.msra.mxu0 0.0
        %2408 = vmatprep.subr.mxu0 0.0
        %2409 = vmatpush1.xpose.msra.mxu0 0.0
        %2410 = vmatprep.subr.mxu0 0.0
        %2411 = vmatpush1.xpose.msra.mxu0 0.0
        %2412 = vmatprep.subr.mxu0 0.0
        %2413 = vmatpush1.xpose.msra.mxu0 0.0
        %2414 = vmatprep.subr.mxu0 0.0
        %2415 = vmatpush1.xpose.msra.mxu0 0.0
        %2416 = vmatprep.subr.mxu0 0.0
        %2417 = vmatpush1.xpose.msra.mxu0 0.0
        %2418 = vmatprep.subr.mxu0 0.0
        %2419 = vmatpush1.xpose.msra.mxu0 0.0
        %2420 = vmatprep.subr.mxu0 0.0
        %2421 = vmatpush1.xpose.msra.mxu0 0.0
        %2422 = vmatprep.subr.mxu0 0.0
        %2423 = vmatpush1.xpose.msra.mxu0 0.0
        %2424 = vmatprep.subr.mxu0 0.0
        %2425 = vmatpush1.xpose.msra.mxu0 0.0
        %2426 = vmatprep.subr.mxu0 0.0
        %2427 = vmatpush1.xpose.msra.mxu0 0.0
        %2428 = vmatprep.subr.mxu0 0.0
        %2429 = vmatpush1.xpose.msra.mxu0 0.0
        %2430 = vmatprep.subr.mxu0 0.0
        %2431 = vmatpush1.xpose.msra.mxu0 0.0
        %2432 = vmatprep.subr.mxu0 0.0
        %2433 = vmatpush1.xpose.msra.mxu0 0.0
        %2434 = vmatprep.subr.mxu0 0.0
        %2435 = vmatpush1.xpose.msra.mxu0 0.0
        %2436 = vmatprep.subr.mxu0 0.0
        %2437 = vmatpush1.xpose.msra.mxu0 0.0
        %2438 = vmatprep.subr.mxu0 0.0
        %2439 = vmatpush1.xpose.msra.mxu0 0.0
        %2440 = vmatprep.subr.mxu0 0.0
        %2441 = vmatpush1.xpose.msra.mxu0 0.0
        %2442 = vmatprep.subr.mxu0 0.0
        %2443 = vmatpush1.xpose.msra.mxu0 0.0
        %2444 = vmatprep.subr.mxu0 0.0
        %2445 = vmatpush1.xpose.msra.mxu0 0.0
        %2446 = vmatprep.subr.mxu0 0.0
        %2447 = vmatpush1.xpose.msra.mxu0 0.0
        %2448 = vmatprep.subr.mxu0 0.0
        %2449 = vmatpush1.xpose.msra.mxu0 0.0
        %2450 = vmatprep.subr.mxu0 0.0
        %2451 = vmatpush1.xpose.msra.mxu0 0.0
        %2452 = vmatprep.subr.mxu0 0.0
        %2453 = vmatpush1.xpose.msra.mxu0 0.0
        %2454 = vmatprep.mubr.f32.mxu0 %v2371
        %2455 = vmatmul.mubr.f32.gmra.mrb[0].mxu0 %v2370
        %v2456 = vpop.f32.mrb[0].mxu0
        %v2457 = vadd.f32 0.0, %v2456
        %v2458 = vpop.f32.mrb[0].mxu0
        %2459 = vdwg.mxu0
        %s2460 = sld [smem:[#allocation4 + $0x2]]
        %v2461 = vstv %s2460
        %v2462 = vmul.f32 %v2457, %v2461
        %v2463 = vsel %vm2042, %v2462, -inf
        %2464 = vmax.xlane.f32.xlu0 %v2463
        %v2465 = vpop.xlane.xlu0 %2464
        %v2466 = vsub.f32 %v2462, %v2465
        %v2467 = vmul.f32 %v2466, 1.442695
        %v2468 = vpow.pop %v2467
        %v2469 = vsel %vm2042, %v2468, 0.0
        %2470 = vadd.xlane.f32.xlu0 %v2469
        %v2471 = vpop.xlane.xlu0 %2470
        %v2472 = vrcp.pop %v2471
        %v2473 = vmul.f32 %v2468, %v2472
        %v2475 = vsel %vm2054, %v2473, 0
        %v2478 = vsel %vm1934, %v1918, 0
        %v2481 = vsel %vm1934, %v1919, 0
        %2483 = vmatprep.subr.mxu0 %v2481
        %2484 = vmatpush1.msra.mxu0 %v2478
        %2485 = vmatprep.subr.mxu0 0.0
        %2486 = vmatpush1.msra.mxu0 0.0
        %2487 = vmatprep.subr.mxu0 0.0
        %2488 = vmatpush1.msra.mxu0 0.0
        %2489 = vmatprep.subr.mxu0 0.0
        %2490 = vmatpush1.msra.mxu0 0.0
        %2491 = vmatprep.subr.mxu0 0.0
        %2492 = vmatpush1.msra.mxu0 0.0
        %2493 = vmatprep.subr.mxu0 0.0
        %2494 = vmatpush1.msra.mxu0 0.0
        %2495 = vmatprep.subr.mxu0 0.0
        %2496 = vmatpush1.msra.mxu0 0.0
        %2497 = vmatprep.subr.mxu0 0.0
        %2498 = vmatpush1.msra.mxu0 0.0
        %2499 = vmatprep.subr.mxu0 0.0
        %2500 = vmatpush1.msra.mxu0 0.0
        %2501 = vmatprep.subr.mxu0 0.0
        %2502 = vmatpush1.msra.mxu0 0.0
        %2503 = vmatprep.subr.mxu0 0.0
        %2504 = vmatpush1.msra.mxu0 0.0
        %2505 = vmatprep.subr.mxu0 0.0
        %2506 = vmatpush1.msra.mxu0 0.0
        %2507 = vmatprep.subr.mxu0 0.0
        %2508 = vmatpush1.msra.mxu0 0.0
        %2509 = vmatprep.subr.mxu0 0.0
        %2510 = vmatpush1.msra.mxu0 0.0
        %2511 = vmatprep.subr.mxu0 0.0
        %2512 = vmatpush1.msra.mxu0 0.0
        %2513 = vmatprep.subr.mxu0 0.0
        %2514 = vmatpush1.msra.mxu0 0.0
        %2515 = vmatprep.subr.mxu0 0.0
        %2516 = vmatpush1.msra.mxu0 0.0
        %2517 = vmatprep.subr.mxu0 0.0
        %2518 = vmatpush1.msra.mxu0 0.0
        %2519 = vmatprep.subr.mxu0 0.0
        %2520 = vmatpush1.msra.mxu0 0.0
        %2521 = vmatprep.subr.mxu0 0.0
        %2522 = vmatpush1.msra.mxu0 0.0
        %2523 = vmatprep.subr.mxu0 0.0
        %2524 = vmatpush1.msra.mxu0 0.0
        %2525 = vmatprep.subr.mxu0 0.0
        %2526 = vmatpush1.msra.mxu0 0.0
        %2527 = vmatprep.subr.mxu0 0.0
        %2528 = vmatpush1.msra.mxu0 0.0
        %2529 = vmatprep.subr.mxu0 0.0
        %2530 = vmatpush1.msra.mxu0 0.0
        %2531 = vmatprep.subr.mxu0 0.0
        %2532 = vmatpush1.msra.mxu0 0.0
        %2533 = vmatprep.subr.mxu0 0.0
        %2534 = vmatpush1.msra.mxu0 0.0
        %2535 = vmatprep.subr.mxu0 0.0
        %2536 = vmatpush1.msra.mxu0 0.0
        %2537 = vmatprep.subr.mxu0 0.0
        %2538 = vmatpush1.msra.mxu0 0.0
        %2539 = vmatprep.subr.mxu0 0.0
        %2540 = vmatpush1.msra.mxu0 0.0
        %2541 = vmatprep.subr.mxu0 0.0
        %2542 = vmatpush1.msra.mxu0 0.0
        %2543 = vmatprep.subr.mxu0 0.0
        %2544 = vmatpush1.msra.mxu0 0.0
        %2545 = vmatprep.subr.mxu0 0.0
        %2546 = vmatpush1.msra.mxu0 0.0
        %2547 = vmatprep.mubr.f32.mxu0 0.0
        %2548 = vmatmul.mubr.f32.gmra.mrb[0].mxu0 %v2475
        %v2549 = vpop.f32.mrb[0].mxu0
        %v2550 = vadd.f32 0.0, %v2549
        %v2551 = vpop.f32.mrb[0].mxu0
        %v2552 = vadd.f32 0.0, %v2551
        %2553 = vdwg.mxu0
        %2554 = vst [vmem:[#allocation3 + $0x10] sm:$0xf] %v2550
        %2555 = vst [vmem:[#allocation3 + $0x18] sm:$0xf] %v2552
        %v2556 = vsel %vm2137, %v2354, 0.0
        %v2557 = vsel %vm2137, %v2355, 0.0
        %v2558 = vadd.f32 %v2556, %v2557
        %2559 = vadd.xlane.f32.xlu0 %v2558
        %v2560 = vpop.xlane.xlu0 %2559
        %v2561 = vrsqrt.pop %v2560
        %v2562 = vmul.f32 %v2560, %v2561
        %vm2563 = vcmp.eq.f32.partialorder %v2560, inf
        %v2564 = vsel %vm2563, %v2560, %v2562
        %vm2565 = vcmp.eq.f32.partialorder %v2560, 0.0
        %v2566 = vand.u32 %v2560, 2147483648
        %v2567 = vsel %vm2565, %v2566, %v2564
        %v2568 = vmax.f32 %v2567, 1e-12
        %v2569 = vrcp.pop %v2568
        %v2570 = vmul.f32 %v1910, %v2569
        %v2571 = vmul.f32 %v1911, %v2569
        %v2572 = vsel %vm2137, %v2372, 0.0
        %v2573 = vsel %vm2137, %v2373, 0.0
        %v2574 = vadd.f32 %v2572, %v2573
        %2575 = vadd.xlane.f32.xlu0 %v2574
        %v2576 = vpop.xlane.xlu0 %2575
        %v2577 = vrsqrt.pop %v2576
        %v2578 = vmul.f32 %v2576, %v2577
        %vm2579 = vcmp.eq.f32.partialorder %v2576, inf
        %v2580 = vsel %vm2579, %v2576, %v2578
        %vm2581 = vcmp.eq.f32.partialorder %v2576, 0.0
        %v2582 = vand.u32 %v2576, 2147483648
        %v2583 = vsel %vm2581, %v2582, %v2580
        %v2584 = vmax.f32 %v2583, 1e-12
        %v2585 = vrcp.pop %v2584
        %v2586 = vmul.f32 %v1914, %v2585
        %v2587 = vmul.f32 %v1915, %v2585
        %v2590 = vrot.slane %v2570, 4
        %v2591 = vrot.slane %v2571, 4
        %v2596 = vrot.slane %v2586, 4
        %v2597 = vrot.slane %v2587, 4
        %2600 = vmatprep.subr.mxu0 %v2597
        %2601 = vmatpush1.xpose.msra.mxu0 %v2596
        %2602 = vmatprep.subr.mxu0 0.0
        %2603 = vmatpush1.xpose.msra.mxu0 0.0
        %2604 = vmatprep.subr.mxu0 0.0
        %2605 = vmatpush1.xpose.msra.mxu0 0.0
        %2606 = vmatprep.subr.mxu0 0.0
        %2607 = vmatpush1.xpose.msra.mxu0 0.0
        %2608 = vmatprep.subr.mxu0 0.0
        %2609 = vmatpush1.xpose.msra.mxu0 0.0
        %2610 = vmatprep.subr.mxu0 0.0
        %2611 = vmatpush1.xpose.msra.mxu0 0.0
        %2612 = vmatprep.subr.mxu0 0.0
        %2613 = vmatpush1.xpose.msra.mxu0 0.0
        %2614 = vmatprep.subr.mxu0 0.0
        %2615 = vmatpush1.xpose.msra.mxu0 0.0
        %2616 = vmatprep.subr.mxu0 0.0
        %2617 = vmatpush1.xpose.msra.mxu0 0.0
        %2618 = vmatprep.subr.mxu0 0.0
        %2619 = vmatpush1.xpose.msra.mxu0 0.0
        %2620 = vmatprep.subr.mxu0 0.0
        %2621 = vmatpush1.xpose.msra.mxu0 0.0
        %2622 = vmatprep.subr.mxu0 0.0
        %2623 = vmatpush1.xpose.msra.mxu0 0.0
        %2624 = vmatprep.subr.mxu0 0.0
        %2625 = vmatpush1.xpose.msra.mxu0 0.0
        %2626 = vmatprep.subr.mxu0 0.0
        %2627 = vmatpush1.xpose.msra.mxu0 0.0
        %2628 = vmatprep.subr.mxu0 0.0
        %2629 = vmatpush1.xpose.msra.mxu0 0.0
        %2630 = vmatprep.subr.mxu0 0.0
        %2631 = vmatpush1.xpose.msra.mxu0 0.0
        %2632 = vmatprep.subr.mxu0 0.0
        %2633 = vmatpush1.xpose.msra.mxu0 0.0
        %2634 = vmatprep.subr.mxu0 0.0
        %2635 = vmatpush1.xpose.msra.mxu0 0.0
        %2636 = vmatprep.subr.mxu0 0.0
        %2637 = vmatpush1.xpose.msra.mxu0 0.0
        %2638 = vmatprep.subr.mxu0 0.0
        %2639 = vmatpush1.xpose.msra.mxu0 0.0
        %2640 = vmatprep.subr.mxu0 0.0
        %2641 = vmatpush1.xpose.msra.mxu0 0.0
        %2642 = vmatprep.subr.mxu0 0.0
        %2643 = vmatpush1.xpose.msra.mxu0 0.0
        %2644 = vmatprep.subr.mxu0 0.0
        %2645 = vmatpush1.xpose.msra.mxu0 0.0
        %2646 = vmatprep.subr.mxu0 0.0
        %2647 = vmatpush1.xpose.msra.mxu0 0.0
        %2648 = vmatprep.subr.mxu0 0.0
        %2649 = vmatpush1.xpose.msra.mxu0 0.0
        %2650 = vmatprep.subr.mxu0 0.0
        %2651 = vmatpush1.xpose.msra.mxu0 0.0
        %2652 = vmatprep.subr.mxu0 0.0
        %2653 = vmatpush1.xpose.msra.mxu0 0.0
        %2654 = vmatprep.subr.mxu0 0.0
        %2655 = vmatpush1.xpose.msra.mxu0 0.0
        %2656 = vmatprep.subr.mxu0 0.0
        %2657 = vmatpush1.xpose.msra.mxu0 0.0
        %2658 = vmatprep.subr.mxu0 0.0
        %2659 = vmatpush1.xpose.msra.mxu0 0.0
        %2660 = vmatprep.subr.mxu0 0.0
        %2661 = vmatpush1.xpose.msra.mxu0 0.0
        %2662 = vmatprep.subr.mxu0 0.0
        %2663 = vmatpush1.xpose.msra.mxu0 0.0
        %2664 = vmatprep.mubr.f32.mxu0 %v2591
        %2665 = vmatmul.mubr.f32.gmra.mrb[0].mxu0 %v2590
        %v2666 = vpop.f32.mrb[0].mxu0
        %v2667 = vadd.f32 0.0, %v2666
        %v2668 = vpop.f32.mrb[0].mxu0
        %2669 = vdwg.mxu0
        %s2670 = sld [smem:[#allocation4 + $0x3]]
        %v2671 = vstv %s2670
        %v2672 = vmul.f32 %v2667, %v2671
        %v2673 = vsel %vm2042, %v2672, -inf
        %2674 = vmax.xlane.f32.xlu0 %v2673
        %v2675 = vpop.xlane.xlu0 %2674
        %v2676 = vsub.f32 %v2672, %v2675
        %v2677 = vmul.f32 %v2676, 1.442695
        %v2678 = vpow.pop %v2677
        %v2679 = vsel %vm2042, %v2678, 0.0
        %2680 = vadd.xlane.f32.xlu0 %v2679
        %v2681 = vpop.xlane.xlu0 %2680
        %v2682 = vrcp.pop %v2681
        %v2683 = vmul.f32 %v2678, %v2682
        %v2684 = vrot.slane %v1918, 4
        %v2685 = vrot.slane %v1919, 4
        %v2687 = vsel %vm2054, %v2683, 0
        %v2689 = vsel %vm1934, %v2684, 0
        %v2691 = vsel %vm1934, %v2685, 0
        %2693 = vmatprep.subr.mxu0 %v2691
        %2694 = vmatpush1.msra.mxu0 %v2689
        %2695 = vmatprep.subr.mxu0 0.0
        %2696 = vmatpush1.msra.mxu0 0.0
        %2697 = vmatprep.subr.mxu0 0.0
        %2698 = vmatpush1.msra.mxu0 0.0
        %2699 = vmatprep.subr.mxu0 0.0
        %2700 = vmatpush1.msra.mxu0 0.0
        %2701 = vmatprep.subr.mxu0 0.0
        %2702 = vmatpush1.msra.mxu0 0.0
        %2703 = vmatprep.subr.mxu0 0.0
        %2704 = vmatpush1.msra.mxu0 0.0
        %2705 = vmatprep.subr.mxu0 0.0
        %2706 = vmatpush1.msra.mxu0 0.0
        %2707 = vmatprep.subr.mxu0 0.0
        %2708 = vmatpush1.msra.mxu0 0.0
        %2709 = vmatprep.subr.mxu0 0.0
        %2710 = vmatpush1.msra.mxu0 0.0
        %2711 = vmatprep.subr.mxu0 0.0
        %2712 = vmatpush1.msra.mxu0 0.0
        %2713 = vmatprep.subr.mxu0 0.0
        %2714 = vmatpush1.msra.mxu0 0.0
        %2715 = vmatprep.subr.mxu0 0.0
        %2716 = vmatpush1.msra.mxu0 0.0
        %2717 = vmatprep.subr.mxu0 0.0
        %2718 = vmatpush1.msra.mxu0 0.0
        %2719 = vmatprep.subr.mxu0 0.0
        %2720 = vmatpush1.msra.mxu0 0.0
        %2721 = vmatprep.subr.mxu0 0.0
        %2722 = vmatpush1.msra.mxu0 0.0
        %2723 = vmatprep.subr.mxu0 0.0
        %2724 = vmatpush1.msra.mxu0 0.0
        %2725 = vmatprep.subr.mxu0 0.0
        %2726 = vmatpush1.msra.mxu0 0.0
        %2727 = vmatprep.subr.mxu0 0.0
        %2728 = vmatpush1.msra.mxu0 0.0
        %2729 = vmatprep.subr.mxu0 0.0
        %2730 = vmatpush1.msra.mxu0 0.0
        %2731 = vmatprep.subr.mxu0 0.0
        %2732 = vmatpush1.msra.mxu0 0.0
        %2733 = vmatprep.subr.mxu0 0.0
        %2734 = vmatpush1.msra.mxu0 0.0
        %2735 = vmatprep.subr.mxu0 0.0
        %2736 = vmatpush1.msra.mxu0 0.0
        %2737 = vmatprep.subr.mxu0 0.0
        %2738 = vmatpush1.msra.mxu0 0.0
        %2739 = vmatprep.subr.mxu0 0.0
        %2740 = vmatpush1.msra.mxu0 0.0
        %2741 = vmatprep.subr.mxu0 0.0
        %2742 = vmatpush1.msra.mxu0 0.0
        %2743 = vmatprep.subr.mxu0 0.0
        %2744 = vmatpush1.msra.mxu0 0.0
        %2745 = vmatprep.subr.mxu0 0.0
        %2746 = vmatpush1.msra.mxu0 0.0
        %2747 = vmatprep.subr.mxu0 0.0
        %2748 = vmatpush1.msra.mxu0 0.0
        %2749 = vmatprep.subr.mxu0 0.0
        %2750 = vmatpush1.msra.mxu0 0.0
        %2751 = vmatprep.subr.mxu0 0.0
        %2752 = vmatpush1.msra.mxu0 0.0
        %2753 = vmatprep.subr.mxu0 0.0
        %2754 = vmatpush1.msra.mxu0 0.0
        %2755 = vmatprep.subr.mxu0 0.0
        %2756 = vmatpush1.msra.mxu0 0.0
        %2757 = vmatprep.mubr.f32.mxu0 0.0
        %2758 = vmatmul.mubr.f32.gmra.mrb[0].mxu0 %v2687
        %v2759 = vpop.f32.mrb[0].mxu0
        %v2760 = vadd.f32 0.0, %v2759
        %v2761 = vpop.f32.mrb[0].mxu0
        %v2762 = vadd.f32 0.0, %v2761
        %2763 = vdwg.mxu0
        %v2766 = vrot.slane %v2760, 4
        %v2767 = vrot.slane %v2762, 4
        %2770 = vst [vmem:[#allocation3 + $0x10] sm:$0xf0] %v2766
        %2771 = vst [vmem:[#allocation3 + $0x18] sm:$0xf0] %v2767
        %v2772 = vld [vmem:[%s5] sm:$0xff]
        %v2773 = vld [vmem:[%s5 + $0x8] sm:$0xff]
        %v2774 = vld [vmem:[#allocation3] sm:$0xff]
        %v2775 = vld [vmem:[#allocation3 + $0x8] sm:$0xff]
        %v2776 = vld [vmem:[#allocation3 + $0x10] sm:$0xff]
        %v2777 = vld [vmem:[#allocation3 + $0x18] sm:$0xff]
        %v2779 = vsel %vm340, %v2772, 0
        %v2782 = vsel %vm340, %v2773, 0
        %2784 = vmatprep.subr.mxu0 %v2775
        %2785 = vmatpush1.msra.mxu0 %v2774
        %2786 = vmatprep.subr.mxu0 %v2777
        %2787 = vmatpush1.msra.mxu0 %v2776
        %2788 = vmatprep.subr.mxu0 0.0
        %2789 = vmatpush1.msra.mxu0 0.0
        %2790 = vmatprep.subr.mxu0 0.0
        %2791 = vmatpush1.msra.mxu0 0.0
        %2792 = vmatprep.subr.mxu0 0.0
        %2793 = vmatpush1.msra.mxu0 0.0
        %2794 = vmatprep.subr.mxu0 0.0
        %2795 = vmatpush1.msra.mxu0 0.0
        %2796 = vmatprep.subr.mxu0 0.0
        %2797 = vmatpush1.msra.mxu0 0.0
        %2798 = vmatprep.subr.mxu0 0.0
        %2799 = vmatpush1.msra.mxu0 0.0
        %2800 = vmatprep.subr.mxu0 0.0
        %2801 = vmatpush1.msra.mxu0 0.0
        %2802 = vmatprep.subr.mxu0 0.0
        %2803 = vmatpush1.msra.mxu0 0.0
        %2804 = vmatprep.subr.mxu0 0.0
        %2805 = vmatpush1.msra.mxu0 0.0
        %2806 = vmatprep.subr.mxu0 0.0
        %2807 = vmatpush1.msra.mxu0 0.0
        %2808 = vmatprep.subr.mxu0 0.0
        %2809 = vmatpush1.msra.mxu0 0.0
        %2810 = vmatprep.subr.mxu0 0.0
        %2811 = vmatpush1.msra.mxu0 0.0
        %2812 = vmatprep.subr.mxu0 0.0
        %2813 = vmatpush1.msra.mxu0 0.0
        %2814 = vmatprep.subr.mxu0 0.0
        %2815 = vmatpush1.msra.mxu0 0.0
        %2816 = vmatprep.subr.mxu0 0.0
        %2817 = vmatpush1.msra.mxu0 0.0
        %2818 = vmatprep.subr.mxu0 0.0
        %2819 = vmatpush1.msra.mxu0 0.0
        %2820 = vmatprep.subr.mxu0 0.0
        %2821 = vmatpush1.msra.mxu0 0.0
        %2822 = vmatprep.subr.mxu0 0.0
        %2823 = vmatpush1.msra.mxu0 0.0
        %2824 = vmatprep.subr.mxu0 0.0
        %2825 = vmatpush1.msra.mxu0 0.0
        %2826 = vmatprep.subr.mxu0 0.0
        %2827 = vmatpush1.msra.mxu0 0.0
        %2828 = vmatprep.subr.mxu0 0.0
        %2829 = vmatpush1.msra.mxu0 0.0
        %2830 = vmatprep.subr.mxu0 0.0
        %2831 = vmatpush1.msra.mxu0 0.0
        %2832 = vmatprep.subr.mxu0 0.0
        %2833 = vmatpush1.msra.mxu0 0.0
        %2834 = vmatprep.subr.mxu0 0.0
        %2835 = vmatpush1.msra.mxu0 0.0
        %2836 = vmatprep.subr.mxu0 0.0
        %2837 = vmatpush1.msra.mxu0 0.0
        %2838 = vmatprep.subr.mxu0 0.0
        %2839 = vmatpush1.msra.mxu0 0.0
        %2840 = vmatprep.subr.mxu0 0.0
        %2841 = vmatpush1.msra.mxu0 0.0
        %2842 = vmatprep.subr.mxu0 0.0
        %2843 = vmatpush1.msra.mxu0 0.0
        %2844 = vmatprep.subr.mxu0 0.0
        %2845 = vmatpush1.msra.mxu0 0.0
        %2846 = vmatprep.subr.mxu0 0.0
        %2847 = vmatpush1.msra.mxu0 0.0
        %2848 = vmatprep.mubr.f32.mxu0 0.0
        %2849 = vmatmul.mubr.f32.gmra.mrb[0].mxu0 %v2779
        %v2850 = vpop.f32.mrb[0].mxu0
        %v2851 = vadd.f32 0.0, %v2850
        %v2852 = vpop.f32.mrb[0].mxu0
        %v2853 = vadd.f32 0.0, %v2852
        %2854 = vmatprep.mubr.f32.mxu0 0.0
        %2855 = vmatmul.mubr.f32.gmra.mrb[0].mxu0 %v2782
        %v2856 = vpop.f32.mrb[0].mxu0
        %v2857 = vadd.f32 0.0, %v2856
        %v2858 = vpop.f32.mrb[0].mxu0
        %v2859 = vadd.f32 0.0, %v2858
        %2860 = vdwg.mxu0
        %2861 = vst [vmem:[%s311] sm:$0xff] %v2851
        %2862 = vst [vmem:[%s311 + $0x8] sm:$0xff] %v2853
        %2863 = vst [vmem:[%s311 + $0x10] sm:$0xff] %v2857
        %2864 = vst [vmem:[%s311 + $0x18] sm:$0xff] %v2859
        %s2865 = sand.u32 %s170, 1
        %s2866 = scalar_lea.sflag [#allocation5], %s2865
        %s2867 = sand.u32 %s170, 1
        %s2868 = smul.addr %s2867, 96
        %s2869 = scalar_lea.vmem [#allocation7], %s2868
        %s2870 = sand.u32 %s196, 1
        %s2871 = scalar_lea.sflag [#allocation9], %s2870
        %s2872 = sand.u32 %s196, 1
        %s2873 = smul.addr %s2872, 32
        %s2874 = scalar_lea.vmem [#allocation8], %s2873
        // Predicated region
        $region49: #{tpu_custom_call.1} parent=43 // pred_check
          %p2875 = pneg %p180
        $region50: #{tpu_custom_call.1} parent=43 // pred_check_branch
          %2877 = sbr.rel (%p2875) target = $region52
        $region51: #{tpu_custom_call.1} parent=43 // pred_region
          %s2879 = ssub.s32 1536, 1536
          %2880 = vsyncadd %s2866, %s2879
          %s2881 = smul.addr %s26, 12
          %s2882 = smul.addr %s2881, 128
          %s2883 = scalar_lea.hbm %s6, %s2882
          %s2884 = sshll.u32 %s2869, 4
          %s2885 = int_to_ptr.vmem [resolvable:$true] %s2884
          %2890 = dma.vmem_to_hbm [thread:$0]  %s2885, 1536, %s2883, %s2866, 256, 256, 16
        $region52: #{tpu_custom_call.1} parent=43 // pred_fallthru
          _
        // Predicated region
        $region53: #{tpu_custom_call.1} parent=43 // pred_check
          %p2891 = pneg %p206
        $region54: #{tpu_custom_call.1} parent=43 // pred_check_branch
          %2893 = sbr.rel (%p2891) target = $region56
        $region55: #{tpu_custom_call.1} parent=43 // pred_region
          %s2895 = ssub.s32 512, 512
          %2896 = vsyncadd %s2871, %s2895
          %s2897 = smul.addr %s26, 4
          %s2898 = smul.addr %s2897, 128
          %s2899 = scalar_lea.hbm %s7, %s2898
          %s2900 = sshll.u32 %s2874, 4
          %s2901 = int_to_ptr.vmem [resolvable:$true] %s2900
          %2906 = dma.vmem_to_hbm [thread:$0]  %s2901, 512, %s2899, %s2871, 256, 256, 16
        $region56: #{tpu_custom_call.1} parent=43 // pred_fallthru
          _
      $region44: #{tpu_custom_call.1} parent=5 // pred_fallthru
        _
      %p2907 = scmp.le.s32.totalorder 2, %s21
      // Predicated region
      $region57: #{tpu_custom_call.1} parent=5 // pred_check
        %p2908 = pneg %p2907
      $region58: #{tpu_custom_call.1} parent=5 // pred_check_branch
        %2910 = sbr.rel (%p2908) target = $region60
      $region59: #{tpu_custom_call.1} parent=5 // pred_region
        %s2911 = ssub.s32 %s21, 2
        // Predicated region
        $region61: #{tpu_custom_call.1} parent=59 // pred_check
          %p2912 = pneg %p186
        $region62: #{tpu_custom_call.1} parent=59 // pred_check_branch
          %2914 = sbr.rel (%p2912) target = $region64
        $region63: #{tpu_custom_call.1} parent=59 // pred_region
          %s2915 = sand.u32 %s171, 1
          %s2916 = scalar_lea.sflag [#allocation5], %s2915
          %s2917 = sand.u32 %s171, 1
          %s2918 = smul.addr %s2917, 96
          %s2919 = scalar_lea.vmem [#allocation7], %s2918
          %2920 = dma.done %s2916, 1536
        $region64: #{tpu_custom_call.1} parent=59 // pred_fallthru
          _
        // Predicated region
        $region65: #{tpu_custom_call.1} parent=59 // pred_check
          %p2921 = pneg %p212
        $region66: #{tpu_custom_call.1} parent=59 // pred_check_branch
          %2923 = sbr.rel (%p2921) target = $region68
        $region67: #{tpu_custom_call.1} parent=59 // pred_region
          %s2924 = sand.u32 %s197, 1
          %s2925 = scalar_lea.sflag [#allocation9], %s2924
          %s2926 = sand.u32 %s197, 1
          %s2927 = smul.addr %s2926, 32
          %s2928 = scalar_lea.vmem [#allocation8], %s2927
          %2929 = dma.done %s2925, 512
        $region68: #{tpu_custom_call.1} parent=59 // pred_fallthru
          _
      $region60: #{tpu_custom_call.1} parent=5 // pred_fallthru
        _
    $region6: #{tpu_custom_call.1} parent=1 // loop_footer
      %s25 = sadd.s32 1, %s21
    $region7: #{tpu_custom_call.1} parent=1 // loop_footer_branch
      %20 = sbr.rel target = $region3
    $region8: #{tpu_custom_call.1} parent=1 // loop_exit
      _
    %2930 = vsyncpa [#allocation5], 1
    %s2931 = scalar_lea.sflag [#allocation5], 1
    %2932 = vsyncpa %s2931, 1
    %2933 = vsyncpa [#allocation9], 1
    %s2934 = scalar_lea.sflag [#allocation9], 1
    %2935 = vsyncpa %s2934, 1
    %2936 = vsyncpa [#allocation6], 1
    %s2937 = scalar_lea.sflag [#allocation6], 1
    %2938 = vsyncpa %s2937, 1

</llo_original>
